<compile_context>
chip_gen: v5e
topology: v5e:2x2
jax: 0.10.0
libtpu: 0.0.40
codegen_flags: <defaults>
</compile_context>

<pallas_src>
import jax
import jax.numpy as jnp
from jax.experimental import pallas as pl
from jax.experimental.pallas import tpu as pltpu

BN_EPS = 1e-5
LANE = 128


def _round_up(x, m):
    return (x + m - 1) // m * m


# ---------------------------------------------------------------------------
# Pass 1: 3x3 conv as ONE im2col matmul per row tile + partial BN statistics.
# ---------------------------------------------------------------------------
def _conv_stats_kernel(xp_ref, w_ref, y_ref, psum_ref, psq_ref, a_ref):
    thp, wp, cin = xp_ref.shape[1], xp_ref.shape[2], xp_ref.shape[3]
    th, w = thp - 2, wp - 2
    cout_p = y_ref.shape[-1]

    # Build the (TH*W, 9*Cin) im2col operand once per tile in VMEM scratch.
    for dy in range(3):
        for dx in range(3):
            tap = dy * 3 + dx
            patch = xp_ref[0, pl.ds(dy, th), pl.ds(dx, w), :].reshape(th * w, cin)
            a_ref[:, tap * cin:(tap + 1) * cin] = patch

    # Single MXU matmul, K = 9*Cin, f32 accumulation.
    y = jnp.dot(a_ref[...], w_ref[...], preferred_element_type=jnp.float32)

    # bf16 conv temp to HBM; statistics from the f32 accumulator.
    y_ref[0] = y.astype(jnp.bfloat16)
    psum_ref[...] = jnp.sum(y, axis=0, keepdims=True).reshape(1, 1, cout_p)
    psq_ref[...] = jnp.sum(y * y, axis=0, keepdims=True).reshape(1, 1, cout_p)


# ---------------------------------------------------------------------------
# Pass 2: y*scale + shift, ReLU, transpose to channel-major -> NCHW output.
# ---------------------------------------------------------------------------
def _bn_relu_kernel(y_ref, scale_ref, shift_ref, out_ref):
    cout = out_ref.shape[1]
    y = y_ref[0].astype(jnp.float32)                               # (TL, Cout_p)
    z = jnp.maximum(y * scale_ref[...] + shift_ref[...], 0.0)
    out_ref[0] = jnp.transpose(z)[:cout, :]                        # (Cout, TL), lane-dense


# ---------------------------------------------------------------------------
# Wrapper: NCHW in / NCHW out, PyTorch parameter layouts.
# ---------------------------------------------------------------------------
def unet_block(x_nchw, conv_w, conv_b, bn_gamma, bn_beta):
    """x_nchw: (N, Cin, H, W); conv_w: (Cout, Cin, 3, 3) (PyTorch layout)."""
    del conv_b  # exactly cancelled by training-mode BatchNorm mean subtraction

    N, Cin, H, W = x_nchw.shape
    Cout = conv_w.shape[0]
    Cout_p = _round_up(Cout, LANE)          # lane-dense output channels
    HW = H * W
    M = N * HW

    # ---- generation-specific VMEM budget -------------------------------------
    try:
        phys_vmem = int(pltpu.get_tpu_info().vmem_capacity_bytes)
    except Exception:
        phys_vmem = 64 * 1024 * 1024
    if phys_vmem <= 0:
        phys_vmem = 64 * 1024 * 1024
    vmem_limit = min(phys_vmem * 3 // 4, 96 * 1024 * 1024)   # ~48 MiB v7x, 96 MiB v5e/v6e
    tile_budget = vmem_limit // 3

    # ---- pass-1 row tiling (2-row halo) ---------------------------------------
    def _p1_bytes(th):
        in_tile = (th + 2) * _round_up(W + 2, 16) * LANE * 2       # bf16, Cin lane-padded
        y_out = th * W * Cout_p * 2                                # bf16 output block
        y_f32 = th * W * Cout_p * 4                                # f32 accumulator value
        a_im2col = th * W * _round_up(9 * Cin, LANE) * 2           # bf16 im2col scratch
        return 2 * (in_tile + y_out) + y_f32 + a_im2col

    TH = H
    if _p1_bytes(H) > tile_budget:
        TH = None
        for th in range(H - 1, 0, -1):
            if H % th == 0 and (th * W) % 8 == 0 and _p1_bytes(th) <= tile_budget:
                TH = th
                break
        if TH is None:
            TH = H  # TODO(synk): add halo sub-tiling along W for pathological shapes
    nT1 = H // TH

    # ---- glue: NCHW -> NHWC bf16, 1-px zero pad, overlapping row windows ------
    # TODO(synk): the XLA-side pad/window copy costs one extra input round trip;
    # for very large inputs DMA the halo in-kernel from the unpadded array.
    # TODO(synk): for tiny Cin a lane-dense (N, H+2, (W+2)*Cin) slab would shrink
    # the input DMA/VMEM footprint further.
    x = jnp.transpose(x_nchw, (0, 2, 3, 1)).astype(jnp.bfloat16)
    xp = jnp.pad(x, ((0, 0), (1, 1), (1, 1), (0, 0)))              # (N, H+2, W+2, Cin)
    if nT1 == 1:
        xp_tiles = xp
    else:
        xp_tiles = jnp.stack(
            [xp[:, i * TH:i * TH + TH + 2] for i in range(nT1)], axis=1
        ).reshape(N * nT1, TH + 2, W + 2, Cin)

    # (Cout, Cin, 3, 3) -> (9*Cin, Cout_p): tap-major rows, one big contraction.
    w = jnp.transpose(conv_w, (2, 3, 1, 0)).reshape(9 * Cin, Cout)
    w = jnp.pad(w, ((0, 0), (0, Cout_p - Cout))).astype(jnp.bfloat16)

    # ---------------- pass 1: conv + per-tile partial statistics --------------
    y_tmp, psum, psq = pl.pallas_call(
        _conv_stats_kernel,
        out_shape=(
            jax.ShapeDtypeStruct((N, HW, Cout_p), jnp.bfloat16),      # conv temp (bf16)
            jax.ShapeDtypeStruct((N * nT1, 1, Cout_p), jnp.float32),  # partial sums
            jax.ShapeDtypeStruct((N * nT1, 1, Cout_p), jnp.float32),  # partial sumsq
        ),
        grid_spec=pltpu.PrefetchScalarGridSpec(
            num_scalar_prefetch=0,
            grid=(N, nT1),
            in_specs=[
                pl.BlockSpec((1, TH + 2, W + 2, Cin),
                             lambda n, i: (n * nT1 + i, 0, 0, 0)),
                pl.BlockSpec((9 * Cin, Cout_p), lambda n, i: (0, 0)),
            ],
            out_specs=[
                pl.BlockSpec((1, TH * W, Cout_p), lambda n, i: (n, i, 0)),
                pl.BlockSpec((1, 1, Cout_p), lambda n, i: (n * nT1 + i, 0, 0)),
                pl.BlockSpec((1, 1, Cout_p), lambda n, i: (n * nT1 + i, 0, 0)),
            ],
            scratch_shapes=[pltpu.VMEM((TH * W, 9 * Cin), jnp.bfloat16)],
        ),
        compiler_params=pltpu.CompilerParams(
            dimension_semantics=("parallel", "parallel"),
            vmem_limit_bytes=vmem_limit,
        ),
        cost_estimate=pl.CostEstimate(
            flops=2 * M * 9 * Cin * Cout_p,
            transcendentals=0,
            bytes_accessed=(xp_tiles.size * 2 + w.size * 2
                            + M * Cout_p * 2 + 2 * N * nT1 * Cout_p * 4),
        ),
    )(xp_tiles, w)

    # ---- tiny stats combine + BN affine fold in XLA (per-channel vectors) -----
    # TODO(synk): for extremely large M, use a Welford/Chan combine of tile stats.
    cnt = float(M)
    s = jnp.sum(psum, axis=(0, 1))
    ss = jnp.sum(psq, axis=(0, 1))
    mean = s / cnt
    var = jnp.maximum(ss / cnt - mean * mean, 0.0)     # biased var (training-mode BN)
    inv_std = jax.lax.rsqrt(var + BN_EPS)
    gamma = jnp.pad(bn_gamma.astype(jnp.float32), (0, Cout_p - Cout))
    beta = jnp.pad(bn_beta.astype(jnp.float32), (0, Cout_p - Cout))
    scale = (gamma * inv_std).reshape(1, Cout_p)
    shift = (beta - mean * gamma * inv_std).reshape(1, Cout_p)

    # ---------------- pass 2: normalize + ReLU, write NCHW directly ------------
    def _p2_bytes(tl):
        tl_pad = _round_up(tl, LANE)
        y_in = tl * Cout_p * 2
        out_blk = Cout * tl_pad * 4
        work = tl * Cout_p * 4 + Cout_p * tl_pad * 4
        return 2 * (y_in + out_blk) + work

    TL = HW
    if _p2_bytes(HW) > tile_budget:
        best = None
        d = LANE
        while d < HW:
            if HW % d == 0 and _p2_bytes(d) <= tile_budget:
                best = d
            d += LANE
        # TODO(synk): mask the last tile for HW with no 128-multiple divisor.
        TL = best if best is not None else HW
    nT2 = HW // TL

    out3 = pl.pallas_call(
        _bn_relu_kernel,
        out_shape=jax.ShapeDtypeStruct((N, Cout, HW), jnp.float32),
        grid_spec=pltpu.PrefetchScalarGridSpec(
            num_scalar_prefetch=0,
            grid=(N, nT2),
            in_specs=[
                pl.BlockSpec((1, TL, Cout_p), lambda n, j: (n, j, 0)),
                pl.BlockSpec((1, Cout_p), lambda n, j: (0, 0)),
                pl.BlockSpec((1, Cout_p), lambda n, j: (0, 0)),
            ],
            out_specs=pl.BlockSpec((1, Cout, TL), lambda n, j: (n, 0, j)),
        ),
        compiler_params=pltpu.CompilerParams(
            dimension_semantics=("parallel", "parallel"),
            vmem_limit_bytes=vmem_limit,
        ),
        cost_estimate=pl.CostEstimate(
            flops=2 * M * Cout_p,
            transcendentals=0,
            bytes_accessed=M * Cout_p * 2 + M * Cout * 4,
        ),
    )(y_tmp, scale, shift)

    # Trailing-dim split only -> layout-preserving (no extra HBM round trip).
    return out3.reshape(N, Cout, H, W)


# ---------------------------------------------------------------------------
# Pure-JAX reference of the original module (f32, bias included).
# ---------------------------------------------------------------------------
def _reference(x, w, b, gamma, beta):
    y = jax.lax.conv_general_dilated(
        x, w, window_strides=(1, 1), padding=((1, 1), (1, 1)),
        dimension_numbers=("NCHW", "OIHW", "NCHW"))
    y = y + b[None, :, None, None]
    mean = jnp.mean(y, axis=(0, 2, 3), keepdims=True)
    var = jnp.var(y, axis=(0, 2, 3), keepdims=True)          # biased
    yn = (y - mean) * jax.lax.rsqrt(var + BN_EPS)
    yn = yn * gamma[None, :, None, None] + beta[None, :, None, None]
    return jnp.maximum(yn, 0.0)


if __name__ == "__main__":
    key = jax.random.PRNGKey(0)
    k_x, k_w, k_b = jax.random.split(key, 3)

    N, Cin, Cout, H, W = 2, 4, 8, 16, 16

    x = jax.random.normal(k_x, (N, Cin, H, W), dtype=jnp.float32)

    fan_in = Cin * 3 * 3
    conv_w = jax.random.normal(k_w, (Cout, Cin, 3, 3), dtype=jnp.float32) * (1.0 / fan_in) ** 0.5
    conv_b = jax.random.normal(k_b, (Cout,), dtype=jnp.float32) * 0.01
    bn_gamma = jnp.ones((Cout,), dtype=jnp.float32)   # nn.BatchNorm2d default weight
    bn_beta = jnp.zeros((Cout,), dtype=jnp.float32)   # nn.BatchNorm2d default bias

    out = jax.jit(unet_block)(x, conv_w, conv_b, bn_gamma, bn_beta)
    jax.block_until_ready(out)

    assert out.shape == (N, Cout, H, W)

    ref = _reference(x, conv_w, conv_b, bn_gamma, bn_beta)
    max_err = float(jnp.max(jnp.abs(out - ref)))
    assert jnp.allclose(out, ref, atol=0.1, rtol=0.1), f"max abs err {max_err}"

    print("KERNEL_OK")
</pallas_src>

<mosaic_0001>
module attributes {stable_mosaic.version = 11 : i64} {
  func.func @_bn_relu_kernel(%arg0: i32, %arg1: i32, %arg2: memref<1x256x128xbf16, #tpu.memory_space<vmem>>, %arg3: memref<1x128xf32, #tpu.memory_space<vmem>>, %arg4: memref<1x128xf32, #tpu.memory_space<vmem>>, %arg5: memref<1x8x256xf32, #tpu.memory_space<vmem>>) attributes {dimension_semantics = [#tpu.dimension_semantics<parallel>, #tpu.dimension_semantics<parallel>], iteration_bounds = array<i64: 2, 1>, scalar_prefetch = 0 : i64, scratch_operands = 0 : i64, tpu.core_type = #tpu.core_type<tc>, window_params = [{transform_indices = @transform_0, window_bounds = array<i64: 1, 256, 128>}, {pipeline_mode = #tpu.pipeline_mode<synchronous>, transform_indices = @transform_1, window_bounds = array<i64: 1, 128>}, {pipeline_mode = #tpu.pipeline_mode<synchronous>, transform_indices = @transform_2, window_bounds = array<i64: 1, 128>}, {transform_indices = @transform_3, window_bounds = array<i64: 1, 8, 256>}]} {
    %c0 = arith.constant 0 : index
    %c0_0 = arith.constant 0 : index
    %c0_1 = arith.constant 0 : index
    %0 = vector.load %arg2[%c0, %c0_0, %c0_1] : memref<1x256x128xbf16, #tpu.memory_space<vmem>>, vector<1x256x128xbf16>
    %1 = vector.shape_cast %0 : vector<1x256x128xbf16> to vector<256x128xbf16>
    %2 = arith.extf %1 : vector<256x128xbf16> to vector<256x128xf32>
    %c0_2 = arith.constant 0 : index
    %c0_3 = arith.constant 0 : index
    %3 = vector.load %arg3[%c0_2, %c0_3] : memref<1x128xf32, #tpu.memory_space<vmem>>, vector<1x128xf32>
    %4 = vector.broadcast %3 : vector<1x128xf32> to vector<256x128xf32>
    %5 = arith.mulf %2, %4 : vector<256x128xf32>
    %c0_4 = arith.constant 0 : index
    %c0_5 = arith.constant 0 : index
    %6 = vector.load %arg4[%c0_4, %c0_5] : memref<1x128xf32, #tpu.memory_space<vmem>>, vector<1x128xf32>
    %7 = vector.broadcast %6 : vector<1x128xf32> to vector<256x128xf32>
    %8 = arith.addf %5, %7 : vector<256x128xf32>
    %cst = arith.constant 0.000000e+00 : f32
    %9 = vector.broadcast %cst : f32 to vector<256x128xf32>
    %10 = arith.maximumf %8, %9 : vector<256x128xf32>
    %11 = tpu.transpose %10, [1, 0] : vector<256x128xf32> -> vector<128x256xf32>
    %12 = vector.extract_strided_slice %11 {offsets = [0, 0], sizes = [8, 256], strides = [1, 1]} : vector<128x256xf32> to vector<8x256xf32>
    %c0_6 = arith.constant 0 : index
    %c0_7 = arith.constant 0 : index
    %c0_8 = arith.constant 0 : index
    %13 = vector.load %arg5[%c0_6, %c0_7, %c0_8] : memref<1x8x256xf32, #tpu.memory_space<vmem>>, vector<1x8x256xf32>
    %14 = vector.shape_cast %13 : vector<1x8x256xf32> to vector<8x256xf32>
    %15 = vector.shape_cast %12 : vector<8x256xf32> to vector<1x8x256xf32>
    tpu.vector_store %arg5[%c0_6, %c0_7, %c0_8], %15 {strides = array<i32>} : memref<1x8x256xf32, #tpu.memory_space<vmem>>, vector<1x8x256xf32>,
    return
  }
  func.func @transform_0(%arg0: i32, %arg1: i32) -> (i32, i32, i32) {
    %c0_i32 = arith.constant 0 : i32
    %c0_i32_0 = arith.constant 0 : i32
    return %arg0, %arg1, %c0_i32 : i32, i32, i32
  }
  func.func @transform_1(%arg0: i32, %arg1: i32) -> (i32, i32) {
    %c0_i32 = arith.constant 0 : i32
    %c0_i32_0 = arith.constant 0 : i32
    %c0_i32_1 = arith.constant 0 : i32
    return %c0_i32, %c0_i32_0 : i32, i32
  }
  func.func @transform_2(%arg0: i32, %arg1: i32) -> (i32, i32) {
    %c0_i32 = arith.constant 0 : i32
    %c0_i32_0 = arith.constant 0 : i32
    %c0_i32_1 = arith.constant 0 : i32
    return %c0_i32, %c0_i32_0 : i32, i32
  }
  func.func @transform_3(%arg0: i32, %arg1: i32) -> (i32, i32, i32) {
    %c0_i32 = arith.constant 0 : i32
    %c0_i32_0 = arith.constant 0 : i32
    return %arg0, %c0_i32, %arg1 : i32, i32, i32
  }
}

module attributes {stable_mosaic.version = 11 : i64} {
  func.func @_conv_stats_kernel(%arg0: i32, %arg1: i32, %arg2: memref<1x18x18x4xbf16, #tpu.memory_space<vmem>>, %arg3: memref<36x128xbf16, #tpu.memory_space<vmem>>, %arg4: memref<1x256x128xbf16, #tpu.memory_space<vmem>>, %arg5: memref<1x1x128xf32, #tpu.memory_space<vmem>>, %arg6: memref<1x1x128xf32, #tpu.memory_space<vmem>>, %arg7: memref<256x36xbf16, #tpu.memory_space<vmem>>) attributes {dimension_semantics = [#tpu.dimension_semantics<parallel>, #tpu.dimension_semantics<parallel>], iteration_bounds = array<i64: 2, 1>, scalar_prefetch = 0 : i64, scratch_operands = 1 : i64, tpu.core_type = #tpu.core_type<tc>, window_params = [{transform_indices = @transform_0, window_bounds = array<i64: 1, 18, 18, 4>}, {pipeline_mode = #tpu.pipeline_mode<synchronous>, transform_indices = @transform_1, window_bounds = array<i64: 36, 128>}, {transform_indices = @transform_2, window_bounds = array<i64: 1, 256, 128>}, {transform_indices = @transform_3, window_bounds = array<i64: 1, 1, 128>}, {transform_indices = @transform_4, window_bounds = array<i64: 1, 1, 128>}]} {
    %c0 = arith.constant 0 : index
    %c0_0 = arith.constant 0 : index
    %c0_1 = arith.constant 0 : index
    %c0_2 = arith.constant 0 : index
    %0 = vector.load %arg2[%c0, %c0_0, %c0_1, %c0_2] : memref<1x18x18x4xbf16, #tpu.memory_space<vmem>>, vector<1x16x16x4xbf16>
    %1 = vector.shape_cast %0 : vector<1x16x16x4xbf16> to vector<16x16x4xbf16>
    %2 = vector.shape_cast %1 : vector<16x16x4xbf16> to vector<256x4xbf16>
    %c0_3 = arith.constant 0 : index
    %c0_4 = arith.constant 0 : index
    %3 = vector.load %arg7[%c0_3, %c0_4] : memref<256x36xbf16, #tpu.memory_space<vmem>>, vector<256x4xbf16>
    tpu.vector_store %arg7[%c0_3, %c0_4], %2 {strides = array<i32>} : memref<256x36xbf16, #tpu.memory_space<vmem>>, vector<256x4xbf16>,
    %c0_5 = arith.constant 0 : index
    %c0_6 = arith.constant 0 : index
    %c1 = arith.constant 1 : index
    %c0_7 = arith.constant 0 : index
    %4 = vector.load %arg2[%c0_5, %c0_6, %c1, %c0_7] : memref<1x18x18x4xbf16, #tpu.memory_space<vmem>>, vector<1x16x16x4xbf16>
    %5 = vector.shape_cast %4 : vector<1x16x16x4xbf16> to vector<16x16x4xbf16>
    %6 = vector.shape_cast %5 : vector<16x16x4xbf16> to vector<256x4xbf16>
    %c0_8 = arith.constant 0 : index
    %c4 = arith.constant 4 : index
    %7 = vector.load %arg7[%c0_8, %c4] : memref<256x36xbf16, #tpu.memory_space<vmem>>, vector<256x4xbf16>
    tpu.vector_store %arg7[%c0_8, %c4], %6 {strides = array<i32>} : memref<256x36xbf16, #tpu.memory_space<vmem>>, vector<256x4xbf16>,
    %c0_9 = arith.constant 0 : index
    %c0_10 = arith.constant 0 : index
    %c2 = arith.constant 2 : index
    %c0_11 = arith.constant 0 : index
    %8 = vector.load %arg2[%c0_9, %c0_10, %c2, %c0_11] : memref<1x18x18x4xbf16, #tpu.memory_space<vmem>>, vector<1x16x16x4xbf16>
    %9 = vector.shape_cast %8 : vector<1x16x16x4xbf16> to vector<16x16x4xbf16>
    %10 = vector.shape_cast %9 : vector<16x16x4xbf16> to vector<256x4xbf16>
    %c0_12 = arith.constant 0 : index
    %c8 = arith.constant 8 : index
    %11 = vector.load %arg7[%c0_12, %c8] : memref<256x36xbf16, #tpu.memory_space<vmem>>, vector<256x4xbf16>
    tpu.vector_store %arg7[%c0_12, %c8], %10 {strides = array<i32>} : memref<256x36xbf16, #tpu.memory_space<vmem>>, vector<256x4xbf16>,
    %c0_13 = arith.constant 0 : index
    %c1_14 = arith.constant 1 : index
    %c0_15 = arith.constant 0 : index
    %c0_16 = arith.constant 0 : index
    %12 = vector.load %arg2[%c0_13, %c1_14, %c0_15, %c0_16] : memref<1x18x18x4xbf16, #tpu.memory_space<vmem>>, vector<1x16x16x4xbf16>
    %13 = vector.shape_cast %12 : vector<1x16x16x4xbf16> to vector<16x16x4xbf16>
    %14 = vector.shape_cast %13 : vector<16x16x4xbf16> to vector<256x4xbf16>
    %c0_17 = arith.constant 0 : index
    %c12 = arith.constant 12 : index
    %15 = vector.load %arg7[%c0_17, %c12] : memref<256x36xbf16, #tpu.memory_space<vmem>>, vector<256x4xbf16>
    tpu.vector_store %arg7[%c0_17, %c12], %14 {strides = array<i32>} : memref<256x36xbf16, #tpu.memory_space<vmem>>, vector<256x4xbf16>,
    %c0_18 = arith.constant 0 : index
    %c1_19 = arith.constant 1 : index
    %c1_20 = arith.constant 1 : index
    %c0_21 = arith.constant 0 : index
    %16 = vector.load %arg2[%c0_18, %c1_19, %c1_20, %c0_21] : memref<1x18x18x4xbf16, #tpu.memory_space<vmem>>, vector<1x16x16x4xbf16>
    %17 = vector.shape_cast %16 : vector<1x16x16x4xbf16> to vector<16x16x4xbf16>
    %18 = vector.shape_cast %17 : vector<16x16x4xbf16> to vector<256x4xbf16>
    %c0_22 = arith.constant 0 : index
    %c16 = arith.constant 16 : index
    %19 = vector.load %arg7[%c0_22, %c16] : memref<256x36xbf16, #tpu.memory_space<vmem>>, vector<256x4xbf16>
    tpu.vector_store %arg7[%c0_22, %c16], %18 {strides = array<i32>} : memref<256x36xbf16, #tpu.memory_space<vmem>>, vector<256x4xbf16>,
    %c0_23 = arith.constant 0 : index
    %c1_24 = arith.constant 1 : index
    %c2_25 = arith.constant 2 : index
    %c0_26 = arith.constant 0 : index
    %20 = vector.load %arg2[%c0_23, %c1_24, %c2_25, %c0_26] : memref<1x18x18x4xbf16, #tpu.memory_space<vmem>>, vector<1x16x16x4xbf16>
    %21 = vector.shape_cast %20 : vector<1x16x16x4xbf16> to vector<16x16x4xbf16>
    %22 = vector.shape_cast %21 : vector<16x16x4xbf16> to vector<256x4xbf16>
    %c0_27 = arith.constant 0 : index
    %c20 = arith.constant 20 : index
    %23 = vector.load %arg7[%c0_27, %c20] : memref<256x36xbf16, #tpu.memory_space<vmem>>, vector<256x4xbf16>
    tpu.vector_store %arg7[%c0_27, %c20], %22 {strides = array<i32>} : memref<256x36xbf16, #tpu.memory_space<vmem>>, vector<256x4xbf16>,
    %c0_28 = arith.constant 0 : index
    %c2_29 = arith.constant 2 : index
    %c0_30 = arith.constant 0 : index
    %c0_31 = arith.constant 0 : index
    %24 = vector.load %arg2[%c0_28, %c2_29, %c0_30, %c0_31] : memref<1x18x18x4xbf16, #tpu.memory_space<vmem>>, vector<1x16x16x4xbf16>
    %25 = vector.shape_cast %24 : vector<1x16x16x4xbf16> to vector<16x16x4xbf16>
    %26 = vector.shape_cast %25 : vector<16x16x4xbf16> to vector<256x4xbf16>
    %c0_32 = arith.constant 0 : index
    %c24 = arith.constant 24 : index
    %27 = vector.load %arg7[%c0_32, %c24] : memref<256x36xbf16, #tpu.memory_space<vmem>>, vector<256x4xbf16>
    tpu.vector_store %arg7[%c0_32, %c24], %26 {strides = array<i32>} : memref<256x36xbf16, #tpu.memory_space<vmem>>, vector<256x4xbf16>,
    %c0_33 = arith.constant 0 : index
    %c2_34 = arith.constant 2 : index
    %c1_35 = arith.constant 1 : index
    %c0_36 = arith.constant 0 : index
    %28 = vector.load %arg2[%c0_33, %c2_34, %c1_35, %c0_36] : memref<1x18x18x4xbf16, #tpu.memory_space<vmem>>, vector<1x16x16x4xbf16>
    %29 = vector.shape_cast %28 : vector<1x16x16x4xbf16> to vector<16x16x4xbf16>
    %30 = vector.shape_cast %29 : vector<16x16x4xbf16> to vector<256x4xbf16>
    %c0_37 = arith.constant 0 : index
    %c28 = arith.constant 28 : index
    %31 = vector.load %arg7[%c0_37, %c28] : memref<256x36xbf16, #tpu.memory_space<vmem>>, vector<256x4xbf16>
    tpu.vector_store %arg7[%c0_37, %c28], %30 {strides = array<i32>} : memref<256x36xbf16, #tpu.memory_space<vmem>>, vector<256x4xbf16>,
    %c0_38 = arith.constant 0 : index
    %c2_39 = arith.constant 2 : index
    %c2_40 = arith.constant 2 : index
    %c0_41 = arith.constant 0 : index
    %32 = vector.load %arg2[%c0_38, %c2_39, %c2_40, %c0_41] : memref<1x18x18x4xbf16, #tpu.memory_space<vmem>>, vector<1x16x16x4xbf16>
    %33 = vector.shape_cast %32 : vector<1x16x16x4xbf16> to vector<16x16x4xbf16>
    %34 = vector.shape_cast %33 : vector<16x16x4xbf16> to vector<256x4xbf16>
    %c0_42 = arith.constant 0 : index
    %c32 = arith.constant 32 : index
    %35 = vector.load %arg7[%c0_42, %c32] : memref<256x36xbf16, #tpu.memory_space<vmem>>, vector<256x4xbf16>
    tpu.vector_store %arg7[%c0_42, %c32], %34 {strides = array<i32>} : memref<256x36xbf16, #tpu.memory_space<vmem>>, vector<256x4xbf16>,
    %c0_43 = arith.constant 0 : index
    %c0_44 = arith.constant 0 : index
    %36 = vector.load %arg7[%c0_43, %c0_44] : memref<256x36xbf16, #tpu.memory_space<vmem>>, vector<256x36xbf16>
    %c0_45 = arith.constant 0 : index
    %c0_46 = arith.constant 0 : index
    %37 = vector.load %arg3[%c0_45, %c0_46] : memref<36x128xbf16, #tpu.memory_space<vmem>>, vector<36x128xbf16>
    %cst = arith.constant dense<0.000000e+00> : vector<256x128xf32>
    %38 = tpu.matmul %36, %37, %cst {dimension_numbers = #tpu.dot_dimension_numbers<[1], [0], [0], [1], [0, 0, 1, 1], [], []>} : vector<256x36xbf16>, vector<36x128xbf16>, vector<256x128xf32> -> vector<256x128xf32>
    %39 = arith.truncf %38 : vector<256x128xf32> to vector<256x128xbf16>
    %c0_47 = arith.constant 0 : index
    %c0_48 = arith.constant 0 : index
    %c0_49 = arith.constant 0 : index
    %40 = vector.load %arg4[%c0_47, %c0_48, %c0_49] : memref<1x256x128xbf16, #tpu.memory_space<vmem>>, vector<1x256x128xbf16>
    %41 = vector.shape_cast %40 : vector<1x256x128xbf16> to vector<256x128xbf16>
    %42 = vector.shape_cast %39 : vector<256x128xbf16> to vector<1x256x128xbf16>
    tpu.vector_store %arg4[%c0_47, %c0_48, %c0_49], %42 {strides = array<i32>} : memref<1x256x128xbf16, #tpu.memory_space<vmem>>, vector<1x256x128xbf16>,
    %cst_50 = arith.constant dense<0.000000e+00> : vector<128xf32>
    %43 = vector.multi_reduction <add>, %38, %cst_50 [0] : vector<256x128xf32> to vector<128xf32>
    %44 = vector.shape_cast %43 : vector<128xf32> to vector<1x128xf32>
    %45 = vector.shape_cast %44 : vector<1x128xf32> to vector<1x1x128xf32>
    %c0_51 = arith.constant 0 : index
    %c0_52 = arith.constant 0 : index
    %c0_53 = arith.constant 0 : index
    %46 = vector.load %arg5[%c0_51, %c0_52, %c0_53] : memref<1x1x128xf32, #tpu.memory_space<vmem>>, vector<1x1x128xf32>
    tpu.vector_store %arg5[%c0_51, %c0_52, %c0_53], %45 {strides = array<i32>} : memref<1x1x128xf32, #tpu.memory_space<vmem>>, vector<1x1x128xf32>,
    %47 = arith.mulf %38, %38 : vector<256x128xf32>
    %cst_54 = arith.constant dense<0.000000e+00> : vector<128xf32>
    %48 = vector.multi_reduction <add>, %47, %cst_54 [0] : vector<256x128xf32> to vector<128xf32>
    %49 = vector.shape_cast %48 : vector<128xf32> to vector<1x128xf32>
    %50 = vector.shape_cast %49 : vector<1x128xf32> to vector<1x1x128xf32>
    %c0_55 = arith.constant 0 : index
    %c0_56 = arith.constant 0 : index
    %c0_57 = arith.constant 0 : index
    %51 = vector.load %arg6[%c0_55, %c0_56, %c0_57] : memref<1x1x128xf32, #tpu.memory_space<vmem>>, vector<1x1x128xf32>
    tpu.vector_store %arg6[%c0_55, %c0_56, %c0_57], %50 {strides = array<i32>} : memref<1x1x128xf32, #tpu.memory_space<vmem>>, vector<1x1x128xf32>,
    return
  }
  func.func @transform_0(%arg0: i32, %arg1: i32) -> (i32, i32, i32, i32) {
    %c1_i32 = arith.constant 1 : i32
    %0 = arith.muli %arg0, %c1_i32 : i32
    %1 = arith.addi %0, %arg1 : i32
    %c0_i32 = arith.constant 0 : i32
    %c0_i32_0 = arith.constant 0 : i32
    %c0_i32_1 = arith.constant 0 : i32
    %c0_i32_2 = arith.constant 0 : i32
    return %1, %c0_i32, %c0_i32_0, %c0_i32_1 : i32, i32, i32, i32
  }
  func.func @transform_1(%arg0: i32, %arg1: i32) -> (i32, i32) {
    %c0_i32 = arith.constant 0 : i32
    %c0_i32_0 = arith.constant 0 : i32
    %c0_i32_1 = arith.constant 0 : i32
    return %c0_i32, %c0_i32_0 : i32, i32
  }
  func.func @transform_2(%arg0: i32, %arg1: i32) -> (i32, i32, i32) {
    %c0_i32 = arith.constant 0 : i32
    %c0_i32_0 = arith.constant 0 : i32
    return %arg0, %arg1, %c0_i32 : i32, i32, i32
  }
  func.func @transform_3(%arg0: i32, %arg1: i32) -> (i32, i32, i32) {
    %c1_i32 = arith.constant 1 : i32
    %0 = arith.muli %arg0, %c1_i32 : i32
    %1 = arith.addi %0, %arg1 : i32
    %c0_i32 = arith.constant 0 : i32
    %c0_i32_0 = arith.constant 0 : i32
    %c0_i32_1 = arith.constant 0 : i32
    return %1, %c0_i32, %c0_i32_0 : i32, i32, i32
  }
  func.func @transform_4(%arg0: i32, %arg1: i32) -> (i32, i32, i32) {
    %c1_i32 = arith.constant 1 : i32
    %0 = arith.muli %arg0, %c1_i32 : i32
    %1 = arith.addi %0, %arg1 : i32
    %c0_i32 = arith.constant 0 : i32
    %c0_i32_0 = arith.constant 0 : i32
    %c0_i32_1 = arith.constant 0 : i32
    return %1, %c0_i32, %c0_i32_0 : i32, i32, i32
  }
}

</mosaic_0001>

<llo_original>
// kernel: unet_block.3
$region0: #{unet_block.3}
  #allocation0 [shape = 'u32[]', space=smem, size = 0x4, offset = 0x4, fixed_abs, tag = 'smem constant byte address 0x4 - core index']
  #allocation1 [shape = 'u32[72,128]{1,0:T(1,128)}', space=vmem, size = 0x9000, scoped, tag = 'internal scratch']
  %s0 = inlined_call_operand.vmem [shape: bf16[2,256,128], index: 0, kind: input, shape index: {}]
  %s1 = inlined_call_operand.vmem [shape: f32[1,128], index: 1, kind: input, shape index: {}]
  %s2 = inlined_call_operand.vmem [shape: f32[1,128], index: 2, kind: input, shape index: {}]
  %s3 = inlined_call_operand.vmem [shape: f32[2,8,256], index: 3, kind: output, shape index: {}]
  %s4 = sld [smem:[#allocation0]]
  $region45: #{unet_block.3} parent=0
    _
  %s6 = ssub.s32 1, %s4
  %s7 = scalar_select 0, %s6, %s4
  loop: start=0, step=1, limit=4
  $region2: #{unet_block.3} parent=0 // loop_pre_header
    _
  $region3: #{unet_block.3} parent=0 // loop_header
    %s9 = sphi 0, %s13
    %p10 = scmp.ge.s32.totalorder %s9, 4
    %s16 = sphi 0, %s28
    %s17 = sphi 0, %s24
    %s18 = sphi 0, %s16
    %s19 = sphi 0, %s17
    %s20 = sphi 0, %s18
    %s21 = sphi 0, %s19
    %s33 = sphi 0, %s35
    %s36 = sphi 0, %s33
    %s37 = sphi 0, %s36
    %s53 = sphi 0, %s37
    %s57 = sphi 0, %s57
    %s59 = sphi 0, %s57
    %s60 = sphi 0, %s59
    %s74 = sphi 0, %s60
    %s78 = sphi 0, %s78
    %s80 = sphi 0, %s78
    %s81 = sphi 0, %s80
    %s95 = sphi 0, %s81
    %s103 = sphi 0, %s105
    %s106 = sphi 0, %s103
    %s107 = sphi 0, %s106
    %s123 = sphi 0, %s107
  $region4: #{unet_block.3} parent=0 // loop_header_branch
    %12 = sbr.rel (%p10) target = $region8
  $region5: #{unet_block.3} parent=0 // loop_body
    %s14 = ssub.s32 %s9, 1
    %s15 = ssub.s32 %s9, 2
    %s22 = sadd.s32 1, %s17
    %p23 = scmp.ge.s32.totalorder %s22, 1
    %s24 = scalar_select %p23, 0, %s22
    %s25 = sadd.s32 1, %s16
    %s26 = scalar_select %p23, %s25, %s16
    %p27 = scmp.ge.s32.totalorder %s26, 2
    %s28 = scalar_select %p27, 0, %s26
    %s29 = ssub.s32 %s16, %s28
    %s30 = ssub.s32 %s17, %s24
    %s31 = sor.u32 %s29, %s30
    %p32 = scmp.eq.s32.totalorder %s31, 0
    %s34 = sadd.s32 %s33, 1
    %s35 = scalar_select %p32, %s33, %s34
    %p38 = pneg %p32
    %p39 = scmp.eq.s32.totalorder %s9, 1
    %p40 = por %p38, %p39
    %p41 = scmp.ne.s32.totalorder %s33, %s36
    %p42 = scmp.eq.s32.totalorder %s9, 0
    %p43 = por %p41, %p42
    %p44 = scmp.ne.s32.totalorder %s33, %s36
    %p45 = scmp.eq.s32.totalorder %s14, 1
    %p46 = por %p44, %p45
    %p47 = scmp.ne.s32.totalorder %s36, %s37
    %p48 = scmp.eq.s32.totalorder %s14, 0
    %p49 = por %p47, %p48
    %p50 = scmp.ne.s32.totalorder %s36, %s37
    %p51 = scmp.eq.s32.totalorder %s15, 1
    %p52 = por %p50, %p51
    %p54 = scmp.ne.s32.totalorder %s37, %s53
    %p55 = scmp.eq.s32.totalorder %s15, 0
    %p56 = por %p54, %p55
    %s58 = sadd.s32 %s57, 1
    %p61 = scmp.eq.s32.totalorder %s9, 1
    %p62 = scmp.ne.s32.totalorder %s57, %s59
    %p63 = scmp.eq.s32.totalorder %s9, 0
    %p64 = por %p62, %p63
    %p65 = scmp.ne.s32.totalorder %s57, %s59
    %p66 = scmp.eq.s32.totalorder %s14, 1
    %p67 = por %p65, %p66
    %p68 = scmp.ne.s32.totalorder %s59, %s60
    %p69 = scmp.eq.s32.totalorder %s14, 0
    %p70 = por %p68, %p69
    %p71 = scmp.ne.s32.totalorder %s59, %s60
    %p72 = scmp.eq.s32.totalorder %s15, 1
    %p73 = por %p71, %p72
    %p75 = scmp.ne.s32.totalorder %s60, %s74
    %p76 = scmp.eq.s32.totalorder %s15, 0
    %p77 = por %p75, %p76
    %s79 = sadd.s32 %s78, 1
    %p82 = scmp.eq.s32.totalorder %s9, 1
    %p83 = scmp.ne.s32.totalorder %s78, %s80
    %p84 = scmp.eq.s32.totalorder %s9, 0
    %p85 = por %p83, %p84
    %p86 = scmp.ne.s32.totalorder %s78, %s80
    %p87 = scmp.eq.s32.totalorder %s14, 1
    %p88 = por %p86, %p87
    %p89 = scmp.ne.s32.totalorder %s80, %s81
    %p90 = scmp.eq.s32.totalorder %s14, 0
    %p91 = por %p89, %p90
    %p92 = scmp.ne.s32.totalorder %s80, %s81
    %p93 = scmp.eq.s32.totalorder %s15, 1
    %p94 = por %p92, %p93
    %p96 = scmp.ne.s32.totalorder %s81, %s95
    %p97 = scmp.eq.s32.totalorder %s15, 0
    %p98 = por %p96, %p97
    %s99 = ssub.s32 %s16, %s28
    %s100 = ssub.s32 %s17, %s24
    %s101 = sor.u32 %s99, %s100
    %p102 = scmp.eq.s32.totalorder %s101, 0
    %s104 = sadd.s32 %s103, 1
    %s105 = scalar_select %p102, %s103, %s104
    %p108 = pneg %p102
    %p109 = scmp.eq.s32.totalorder %s9, 1
    %p110 = por %p108, %p109
    %p111 = scmp.ne.s32.totalorder %s103, %s106
    %p112 = scmp.eq.s32.totalorder %s9, 0
    %p113 = por %p111, %p112
    %p114 = scmp.ne.s32.totalorder %s103, %s106
    %p115 = scmp.eq.s32.totalorder %s14, 1
    %p116 = por %p114, %p115
    %p117 = scmp.ne.s32.totalorder %s106, %s107
    %p118 = scmp.eq.s32.totalorder %s14, 0
    %p119 = por %p117, %p118
    %p120 = scmp.ne.s32.totalorder %s106, %s107
    %p121 = scmp.eq.s32.totalorder %s15, 1
    %p122 = por %p120, %p121
    %p124 = scmp.ne.s32.totalorder %s107, %s123
    %p125 = scmp.eq.s32.totalorder %s15, 0
    %p126 = por %p124, %p125
    %p127 = scmp.le.s32.totalorder 1, %s9
    %p128 = scmp.lt.s32.totalorder %s9, 3
    %p129 = pnand %p127, %p128
    %p130 = pneg %p129
    // Predicated region
    $region9: #{unet_block.3} parent=5 // pred_check
      _
    $region10: #{unet_block.3} parent=5 // pred_check_branch
      %132 = sbr.rel (%p129) target = $region12
    $region11: #{unet_block.3} parent=5 // pred_region
      %s133 = ssub.s32 %s9, 1
      // Predicated region
      $region13: #{unet_block.3} parent=11 // pred_check
        %p134 = pneg %p70
      $region14: #{unet_block.3} parent=11 // pred_check_branch
        %136 = sbr.rel (%p134) target = $region16
      $region15: #{unet_block.3} parent=11 // pred_region
        _
      $region16: #{unet_block.3} parent=11 // pred_fallthru
        _
      // Predicated region
      $region17: #{unet_block.3} parent=11 // pred_check
        %p137 = pneg %p91
      $region18: #{unet_block.3} parent=11 // pred_check_branch
        %139 = sbr.rel (%p137) target = $region20
      $region19: #{unet_block.3} parent=11 // pred_region
        _
      $region20: #{unet_block.3} parent=11 // pred_fallthru
        _
    $region12: #{unet_block.3} parent=5 // pred_fallthru
      _
    %p140 = scmp.lt.s32.totalorder %s9, 2
    // Predicated region
    $region21: #{unet_block.3} parent=5 // pred_check
      %p141 = pneg %p140
    $region22: #{unet_block.3} parent=5 // pred_check_branch
      %143 = sbr.rel (%p141) target = $region24
    $region23: #{unet_block.3} parent=5 // pred_region
      // Predicated region
      $region25: #{unet_block.3} parent=23 // pred_check
        %p144 = pneg %p43
      $region26: #{unet_block.3} parent=23 // pred_check_branch
        %146 = sbr.rel (%p144) target = $region28
      $region27: #{unet_block.3} parent=23 // pred_region
        %s147 = smul.u32 32, %s17
        %p148 = scmp.lt.s32.totalorder %s16, 1
        %s149 = scalar_select %p148, %s16, 1
        %p150 = scmp.lt.s32.totalorder %s147, 31
        %s151 = scalar_select %p150, %s147, 31
        %s152 = smul.addr %s149, 32
        %s153 = sadd.s32 %s151, %s152
        %s154 = smul.addr %s153, 4
        %s155 = scalar_lea.vmem %s0, %s154
        %s156 = smul.u32 32, %s17
      $region28: #{unet_block.3} parent=23 // pred_fallthru
        _
    $region24: #{unet_block.3} parent=5 // pred_fallthru
      _
    %p157 = scmp.le.s32.totalorder 1, %s9
    %p158 = scmp.lt.s32.totalorder %s9, 3
    %p159 = pnand %p157, %p158
    %p160 = pneg %p159
    // Predicated region
    $region29: #{unet_block.3} parent=5 // pred_check
      _
    $region30: #{unet_block.3} parent=5 // pred_check_branch
      %162 = sbr.rel (%p159) target = $region32
    $region31: #{unet_block.3} parent=5 // pred_region
      %s163 = ssub.s32 %s9, 1
      %s164 = smul.u32 32, %s19
      %p165 = scmp.lt.s32.totalorder %s18, 1
      %s166 = scalar_select %p165, %s18, 1
      %p167 = scmp.lt.s32.totalorder %s164, 31
      %s168 = scalar_select %p167, %s164, 31
      %s169 = smul.addr %s166, 32
      %s170 = sadd.s32 %s168, %s169
      %s171 = smul.addr %s170, 4
      %s172 = scalar_lea.vmem %s0, %s171
      %p173 = pneg %p49
      %p174 = pneg %p46
      %p175 = pneg %p70
      %p176 = pneg %p67
      %p177 = pneg %p91
      %p178 = pneg %p88
      %p179 = pneg %p119
      %p180 = pneg %p116
      %s181 = smul.u32 2, %s19
      %p182 = scmp.lt.s32.totalorder %s18, 1
      %s183 = scalar_select %p182, %s18, 1
      %p184 = scmp.lt.s32.totalorder %s181, 1
      %s185 = scalar_select %p184, %s181, 1
      %s186 = smul.addr %s183, 2
      %s187 = sadd.s32 %s185, %s186
      %s188 = smul.addr %s187, 8
      %s189 = scalar_lea.vmem %s3, %s188
      %s190 = smul.u32 32, %s19
      %p191 = scmp.lt.s32.totalorder %s18, 1
      %s192 = scalar_select %p191, %s18, 1
      %p193 = scmp.lt.s32.totalorder %s190, 31
      %s194 = scalar_select %p193, %s190, 31
      %s195 = smul.addr %s192, 32
      %s196 = sadd.s32 %s194, %s195
      %s197 = smul.addr %s196, 4
      %s198 = scalar_lea.vmem %s0, %s197
      %s199 = smul.u32 32, %s19
      %s200 = smul.u32 2, %s19
      %p201 = scmp.lt.s32.totalorder %s18, 1
      %s202 = scalar_select %p201, %s18, 1
      %p203 = scmp.lt.s32.totalorder %s200, 1
      %s204 = scalar_select %p203, %s200, 1
      %s205 = smul.addr %s202, 2
      %s206 = sadd.s32 %s204, %s205
      %s207 = smul.addr %s206, 8
      %s208 = scalar_lea.vmem %s3, %s207
      %s209 = smul.u32 2, %s19
      %v210 = vld [vmem:[%s198] sm:$0xf]
      %v211 = vld [vmem:[%s198 + $0x4] sm:$0xf]
      %v212 = vld [vmem:[%s198 + $0x8] sm:$0xf]
      %v213 = vld [vmem:[%s198 + $0xc] sm:$0xf]
      %v214 = vld [vmem:[%s198 + $0x10] sm:$0xf]
      %v215 = vld [vmem:[%s198 + $0x14] sm:$0xf]
      %v216 = vld [vmem:[%s198 + $0x18] sm:$0xf]
      %v217 = vld [vmem:[%s198 + $0x1c] sm:$0xf]
      %v218 = vld [vmem:[%s198 + $0x20] sm:$0xf]
      %v219 = vld [vmem:[%s198 + $0x24] sm:$0xf]
      %v220 = vld [vmem:[%s198 + $0x28] sm:$0xf]
      %v221 = vld [vmem:[%s198 + $0x2c] sm:$0xf]
      %v222 = vld [vmem:[%s198 + $0x30] sm:$0xf]
      %v223 = vld [vmem:[%s198 + $0x34] sm:$0xf]
      %v224 = vld [vmem:[%s198 + $0x38] sm:$0xf]
      %v225 = vld [vmem:[%s198 + $0x3c] sm:$0xf]
      %v226 = vld [vmem:[%s198 + $0x40] sm:$0xf]
      %v227 = vld [vmem:[%s198 + $0x44] sm:$0xf]
      %v228 = vld [vmem:[%s198 + $0x48] sm:$0xf]
      %v229 = vld [vmem:[%s198 + $0x4c] sm:$0xf]
      %v230 = vld [vmem:[%s198 + $0x50] sm:$0xf]
      %v231 = vld [vmem:[%s198 + $0x54] sm:$0xf]
      %v232 = vld [vmem:[%s198 + $0x58] sm:$0xf]
      %v233 = vld [vmem:[%s198 + $0x5c] sm:$0xf]
      %v234 = vld [vmem:[%s198 + $0x60] sm:$0xf]
      %v235 = vld [vmem:[%s198 + $0x64] sm:$0xf]
      %v236 = vld [vmem:[%s198 + $0x68] sm:$0xf]
      %v237 = vld [vmem:[%s198 + $0x6c] sm:$0xf]
      %v238 = vld [vmem:[%s198 + $0x70] sm:$0xf]
      %v239 = vld [vmem:[%s198 + $0x74] sm:$0xf]
      %v240 = vld [vmem:[%s198 + $0x78] sm:$0xf]
      %v241 = vld [vmem:[%s198 + $0x7c] sm:$0xf]
      %v242 = vunpack.c.l.bf16 %v210
      %v243 = vunpack.c.l.bf16 %v211
      %v244 = vunpack.c.l.bf16 %v212
      %v245 = vunpack.c.l.bf16 %v213
      %v246 = vunpack.c.l.bf16 %v214
      %v247 = vunpack.c.l.bf16 %v215
      %v248 = vunpack.c.l.bf16 %v216
      %v249 = vunpack.c.l.bf16 %v217
      %v250 = vunpack.c.l.bf16 %v218
      %v251 = vunpack.c.l.bf16 %v219
      %v252 = vunpack.c.l.bf16 %v220
      %v253 = vunpack.c.l.bf16 %v221
      %v254 = vunpack.c.l.bf16 %v222
      %v255 = vunpack.c.l.bf16 %v223
      %v256 = vunpack.c.l.bf16 %v224
      %v257 = vunpack.c.l.bf16 %v225
      %v258 = vunpack.c.l.bf16 %v226
      %v259 = vunpack.c.l.bf16 %v227
      %v260 = vunpack.c.l.bf16 %v228
      %v261 = vunpack.c.l.bf16 %v229
      %v262 = vunpack.c.l.bf16 %v230
      %v263 = vunpack.c.l.bf16 %v231
      %v264 = vunpack.c.l.bf16 %v232
      %v265 = vunpack.c.l.bf16 %v233
      %v266 = vunpack.c.l.bf16 %v234
      %v267 = vunpack.c.l.bf16 %v235
      %v268 = vunpack.c.l.bf16 %v236
      %v269 = vunpack.c.l.bf16 %v237
      %v270 = vunpack.c.l.bf16 %v238
      %v271 = vunpack.c.l.bf16 %v239
      %v272 = vunpack.c.l.bf16 %v240
      %v273 = vunpack.c.l.bf16 %v241
      %v274 = vld [vmem:[%s1] sm:$0x1]
      %v276 = vperm.slane %v274, 0
      %v278 = vmul.f32 %v242, %v276
      %v279 = vmul.f32 %v243, %v276
      %v280 = vmul.f32 %v244, %v276
      %v281 = vmul.f32 %v245, %v276
      %v282 = vmul.f32 %v246, %v276
      %v283 = vmul.f32 %v247, %v276
      %v284 = vmul.f32 %v248, %v276
      %v285 = vmul.f32 %v249, %v276
      %v286 = vmul.f32 %v250, %v276
      %v287 = vmul.f32 %v251, %v276
      %v288 = vmul.f32 %v252, %v276
      %v289 = vmul.f32 %v253, %v276
      %v290 = vmul.f32 %v254, %v276
      %v291 = vmul.f32 %v255, %v276
      %v292 = vmul.f32 %v256, %v276
      %v293 = vmul.f32 %v257, %v276
      %v294 = vmul.f32 %v258, %v276
      %v295 = vmul.f32 %v259, %v276
      %v296 = vmul.f32 %v260, %v276
      %v297 = vmul.f32 %v261, %v276
      %v298 = vmul.f32 %v262, %v276
      %v299 = vmul.f32 %v263, %v276
      %v300 = vmul.f32 %v264, %v276
      %v301 = vmul.f32 %v265, %v276
      %v302 = vmul.f32 %v266, %v276
      %v303 = vmul.f32 %v267, %v276
      %v304 = vmul.f32 %v268, %v276
      %v305 = vmul.f32 %v269, %v276
      %v306 = vmul.f32 %v270, %v276
      %v307 = vmul.f32 %v271, %v276
      %v308 = vmul.f32 %v272, %v276
      %v309 = vmul.f32 %v273, %v276
      %v310 = vld [vmem:[%s2] sm:$0x1]
      %v312 = vperm.slane %v310, 0
      %v314 = vadd.f32 %v278, %v312
      %v315 = vadd.f32 %v279, %v312
      %v316 = vadd.f32 %v280, %v312
      %v317 = vadd.f32 %v281, %v312
      %v318 = vadd.f32 %v282, %v312
      %v319 = vadd.f32 %v283, %v312
      %v320 = vadd.f32 %v284, %v312
      %v321 = vadd.f32 %v285, %v312
      %v322 = vadd.f32 %v286, %v312
      %v323 = vadd.f32 %v287, %v312
      %v324 = vadd.f32 %v288, %v312
      %v325 = vadd.f32 %v289, %v312
      %v326 = vadd.f32 %v290, %v312
      %v327 = vadd.f32 %v291, %v312
      %v328 = vadd.f32 %v292, %v312
      %v329 = vadd.f32 %v293, %v312
      %v330 = vadd.f32 %v294, %v312
      %v331 = vadd.f32 %v295, %v312
      %v332 = vadd.f32 %v296, %v312
      %v333 = vadd.f32 %v297, %v312
      %v334 = vadd.f32 %v298, %v312
      %v335 = vadd.f32 %v299, %v312
      %v336 = vadd.f32 %v300, %v312
      %v337 = vadd.f32 %v301, %v312
      %v338 = vadd.f32 %v302, %v312
      %v339 = vadd.f32 %v303, %v312
      %v340 = vadd.f32 %v304, %v312
      %v341 = vadd.f32 %v305, %v312
      %v342 = vadd.f32 %v306, %v312
      %v343 = vadd.f32 %v307, %v312
      %v344 = vadd.f32 %v308, %v312
      %v345 = vadd.f32 %v309, %v312
      %v346 = vmax.f32 %v314, 0.0
      %v347 = vmax.f32 %v315, 0.0
      %v348 = vmax.f32 %v316, 0.0
      %v349 = vmax.f32 %v317, 0.0
      %v350 = vmax.f32 %v318, 0.0
      %v351 = vmax.f32 %v319, 0.0
      %v352 = vmax.f32 %v320, 0.0
      %v353 = vmax.f32 %v321, 0.0
      %v354 = vmax.f32 %v322, 0.0
      %v355 = vmax.f32 %v323, 0.0
      %v356 = vmax.f32 %v324, 0.0
      %v357 = vmax.f32 %v325, 0.0
      %v358 = vmax.f32 %v326, 0.0
      %v359 = vmax.f32 %v327, 0.0
      %v360 = vmax.f32 %v328, 0.0
      %v361 = vmax.f32 %v329, 0.0
      %v362 = vmax.f32 %v330, 0.0
      %v363 = vmax.f32 %v331, 0.0
      %v364 = vmax.f32 %v332, 0.0
      %v365 = vmax.f32 %v333, 0.0
      %v366 = vmax.f32 %v334, 0.0
      %v367 = vmax.f32 %v335, 0.0
      %v368 = vmax.f32 %v336, 0.0
      %v369 = vmax.f32 %v337, 0.0
      %v370 = vmax.f32 %v338, 0.0
      %v371 = vmax.f32 %v339, 0.0
      %v372 = vmax.f32 %v340, 0.0
      %v373 = vmax.f32 %v341, 0.0
      %v374 = vmax.f32 %v342, 0.0
      %v375 = vmax.f32 %v343, 0.0
      %v376 = vmax.f32 %v344, 0.0
      %v377 = vmax.f32 %v345, 0.0
      %378 = vxpose.xlu0.b32.start [1/16] %v346, 128
      %379 = vxpose.xlu0.b32.cont [2/16] %v347, 128
      %380 = vxpose.xlu0.b32.cont [3/16] %v348, 128
      %381 = vxpose.xlu0.b32.cont [4/16] %v349, 128
      %382 = vxpose.xlu0.b32.cont [5/16] %v350, 128
      %383 = vxpose.xlu0.b32.cont [6/16] %v351, 128
      %384 = vxpose.xlu0.b32.cont [7/16] %v352, 128
      %385 = vxpose.xlu0.b32.cont [8/16] %v353, 128
      %386 = vxpose.xlu0.b32.cont [9/16] %v354, 128
      %387 = vxpose.xlu0.b32.cont [10/16] %v355, 128
      %388 = vxpose.xlu0.b32.cont [11/16] %v356, 128
      %389 = vxpose.xlu0.b32.cont [12/16] %v357, 128
      %390 = vxpose.xlu0.b32.cont [13/16] %v358, 128
      %391 = vxpose.xlu0.b32.cont [14/16] %v359, 128
      %392 = vxpose.xlu0.b32.cont [15/16] %v360, 128
      %393 = vxpose.xlu0.b32.end [16/16] %v361, 128
      %v394 = vpop.trf.xlu0
      %v395 = vpop.trf.xlu0
      %v396 = vpop.trf.xlu0
      %v397 = vpop.trf.xlu0
      %v398 = vpop.trf.xlu0
      %v399 = vpop.trf.xlu0
      %v400 = vpop.trf.xlu0
      %v401 = vpop.trf.xlu0
      %v402 = vpop.trf.xlu0
      %v403 = vpop.trf.xlu0
      %v404 = vpop.trf.xlu0
      %v405 = vpop.trf.xlu0
      %v406 = vpop.trf.xlu0
      %v407 = vpop.trf.xlu0
      %v408 = vpop.trf.xlu0
      %v409 = vpop.trf.xlu0
      %410 = vxpose.xlu0.b32.start [1/16] %v362, 128
      %411 = vxpose.xlu0.b32.cont [2/16] %v363, 128
      %412 = vxpose.xlu0.b32.cont [3/16] %v364, 128
      %413 = vxpose.xlu0.b32.cont [4/16] %v365, 128
      %414 = vxpose.xlu0.b32.cont [5/16] %v366, 128
      %415 = vxpose.xlu0.b32.cont [6/16] %v367, 128
      %416 = vxpose.xlu0.b32.cont [7/16] %v368, 128
      %417 = vxpose.xlu0.b32.cont [8/16] %v369, 128
      %418 = vxpose.xlu0.b32.cont [9/16] %v370, 128
      %419 = vxpose.xlu0.b32.cont [10/16] %v371, 128
      %420 = vxpose.xlu0.b32.cont [11/16] %v372, 128
      %421 = vxpose.xlu0.b32.cont [12/16] %v373, 128
      %422 = vxpose.xlu0.b32.cont [13/16] %v374, 128
      %423 = vxpose.xlu0.b32.cont [14/16] %v375, 128
      %424 = vxpose.xlu0.b32.cont [15/16] %v376, 128
      %425 = vxpose.xlu0.b32.end [16/16] %v377, 128
      %v426 = vpop.trf.xlu0
      %v427 = vpop.trf.xlu0
      %v428 = vpop.trf.xlu0
      %v429 = vpop.trf.xlu0
      %v430 = vpop.trf.xlu0
      %v431 = vpop.trf.xlu0
      %v432 = vpop.trf.xlu0
      %v433 = vpop.trf.xlu0
      %v434 = vpop.trf.xlu0
      %v435 = vpop.trf.xlu0
      %v436 = vpop.trf.xlu0
      %v437 = vpop.trf.xlu0
      %v438 = vpop.trf.xlu0
      %v439 = vpop.trf.xlu0
      %v440 = vpop.trf.xlu0
      %v441 = vpop.trf.xlu0
      %442 = vst [vmem:[%s208] sm:$0xff] %v394
      %443 = vst [vmem:[%s208 + $0x8] sm:$0xff] %v426
      %s444 = smul.u32 2, %s19
      %p445 = scmp.lt.s32.totalorder %s18, 1
      %s446 = scalar_select %p445, %s18, 1
      %p447 = scmp.lt.s32.totalorder %s444, 1
      %s448 = scalar_select %p447, %s444, 1
      %s449 = smul.addr %s446, 2
      %s450 = sadd.s32 %s448, %s449
      %s451 = smul.addr %s450, 8
      %s452 = scalar_lea.vmem %s3, %s451
      // Predicated region
      $region33: #{unet_block.3} parent=31 // pred_check
        %p453 = pneg %p116
      $region34: #{unet_block.3} parent=31 // pred_check_branch
        %455 = sbr.rel (%p453) target = $region36
      $region35: #{unet_block.3} parent=31 // pred_region
        %s456 = smul.u32 2, %s19
      $region36: #{unet_block.3} parent=31 // pred_fallthru
        _
    $region32: #{unet_block.3} parent=5 // pred_fallthru
      _
    %p457 = scmp.le.s32.totalorder 2, %s9
    // Predicated region
    $region37: #{unet_block.3} parent=5 // pred_check
      %p458 = pneg %p457
    $region38: #{unet_block.3} parent=5 // pred_check_branch
      %460 = sbr.rel (%p458) target = $region40
    $region39: #{unet_block.3} parent=5 // pred_region
      %s461 = ssub.s32 %s9, 2
      // Predicated region
      $region41: #{unet_block.3} parent=39 // pred_check
        %p462 = pneg %p122
      $region42: #{unet_block.3} parent=39 // pred_check_branch
        %464 = sbr.rel (%p462) target = $region44
      $region43: #{unet_block.3} parent=39 // pred_region
        %s465 = smul.u32 2, %s21
        %p466 = scmp.lt.s32.totalorder %s20, 1
        %s467 = scalar_select %p466, %s20, 1
        %p468 = scmp.lt.s32.totalorder %s465, 1
        %s469 = scalar_select %p468, %s465, 1
        %s470 = smul.addr %s467, 2
        %s471 = sadd.s32 %s469, %s470
        %s472 = smul.addr %s471, 8
        %s473 = scalar_lea.vmem %s3, %s472
      $region44: #{unet_block.3} parent=39 // pred_fallthru
        _
    $region40: #{unet_block.3} parent=5 // pred_fallthru
      _
  $region6: #{unet_block.3} parent=0 // loop_footer
    %s13 = sadd.s32 1, %s9
  $region7: #{unet_block.3} parent=0 // loop_footer_branch
    %8 = sbr.rel target = $region3
  $region8: #{unet_block.3} parent=0 // loop_exit
    _

// kernel: unet_block.2
$region0: #{unet_block.2}
  #allocation0 [shape = 'u32[]', space=smem, size = 0x4, offset = 0x4, fixed_abs, tag = 'smem constant byte address 0x4 - core index']
  #allocation1 [shape = 'u32[72,128]{1,0:T(1,128)}', space=vmem, size = 0x9000, scoped, tag = 'internal scratch']
  #allocation2 [shape = 'bf16[256,36]{1,0:T(8,128)(2,1)}', space=vmem, size = 0x10000, scoped, tag = 'scratch operand']
  %s0 = inlined_call_operand.vmem [shape: bf16[2,18,18,4], index: 0, kind: input, shape index: {}]
  %s1 = inlined_call_operand.vmem [shape: bf16[36,128], index: 1, kind: input, shape index: {}]
  %s2 = inlined_call_operand.vmem [shape: bf16[2,256,128], index: 2, kind: output, shape index: {0}]
  %s3 = inlined_call_operand.vmem [shape: f32[2,1,128], index: 3, kind: output, shape index: {1}]
  %s4 = inlined_call_operand.vmem [shape: f32[2,1,128], index: 4, kind: output, shape index: {2}]
  %5 = xla_tuple %s2, %s3, %s4
  %s6 = sld [smem:[#allocation0]]
  $region57: #{unet_block.2} parent=0
    _
  %s8 = ssub.s32 1, %s6
  %s9 = scalar_select 0, %s8, %s6
  loop: start=0, step=1, limit=4
  $region2: #{unet_block.2} parent=0 // loop_pre_header
    _
  $region3: #{unet_block.2} parent=0 // loop_header
    %s11 = sphi 0, %s15
    %p12 = scmp.ge.s32.totalorder %s11, 4
    %s18 = sphi 0, %s30
    %s19 = sphi 0, %s26
    %s20 = sphi 0, %s18
    %s21 = sphi 0, %s19
    %s22 = sphi 0, %s20
    %s23 = sphi 0, %s21
    %s35 = sphi 0, %s37
    %s38 = sphi 0, %s35
    %s39 = sphi 0, %s38
    %s55 = sphi 0, %s39
    %s59 = sphi 0, %s59
    %s61 = sphi 0, %s59
    %s62 = sphi 0, %s61
    %s76 = sphi 0, %s62
    %s84 = sphi 0, %s86
    %s87 = sphi 0, %s84
    %s88 = sphi 0, %s87
    %s104 = sphi 0, %s88
    %s112 = sphi 0, %s114
    %s115 = sphi 0, %s112
    %s116 = sphi 0, %s115
    %s132 = sphi 0, %s116
    %s140 = sphi 0, %s142
    %s143 = sphi 0, %s140
    %s144 = sphi 0, %s143
    %s160 = sphi 0, %s144
  $region4: #{unet_block.2} parent=0 // loop_header_branch
    %14 = sbr.rel (%p12) target = $region8
  $region5: #{unet_block.2} parent=0 // loop_body
    %s16 = ssub.s32 %s11, 1
    %s17 = ssub.s32 %s11, 2
    %s24 = sadd.s32 1, %s19
    %p25 = scmp.ge.s32.totalorder %s24, 1
    %s26 = scalar_select %p25, 0, %s24
    %s27 = sadd.s32 1, %s18
    %s28 = scalar_select %p25, %s27, %s18
    %p29 = scmp.ge.s32.totalorder %s28, 2
    %s30 = scalar_select %p29, 0, %s28
    %s31 = sadd.s32 %s18, %s19
    %s32 = sadd.s32 %s30, %s26
    %s33 = ssub.s32 %s31, %s32
    %p34 = scmp.eq.s32.totalorder %s33, 0
    %s36 = sadd.s32 %s35, 1
    %s37 = scalar_select %p34, %s35, %s36
    %p40 = pneg %p34
    %p41 = scmp.eq.s32.totalorder %s11, 1
    %p42 = por %p40, %p41
    %p43 = scmp.ne.s32.totalorder %s35, %s38
    %p44 = scmp.eq.s32.totalorder %s11, 0
    %p45 = por %p43, %p44
    %p46 = scmp.ne.s32.totalorder %s35, %s38
    %p47 = scmp.eq.s32.totalorder %s16, 1
    %p48 = por %p46, %p47
    %p49 = scmp.ne.s32.totalorder %s38, %s39
    %p50 = scmp.eq.s32.totalorder %s16, 0
    %p51 = por %p49, %p50
    %p52 = scmp.ne.s32.totalorder %s38, %s39
    %p53 = scmp.eq.s32.totalorder %s17, 1
    %p54 = por %p52, %p53
    %p56 = scmp.ne.s32.totalorder %s39, %s55
    %p57 = scmp.eq.s32.totalorder %s17, 0
    %p58 = por %p56, %p57
    %s60 = sadd.s32 %s59, 1
    %p63 = scmp.eq.s32.totalorder %s11, 1
    %p64 = scmp.ne.s32.totalorder %s59, %s61
    %p65 = scmp.eq.s32.totalorder %s11, 0
    %p66 = por %p64, %p65
    %p67 = scmp.ne.s32.totalorder %s59, %s61
    %p68 = scmp.eq.s32.totalorder %s16, 1
    %p69 = por %p67, %p68
    %p70 = scmp.ne.s32.totalorder %s61, %s62
    %p71 = scmp.eq.s32.totalorder %s16, 0
    %p72 = por %p70, %p71
    %p73 = scmp.ne.s32.totalorder %s61, %s62
    %p74 = scmp.eq.s32.totalorder %s17, 1
    %p75 = por %p73, %p74
    %p77 = scmp.ne.s32.totalorder %s62, %s76
    %p78 = scmp.eq.s32.totalorder %s17, 0
    %p79 = por %p77, %p78
    %s80 = ssub.s32 %s18, %s30
    %s81 = ssub.s32 %s19, %s26
    %s82 = sor.u32 %s80, %s81
    %p83 = scmp.eq.s32.totalorder %s82, 0
    %s85 = sadd.s32 %s84, 1
    %s86 = scalar_select %p83, %s84, %s85
    %p89 = pneg %p83
    %p90 = scmp.eq.s32.totalorder %s11, 1
    %p91 = por %p89, %p90
    %p92 = scmp.ne.s32.totalorder %s84, %s87
    %p93 = scmp.eq.s32.totalorder %s11, 0
    %p94 = por %p92, %p93
    %p95 = scmp.ne.s32.totalorder %s84, %s87
    %p96 = scmp.eq.s32.totalorder %s16, 1
    %p97 = por %p95, %p96
    %p98 = scmp.ne.s32.totalorder %s87, %s88
    %p99 = scmp.eq.s32.totalorder %s16, 0
    %p100 = por %p98, %p99
    %p101 = scmp.ne.s32.totalorder %s87, %s88
    %p102 = scmp.eq.s32.totalorder %s17, 1
    %p103 = por %p101, %p102
    %p105 = scmp.ne.s32.totalorder %s88, %s104
    %p106 = scmp.eq.s32.totalorder %s17, 0
    %p107 = por %p105, %p106
    %s108 = sadd.s32 %s18, %s19
    %s109 = sadd.s32 %s30, %s26
    %s110 = ssub.s32 %s108, %s109
    %p111 = scmp.eq.s32.totalorder %s110, 0
    %s113 = sadd.s32 %s112, 1
    %s114 = scalar_select %p111, %s112, %s113
    %p117 = pneg %p111
    %p118 = scmp.eq.s32.totalorder %s11, 1
    %p119 = por %p117, %p118
    %p120 = scmp.ne.s32.totalorder %s112, %s115
    %p121 = scmp.eq.s32.totalorder %s11, 0
    %p122 = por %p120, %p121
    %p123 = scmp.ne.s32.totalorder %s112, %s115
    %p124 = scmp.eq.s32.totalorder %s16, 1
    %p125 = por %p123, %p124
    %p126 = scmp.ne.s32.totalorder %s115, %s116
    %p127 = scmp.eq.s32.totalorder %s16, 0
    %p128 = por %p126, %p127
    %p129 = scmp.ne.s32.totalorder %s115, %s116
    %p130 = scmp.eq.s32.totalorder %s17, 1
    %p131 = por %p129, %p130
    %p133 = scmp.ne.s32.totalorder %s116, %s132
    %p134 = scmp.eq.s32.totalorder %s17, 0
    %p135 = por %p133, %p134
    %s136 = sadd.s32 %s18, %s19
    %s137 = sadd.s32 %s30, %s26
    %s138 = ssub.s32 %s136, %s137
    %p139 = scmp.eq.s32.totalorder %s138, 0
    %s141 = sadd.s32 %s140, 1
    %s142 = scalar_select %p139, %s140, %s141
    %p145 = pneg %p139
    %p146 = scmp.eq.s32.totalorder %s11, 1
    %p147 = por %p145, %p146
    %p148 = scmp.ne.s32.totalorder %s140, %s143
    %p149 = scmp.eq.s32.totalorder %s11, 0
    %p150 = por %p148, %p149
    %p151 = scmp.ne.s32.totalorder %s140, %s143
    %p152 = scmp.eq.s32.totalorder %s16, 1
    %p153 = por %p151, %p152
    %p154 = scmp.ne.s32.totalorder %s143, %s144
    %p155 = scmp.eq.s32.totalorder %s16, 0
    %p156 = por %p154, %p155
    %p157 = scmp.ne.s32.totalorder %s143, %s144
    %p158 = scmp.eq.s32.totalorder %s17, 1
    %p159 = por %p157, %p158
    %p161 = scmp.ne.s32.totalorder %s144, %s160
    %p162 = scmp.eq.s32.totalorder %s17, 0
    %p163 = por %p161, %p162
    %p164 = scmp.le.s32.totalorder 1, %s11
    %p165 = scmp.lt.s32.totalorder %s11, 3
    %p166 = pnand %p164, %p165
    %p167 = pneg %p166
    // Predicated region
    $region9: #{unet_block.2} parent=5 // pred_check
      _
    $region10: #{unet_block.2} parent=5 // pred_check_branch
      %169 = sbr.rel (%p166) target = $region12
    $region11: #{unet_block.2} parent=5 // pred_region
      %s170 = ssub.s32 %s11, 1
      // Predicated region
      $region13: #{unet_block.2} parent=11 // pred_check
        %p171 = pneg %p72
      $region14: #{unet_block.2} parent=11 // pred_check_branch
        %173 = sbr.rel (%p171) target = $region16
      $region15: #{unet_block.2} parent=11 // pred_region
        _
      $region16: #{unet_block.2} parent=11 // pred_fallthru
        _
    $region12: #{unet_block.2} parent=5 // pred_fallthru
      _
    %p174 = scmp.lt.s32.totalorder %s11, 2
    // Predicated region
    $region17: #{unet_block.2} parent=5 // pred_check
      %p175 = pneg %p174
    $region18: #{unet_block.2} parent=5 // pred_check_branch
      %177 = sbr.rel (%p175) target = $region20
    $region19: #{unet_block.2} parent=5 // pred_region
      // Predicated region
      $region21: #{unet_block.2} parent=19 // pred_check
        %p178 = pneg %p45
      $region22: #{unet_block.2} parent=19 // pred_check_branch
        %180 = sbr.rel (%p178) target = $region24
      $region23: #{unet_block.2} parent=19 // pred_region
        %s181 = sadd.s32 %s18, %s19
        %p182 = scmp.lt.s32.totalorder %s181, 1
        %s183 = scalar_select %p182, %s181, 1
        %s184 = smul.addr %s183, 54
        %s185 = smul.addr %s184, 4
        %s186 = scalar_lea.vmem %s0, %s185
        %s187 = sadd.s32 %s18, %s19
      $region24: #{unet_block.2} parent=19 // pred_fallthru
        _
    $region20: #{unet_block.2} parent=5 // pred_fallthru
      _
    %p188 = scmp.le.s32.totalorder 1, %s11
    %p189 = scmp.lt.s32.totalorder %s11, 3
    %p190 = pnand %p188, %p189
    %p191 = pneg %p190
    // Predicated region
    $region25: #{unet_block.2} parent=5 // pred_check
      _
    $region26: #{unet_block.2} parent=5 // pred_check_branch
      %193 = sbr.rel (%p190) target = $region28
    $region27: #{unet_block.2} parent=5 // pred_region
      %s194 = ssub.s32 %s11, 1
      %s195 = sadd.s32 %s20, %s21
      %p196 = scmp.lt.s32.totalorder %s195, 1
      %s197 = scalar_select %p196, %s195, 1
      %s198 = smul.addr %s197, 54
      %s199 = smul.addr %s198, 4
      %s200 = scalar_lea.vmem %s0, %s199
      %p201 = pneg %p51
      %p202 = pneg %p48
      %p203 = pneg %p72
      %p204 = pneg %p69
      %p205 = pneg %p100
      %p206 = pneg %p97
      %s207 = smul.u32 32, %s21
      %p208 = scmp.lt.s32.totalorder %s20, 1
      %s209 = scalar_select %p208, %s20, 1
      %p210 = scmp.lt.s32.totalorder %s207, 31
      %s211 = scalar_select %p210, %s207, 31
      %s212 = smul.addr %s209, 32
      %s213 = sadd.s32 %s211, %s212
      %s214 = smul.addr %s213, 4
      %s215 = scalar_lea.vmem %s2, %s214
      %p216 = pneg %p128
      %p217 = pneg %p125
      %s218 = sadd.s32 %s20, %s21
      %p219 = scmp.lt.s32.totalorder %s218, 1
      %s220 = scalar_select %p219, %s218, 1
      %s221 = scalar_lea.vmem %s3, %s220
      %p222 = pneg %p156
      %p223 = pneg %p153
      %s224 = sadd.s32 %s20, %s21
      %p225 = scmp.lt.s32.totalorder %s224, 1
      %s226 = scalar_select %p225, %s224, 1
      %s227 = scalar_lea.vmem %s4, %s226
      %s228 = sadd.s32 %s20, %s21
      %p229 = scmp.lt.s32.totalorder %s228, 1
      %s230 = scalar_select %p229, %s228, 1
      %s231 = smul.addr %s230, 54
      %s232 = smul.addr %s231, 4
      %s233 = scalar_lea.vmem %s0, %s232
      %s234 = sadd.s32 %s20, %s21
      %s235 = smul.u32 32, %s21
      %p236 = scmp.lt.s32.totalorder %s20, 1
      %s237 = scalar_select %p236, %s20, 1
      %p238 = scmp.lt.s32.totalorder %s235, 31
      %s239 = scalar_select %p238, %s235, 31
      %s240 = smul.addr %s237, 32
      %s241 = sadd.s32 %s239, %s240
      %s242 = smul.addr %s241, 4
      %s243 = scalar_lea.vmem %s2, %s242
      %s244 = smul.u32 32, %s21
      %s245 = sadd.s32 %s20, %s21
      %p246 = scmp.lt.s32.totalorder %s245, 1
      %s247 = scalar_select %p246, %s245, 1
      %s248 = scalar_lea.vmem %s3, %s247
      %s249 = sadd.s32 %s20, %s21
      %s250 = sadd.s32 %s20, %s21
      %p251 = scmp.lt.s32.totalorder %s250, 1
      %s252 = scalar_select %p251, %s250, 1
      %s253 = scalar_lea.vmem %s4, %s252
      %s254 = sadd.s32 %s20, %s21
      %v256 = vld [vmem:[%s233] sm:$0xf]
      %v257 = vld [vmem:[%s233 + $0x4] sm:$0xf]
      %v258 = vld [vmem:[%s233 + $0xc] sm:$0xf]
      %v259 = vld [vmem:[%s233 + $0x10] sm:$0xf]
      %v260 = vld [vmem:[%s233 + $0x18] sm:$0xf]
      %v261 = vld [vmem:[%s233 + $0x1c] sm:$0xf]
      %v262 = vld [vmem:[%s233 + $0x24] sm:$0xf]
      %v263 = vld [vmem:[%s233 + $0x28] sm:$0xf]
      %v264 = vld [vmem:[%s233 + $0x30] sm:$0xf]
      %v265 = vld [vmem:[%s233 + $0x34] sm:$0xf]
      %v266 = vld [vmem:[%s233 + $0x3c] sm:$0xf]
      %v267 = vld [vmem:[%s233 + $0x40] sm:$0xf]
      %v268 = vld [vmem:[%s233 + $0x48] sm:$0xf]
      %v269 = vld [vmem:[%s233 + $0x4c] sm:$0xf]
      %v270 = vld [vmem:[%s233 + $0x54] sm:$0xf]
      %v271 = vld [vmem:[%s233 + $0x58] sm:$0xf]
      %v272 = vld [vmem:[%s233 + $0x60] sm:$0xf]
      %v273 = vld [vmem:[%s233 + $0x64] sm:$0xf]
      %v274 = vld [vmem:[%s233 + $0x6c] sm:$0xf]
      %v275 = vld [vmem:[%s233 + $0x70] sm:$0xf]
      %v276 = vld [vmem:[%s233 + $0x78] sm:$0xf]
      %v277 = vld [vmem:[%s233 + $0x7c] sm:$0xf]
      %v278 = vld [vmem:[%s233 + $0x84] sm:$0xf]
      %v279 = vld [vmem:[%s233 + $0x88] sm:$0xf]
      %v280 = vld [vmem:[%s233 + $0x90] sm:$0xf]
      %v281 = vld [vmem:[%s233 + $0x94] sm:$0xf]
      %v282 = vld [vmem:[%s233 + $0x9c] sm:$0xf]
      %v283 = vld [vmem:[%s233 + $0xa0] sm:$0xf]
      %v284 = vld [vmem:[%s233 + $0xa8] sm:$0xf]
      %v285 = vld [vmem:[%s233 + $0xac] sm:$0xf]
      %v286 = vld [vmem:[%s233 + $0xb4] sm:$0xf]
      %v287 = vld [vmem:[%s233 + $0xb8] sm:$0xf]
      %vm288 = vcmask 27648
      %289 = vst.msk [vmem:[#allocation2] sm:$0xf] %vm288, %v256
      %290 = vst.msk [vmem:[#allocation2 + $0x4] sm:$0xf] %vm288, %v257
      %291 = vst.msk [vmem:[#allocation2 + $0x8] sm:$0xf] %vm288, %v258
      %292 = vst.msk [vmem:[#allocation2 + $0xc] sm:$0xf] %vm288, %v259
      %293 = vst.msk [vmem:[#allocation2 + $0x10] sm:$0xf] %vm288, %v260
      %294 = vst.msk [vmem:[#allocation2 + $0x14] sm:$0xf] %vm288, %v261
      %295 = vst.msk [vmem:[#allocation2 + $0x18] sm:$0xf] %vm288, %v262
      %296 = vst.msk [vmem:[#allocation2 + $0x1c] sm:$0xf] %vm288, %v263
      %297 = vst.msk [vmem:[#allocation2 + $0x20] sm:$0xf] %vm288, %v264
      %298 = vst.msk [vmem:[#allocation2 + $0x24] sm:$0xf] %vm288, %v265
      %299 = vst.msk [vmem:[#allocation2 + $0x28] sm:$0xf] %vm288, %v266
      %300 = vst.msk [vmem:[#allocation2 + $0x2c] sm:$0xf] %vm288, %v267
      %301 = vst.msk [vmem:[#allocation2 + $0x30] sm:$0xf] %vm288, %v268
      %302 = vst.msk [vmem:[#allocation2 + $0x34] sm:$0xf] %vm288, %v269
      %303 = vst.msk [vmem:[#allocation2 + $0x38] sm:$0xf] %vm288, %v270
      %304 = vst.msk [vmem:[#allocation2 + $0x3c] sm:$0xf] %vm288, %v271
      %305 = vst.msk [vmem:[#allocation2 + $0x40] sm:$0xf] %vm288, %v272
      %306 = vst.msk [vmem:[#allocation2 + $0x44] sm:$0xf] %vm288, %v273
      %307 = vst.msk [vmem:[#allocation2 + $0x48] sm:$0xf] %vm288, %v274
      %308 = vst.msk [vmem:[#allocation2 + $0x4c] sm:$0xf] %vm288, %v275
      %309 = vst.msk [vmem:[#allocation2 + $0x50] sm:$0xf] %vm288, %v276
      %310 = vst.msk [vmem:[#allocation2 + $0x54] sm:$0xf] %vm288, %v277
      %311 = vst.msk [vmem:[#allocation2 + $0x58] sm:$0xf] %vm288, %v278
      %312 = vst.msk [vmem:[#allocation2 + $0x5c] sm:$0xf] %vm288, %v279
      %313 = vst.msk [vmem:[#allocation2 + $0x60] sm:$0xf] %vm288, %v280
      %314 = vst.msk [vmem:[#allocation2 + $0x64] sm:$0xf] %vm288, %v281
      %315 = vst.msk [vmem:[#allocation2 + $0x68] sm:$0xf] %vm288, %v282
      %316 = vst.msk [vmem:[#allocation2 + $0x6c] sm:$0xf] %vm288, %v283
      %317 = vst.msk [vmem:[#allocation2 + $0x70] sm:$0xf] %vm288, %v284
      %318 = vst.msk [vmem:[#allocation2 + $0x74] sm:$0xf] %vm288, %v285
      %319 = vst.msk [vmem:[#allocation2 + $0x78] sm:$0xf] %vm288, %v286
      %320 = vst.msk [vmem:[#allocation2 + $0x7c] sm:$0xf] %vm288, %v287
      %v321 = vld [vmem:[%s233] sm:$0xf]
      %v322 = vld [vmem:[%s233 + $0x4] sm:$0xf]
      %v323 = vld [vmem:[%s233 + $0x8] sm:$0x1]
      %v324 = vld [vmem:[%s233 + $0xc] sm:$0xf]
      %v325 = vld [vmem:[%s233 + $0x10] sm:$0xf]
      %v326 = vld [vmem:[%s233 + $0x14] sm:$0x1]
      %v327 = vld [vmem:[%s233 + $0x18] sm:$0xf]
      %v328 = vld [vmem:[%s233 + $0x1c] sm:$0xf]
      %v329 = vld [vmem:[%s233 + $0x20] sm:$0x1]
      %v330 = vld [vmem:[%s233 + $0x24] sm:$0xf]
      %v331 = vld [vmem:[%s233 + $0x28] sm:$0xf]
      %v332 = vld [vmem:[%s233 + $0x2c] sm:$0x1]
      %v333 = vld [vmem:[%s233 + $0x30] sm:$0xf]
      %v334 = vld [vmem:[%s233 + $0x34] sm:$0xf]
      %v335 = vld [vmem:[%s233 + $0x38] sm:$0x1]
      %v336 = vld [vmem:[%s233 + $0x3c] sm:$0xf]
      %v337 = vld [vmem:[%s233 + $0x40] sm:$0xf]
      %v338 = vld [vmem:[%s233 + $0x44] sm:$0x1]
      %v339 = vld [vmem:[%s233 + $0x48] sm:$0xf]
      %v340 = vld [vmem:[%s233 + $0x4c] sm:$0xf]
      %v341 = vld [vmem:[%s233 + $0x50] sm:$0x1]
      %v342 = vld [vmem:[%s233 + $0x54] sm:$0xf]
      %v343 = vld [vmem:[%s233 + $0x58] sm:$0xf]
      %v344 = vld [vmem:[%s233 + $0x5c] sm:$0x1]
      %v345 = vld [vmem:[%s233 + $0x60] sm:$0xf]
      %v346 = vld [vmem:[%s233 + $0x64] sm:$0xf]
      %v347 = vld [vmem:[%s233 + $0x68] sm:$0x1]
      %v348 = vld [vmem:[%s233 + $0x6c] sm:$0xf]
      %v349 = vld [vmem:[%s233 + $0x70] sm:$0xf]
      %v350 = vld [vmem:[%s233 + $0x74] sm:$0x1]
      %v351 = vld [vmem:[%s233 + $0x78] sm:$0xf]
      %v352 = vld [vmem:[%s233 + $0x7c] sm:$0xf]
      %v353 = vld [vmem:[%s233 + $0x80] sm:$0x1]
      %v354 = vld [vmem:[%s233 + $0x84] sm:$0xf]
      %v355 = vld [vmem:[%s233 + $0x88] sm:$0xf]
      %v356 = vld [vmem:[%s233 + $0x8c] sm:$0x1]
      %v357 = vld [vmem:[%s233 + $0x90] sm:$0xf]
      %v358 = vld [vmem:[%s233 + $0x94] sm:$0xf]
      %v359 = vld [vmem:[%s233 + $0x98] sm:$0x1]
      %v360 = vld [vmem:[%s233 + $0x9c] sm:$0xf]
      %v361 = vld [vmem:[%s233 + $0xa0] sm:$0xf]
      %v362 = vld [vmem:[%s233 + $0xa4] sm:$0x1]
      %v363 = vld [vmem:[%s233 + $0xa8] sm:$0xf]
      %v364 = vld [vmem:[%s233 + $0xac] sm:$0xf]
      %v365 = vld [vmem:[%s233 + $0xb0] sm:$0x1]
      %v366 = vld [vmem:[%s233 + $0xb4] sm:$0xf]
      %v367 = vld [vmem:[%s233 + $0xb8] sm:$0xf]
      %v368 = vld [vmem:[%s233 + $0xbc] sm:$0x1]
      %vm369 = vsmask.f32 3328
      %vm370 = vsmask.f32 7440
      %vm371 = vmor %vm369, %vm370
      %v373 = vshrl.u32 %v321, 16
      %v375 = vrot.slane %v373, 4
      %v376 = vshll.u32 %v321, 16
      %v378 = vrot.slane %v376, 5
      %v379 = vor.u32 %v375, %v378
      %v380 = vrot.slane %v379, 4
      %v382 = vshll.u32 %v322, 16
      %v384 = vrot.slane %v382, 5
      %v385 = vsel %vm371, %v380, %v384
      %v386 = vshrl.u32 %v322, 16
      %v388 = vrot.slane %v386, 4
      %v389 = vor.u32 %v388, %v384
      %v390 = vrot.slane %v389, 4
      %v392 = vshll.u32 %v323, 16
      %v394 = vrot.slane %v392, 5
      %v395 = vsel %vm371, %v390, %v394
      %v397 = vshrl.u32 %v324, 16
      %v399 = vrot.slane %v397, 4
      %v400 = vshll.u32 %v324, 16
      %v402 = vrot.slane %v400, 5
      %v403 = vor.u32 %v399, %v402
      %v404 = vrot.slane %v403, 4
      %v406 = vshll.u32 %v325, 16
      %v408 = vrot.slane %v406, 5
      %v409 = vsel %vm371, %v404, %v408
      %v410 = vshrl.u32 %v325, 16
      %v412 = vrot.slane %v410, 4
      %v413 = vor.u32 %v412, %v408
      %v414 = vrot.slane %v413, 4
      %v416 = vshll.u32 %v326, 16
      %v418 = vrot.slane %v416, 5
      %v419 = vsel %vm371, %v414, %v418
      %v421 = vshrl.u32 %v327, 16
      %v423 = vrot.slane %v421, 4
      %v424 = vshll.u32 %v327, 16
      %v426 = vrot.slane %v424, 5
      %v427 = vor.u32 %v423, %v426
      %v428 = vrot.slane %v427, 4
      %v430 = vshll.u32 %v328, 16
      %v432 = vrot.slane %v430, 5
      %v433 = vsel %vm371, %v428, %v432
      %v434 = vshrl.u32 %v328, 16
      %v436 = vrot.slane %v434, 4
      %v437 = vor.u32 %v436, %v432
      %v438 = vrot.slane %v437, 4
      %v440 = vshll.u32 %v329, 16
      %v442 = vrot.slane %v440, 5
      %v443 = vsel %vm371, %v438, %v442
      %v445 = vshrl.u32 %v330, 16
      %v447 = vrot.slane %v445, 4
      %v448 = vshll.u32 %v330, 16
      %v450 = vrot.slane %v448, 5
      %v451 = vor.u32 %v447, %v450
      %v452 = vrot.slane %v451, 4
      %v454 = vshll.u32 %v331, 16
      %v456 = vrot.slane %v454, 5
      %v457 = vsel %vm371, %v452, %v456
      %v458 = vshrl.u32 %v331, 16
      %v460 = vrot.slane %v458, 4
      %v461 = vor.u32 %v460, %v456
      %v462 = vrot.slane %v461, 4
      %v464 = vshll.u32 %v332, 16
      %v466 = vrot.slane %v464, 5
      %v467 = vsel %vm371, %v462, %v466
      %v469 = vshrl.u32 %v333, 16
      %v471 = vrot.slane %v469, 4
      %v472 = vshll.u32 %v333, 16
      %v474 = vrot.slane %v472, 5
      %v475 = vor.u32 %v471, %v474
      %v476 = vrot.slane %v475, 4
      %v478 = vshll.u32 %v334, 16
      %v480 = vrot.slane %v478, 5
      %v481 = vsel %vm371, %v476, %v480
      %v482 = vshrl.u32 %v334, 16
      %v484 = vrot.slane %v482, 4
      %v485 = vor.u32 %v484, %v480
      %v486 = vrot.slane %v485, 4
      %v488 = vshll.u32 %v335, 16
      %v490 = vrot.slane %v488, 5
      %v491 = vsel %vm371, %v486, %v490
      %v493 = vshrl.u32 %v336, 16
      %v495 = vrot.slane %v493, 4
      %v496 = vshll.u32 %v336, 16
      %v498 = vrot.slane %v496, 5
      %v499 = vor.u32 %v495, %v498
      %v500 = vrot.slane %v499, 4
      %v502 = vshll.u32 %v337, 16
      %v504 = vrot.slane %v502, 5
      %v505 = vsel %vm371, %v500, %v504
      %v506 = vshrl.u32 %v337, 16
      %v508 = vrot.slane %v506, 4
      %v509 = vor.u32 %v508, %v504
      %v510 = vrot.slane %v509, 4
      %v512 = vshll.u32 %v338, 16
      %v514 = vrot.slane %v512, 5
      %v515 = vsel %vm371, %v510, %v514
      %v517 = vshrl.u32 %v339, 16
      %v519 = vrot.slane %v517, 4
      %v520 = vshll.u32 %v339, 16
      %v522 = vrot.slane %v520, 5
      %v523 = vor.u32 %v519, %v522
      %v524 = vrot.slane %v523, 4
      %v526 = vshll.u32 %v340, 16
      %v528 = vrot.slane %v526, 5
      %v529 = vsel %vm371, %v524, %v528
      %v530 = vshrl.u32 %v340, 16
      %v532 = vrot.slane %v530, 4
      %v533 = vor.u32 %v532, %v528
      %v534 = vrot.slane %v533, 4
      %v536 = vshll.u32 %v341, 16
      %v538 = vrot.slane %v536, 5
      %v539 = vsel %vm371, %v534, %v538
      %v541 = vshrl.u32 %v342, 16
      %v543 = vrot.slane %v541, 4
      %v544 = vshll.u32 %v342, 16
      %v546 = vrot.slane %v544, 5
      %v547 = vor.u32 %v543, %v546
      %v548 = vrot.slane %v547, 4
      %v550 = vshll.u32 %v343, 16
      %v552 = vrot.slane %v550, 5
      %v553 = vsel %vm371, %v548, %v552
      %v554 = vshrl.u32 %v343, 16
      %v556 = vrot.slane %v554, 4
      %v557 = vor.u32 %v556, %v552
      %v558 = vrot.slane %v557, 4
      %v560 = vshll.u32 %v344, 16
      %v562 = vrot.slane %v560, 5
      %v563 = vsel %vm371, %v558, %v562
      %v565 = vshrl.u32 %v345, 16
      %v567 = vrot.slane %v565, 4
      %v568 = vshll.u32 %v345, 16
      %v570 = vrot.slane %v568, 5
      %v571 = vor.u32 %v567, %v570
      %v572 = vrot.slane %v571, 4
      %v574 = vshll.u32 %v346, 16
      %v576 = vrot.slane %v574, 5
      %v577 = vsel %vm371, %v572, %v576
      %v578 = vshrl.u32 %v346, 16
      %v580 = vrot.slane %v578, 4
      %v581 = vor.u32 %v580, %v576
      %v582 = vrot.slane %v581, 4
      %v584 = vshll.u32 %v347, 16
      %v586 = vrot.slane %v584, 5
      %v587 = vsel %vm371, %v582, %v586
      %v589 = vshrl.u32 %v348, 16
      %v591 = vrot.slane %v589, 4
      %v592 = vshll.u32 %v348, 16
      %v594 = vrot.slane %v592, 5
      %v595 = vor.u32 %v591, %v594
      %v596 = vrot.slane %v595, 4
      %v598 = vshll.u32 %v349, 16
      %v600 = vrot.slane %v598, 5
      %v601 = vsel %vm371, %v596, %v600
      %v602 = vshrl.u32 %v349, 16
      %v604 = vrot.slane %v602, 4
      %v605 = vor.u32 %v604, %v600
      %v606 = vrot.slane %v605, 4
      %v608 = vshll.u32 %v350, 16
      %v610 = vrot.slane %v608, 5
      %v611 = vsel %vm371, %v606, %v610
      %v613 = vshrl.u32 %v351, 16
      %v615 = vrot.slane %v613, 4
      %v616 = vshll.u32 %v351, 16
      %v618 = vrot.slane %v616, 5
      %v619 = vor.u32 %v615, %v618
      %v620 = vrot.slane %v619, 4
      %v622 = vshll.u32 %v352, 16
      %v624 = vrot.slane %v622, 5
      %v625 = vsel %vm371, %v620, %v624
      %v626 = vshrl.u32 %v352, 16
      %v628 = vrot.slane %v626, 4
      %v629 = vor.u32 %v628, %v624
      %v630 = vrot.slane %v629, 4
      %v632 = vshll.u32 %v353, 16
      %v634 = vrot.slane %v632, 5
      %v635 = vsel %vm371, %v630, %v634
      %v637 = vshrl.u32 %v354, 16
      %v639 = vrot.slane %v637, 4
      %v640 = vshll.u32 %v354, 16
      %v642 = vrot.slane %v640, 5
      %v643 = vor.u32 %v639, %v642
      %v644 = vrot.slane %v643, 4
      %v646 = vshll.u32 %v355, 16
      %v648 = vrot.slane %v646, 5
      %v649 = vsel %vm371, %v644, %v648
      %v650 = vshrl.u32 %v355, 16
      %v652 = vrot.slane %v650, 4
      %v653 = vor.u32 %v652, %v648
      %v654 = vrot.slane %v653, 4
      %v656 = vshll.u32 %v356, 16
      %v658 = vrot.slane %v656, 5
      %v659 = vsel %vm371, %v654, %v658
      %v661 = vshrl.u32 %v357, 16
      %v663 = vrot.slane %v661, 4
      %v664 = vshll.u32 %v357, 16
      %v666 = vrot.slane %v664, 5
      %v667 = vor.u32 %v663, %v666
      %v668 = vrot.slane %v667, 4
      %v670 = vshll.u32 %v358, 16
      %v672 = vrot.slane %v670, 5
      %v673 = vsel %vm371, %v668, %v672
      %v674 = vshrl.u32 %v358, 16
      %v676 = vrot.slane %v674, 4
      %v677 = vor.u32 %v676, %v672
      %v678 = vrot.slane %v677, 4
      %v680 = vshll.u32 %v359, 16
      %v682 = vrot.slane %v680, 5
      %v683 = vsel %vm371, %v678, %v682
      %v685 = vshrl.u32 %v360, 16
      %v687 = vrot.slane %v685, 4
      %v688 = vshll.u32 %v360, 16
      %v690 = vrot.slane %v688, 5
      %v691 = vor.u32 %v687, %v690
      %v692 = vrot.slane %v691, 4
      %v694 = vshll.u32 %v361, 16
      %v696 = vrot.slane %v694, 5
      %v697 = vsel %vm371, %v692, %v696
      %v698 = vshrl.u32 %v361, 16
      %v700 = vrot.slane %v698, 4
      %v701 = vor.u32 %v700, %v696
      %v702 = vrot.slane %v701, 4
      %v704 = vshll.u32 %v362, 16
      %v706 = vrot.slane %v704, 5
      %v707 = vsel %vm371, %v702, %v706
      %v709 = vshrl.u32 %v363, 16
      %v711 = vrot.slane %v709, 4
      %v712 = vshll.u32 %v363, 16
      %v714 = vrot.slane %v712, 5
      %v715 = vor.u32 %v711, %v714
      %v716 = vrot.slane %v715, 4
      %v718 = vshll.u32 %v364, 16
      %v720 = vrot.slane %v718, 5
      %v721 = vsel %vm371, %v716, %v720
      %v722 = vshrl.u32 %v364, 16
      %v724 = vrot.slane %v722, 4
      %v725 = vor.u32 %v724, %v720
      %v726 = vrot.slane %v725, 4
      %v728 = vshll.u32 %v365, 16
      %v730 = vrot.slane %v728, 5
      %v731 = vsel %vm371, %v726, %v730
      %v733 = vshrl.u32 %v366, 16
      %v735 = vrot.slane %v733, 4
      %v736 = vshll.u32 %v366, 16
      %v738 = vrot.slane %v736, 5
      %v739 = vor.u32 %v735, %v738
      %v740 = vrot.slane %v739, 4
      %v742 = vshll.u32 %v367, 16
      %v744 = vrot.slane %v742, 5
      %v745 = vsel %vm371, %v740, %v744
      %v746 = vshrl.u32 %v367, 16
      %v748 = vrot.slane %v746, 4
      %v749 = vor.u32 %v748, %v744
      %v750 = vrot.slane %v749, 4
      %v752 = vshll.u32 %v368, 16
      %v754 = vrot.slane %v752, 5
      %v755 = vsel %vm371, %v750, %v754
      %756 = vrot.lane.b32.xlu0 %v385, 4
      %v757 = vpop.permute.xlu0 %756
      %758 = vrot.lane.b32.xlu0 %v395, 4
      %v759 = vpop.permute.xlu0 %758
      %760 = vrot.lane.b32.xlu0 %v409, 4
      %v761 = vpop.permute.xlu0 %760
      %762 = vrot.lane.b32.xlu0 %v419, 4
      %v763 = vpop.permute.xlu0 %762
      %764 = vrot.lane.b32.xlu0 %v433, 4
      %v765 = vpop.permute.xlu0 %764
      %766 = vrot.lane.b32.xlu0 %v443, 4
      %v767 = vpop.permute.xlu0 %766
      %768 = vrot.lane.b32.xlu0 %v457, 4
      %v769 = vpop.permute.xlu0 %768
      %770 = vrot.lane.b32.xlu0 %v467, 4
      %v771 = vpop.permute.xlu0 %770
      %772 = vrot.lane.b32.xlu0 %v481, 4
      %v773 = vpop.permute.xlu0 %772
      %774 = vrot.lane.b32.xlu0 %v491, 4
      %v775 = vpop.permute.xlu0 %774
      %776 = vrot.lane.b32.xlu0 %v505, 4
      %v777 = vpop.permute.xlu0 %776
      %778 = vrot.lane.b32.xlu0 %v515, 4
      %v779 = vpop.permute.xlu0 %778
      %780 = vrot.lane.b32.xlu0 %v529, 4
      %v781 = vpop.permute.xlu0 %780
      %782 = vrot.lane.b32.xlu0 %v539, 4
      %v783 = vpop.permute.xlu0 %782
      %784 = vrot.lane.b32.xlu0 %v553, 4
      %v785 = vpop.permute.xlu0 %784
      %786 = vrot.lane.b32.xlu0 %v563, 4
      %v787 = vpop.permute.xlu0 %786
      %788 = vrot.lane.b32.xlu0 %v577, 4
      %v789 = vpop.permute.xlu0 %788
      %790 = vrot.lane.b32.xlu0 %v587, 4
      %v791 = vpop.permute.xlu0 %790
      %792 = vrot.lane.b32.xlu0 %v601, 4
      %v793 = vpop.permute.xlu0 %792
      %794 = vrot.lane.b32.xlu0 %v611, 4
      %v795 = vpop.permute.xlu0 %794
      %796 = vrot.lane.b32.xlu0 %v625, 4
      %v797 = vpop.permute.xlu0 %796
      %798 = vrot.lane.b32.xlu0 %v635, 4
      %v799 = vpop.permute.xlu0 %798
      %800 = vrot.lane.b32.xlu0 %v649, 4
      %v801 = vpop.permute.xlu0 %800
      %802 = vrot.lane.b32.xlu0 %v659, 4
      %v803 = vpop.permute.xlu0 %802
      %804 = vrot.lane.b32.xlu0 %v673, 4
      %v805 = vpop.permute.xlu0 %804
      %806 = vrot.lane.b32.xlu0 %v683, 4
      %v807 = vpop.permute.xlu0 %806
      %808 = vrot.lane.b32.xlu0 %v697, 4
      %v809 = vpop.permute.xlu0 %808
      %810 = vrot.lane.b32.xlu0 %v707, 4
      %v811 = vpop.permute.xlu0 %810
      %812 = vrot.lane.b32.xlu0 %v721, 4
      %v813 = vpop.permute.xlu0 %812
      %814 = vrot.lane.b32.xlu0 %v731, 4
      %v815 = vpop.permute.xlu0 %814
      %816 = vrot.lane.b32.xlu0 %v745, 4
      %v817 = vpop.permute.xlu0 %816
      %818 = vrot.lane.b32.xlu0 %v755, 4
      %v819 = vpop.permute.xlu0 %818
      %vm852 = vcmask 60448
      %853 = vst.msk [vmem:[#allocation2] sm:$0xf] %vm852, %v757
      %854 = vst.msk [vmem:[#allocation2 + $0x4] sm:$0xf] %vm852, %v759
      %855 = vst.msk [vmem:[#allocation2 + $0x8] sm:$0xf] %vm852, %v761
      %856 = vst.msk [vmem:[#allocation2 + $0xc] sm:$0xf] %vm852, %v763
      %857 = vst.msk [vmem:[#allocation2 + $0x10] sm:$0xf] %vm852, %v765
      %858 = vst.msk [vmem:[#allocation2 + $0x14] sm:$0xf] %vm852, %v767
      %859 = vst.msk [vmem:[#allocation2 + $0x18] sm:$0xf] %vm852, %v769
      %860 = vst.msk [vmem:[#allocation2 + $0x1c] sm:$0xf] %vm852, %v771
      %861 = vst.msk [vmem:[#allocation2 + $0x20] sm:$0xf] %vm852, %v773
      %862 = vst.msk [vmem:[#allocation2 + $0x24] sm:$0xf] %vm852, %v775
      %863 = vst.msk [vmem:[#allocation2 + $0x28] sm:$0xf] %vm852, %v777
      %864 = vst.msk [vmem:[#allocation2 + $0x2c] sm:$0xf] %vm852, %v779
      %865 = vst.msk [vmem:[#allocation2 + $0x30] sm:$0xf] %vm852, %v781
      %866 = vst.msk [vmem:[#allocation2 + $0x34] sm:$0xf] %vm852, %v783
      %867 = vst.msk [vmem:[#allocation2 + $0x38] sm:$0xf] %vm852, %v785
      %868 = vst.msk [vmem:[#allocation2 + $0x3c] sm:$0xf] %vm852, %v787
      %869 = vst.msk [vmem:[#allocation2 + $0x40] sm:$0xf] %vm852, %v789
      %870 = vst.msk [vmem:[#allocation2 + $0x44] sm:$0xf] %vm852, %v791
      %871 = vst.msk [vmem:[#allocation2 + $0x48] sm:$0xf] %vm852, %v793
      %872 = vst.msk [vmem:[#allocation2 + $0x4c] sm:$0xf] %vm852, %v795
      %873 = vst.msk [vmem:[#allocation2 + $0x50] sm:$0xf] %vm852, %v797
      %874 = vst.msk [vmem:[#allocation2 + $0x54] sm:$0xf] %vm852, %v799
      %875 = vst.msk [vmem:[#allocation2 + $0x58] sm:$0xf] %vm852, %v801
      %876 = vst.msk [vmem:[#allocation2 + $0x5c] sm:$0xf] %vm852, %v803
      %877 = vst.msk [vmem:[#allocation2 + $0x60] sm:$0xf] %vm852, %v805
      %878 = vst.msk [vmem:[#allocation2 + $0x64] sm:$0xf] %vm852, %v807
      %879 = vst.msk [vmem:[#allocation2 + $0x68] sm:$0xf] %vm852, %v809
      %880 = vst.msk [vmem:[#allocation2 + $0x6c] sm:$0xf] %vm852, %v811
      %881 = vst.msk [vmem:[#allocation2 + $0x70] sm:$0xf] %vm852, %v813
      %882 = vst.msk [vmem:[#allocation2 + $0x74] sm:$0xf] %vm852, %v815
      %883 = vst.msk [vmem:[#allocation2 + $0x78] sm:$0xf] %vm852, %v817
      %884 = vst.msk [vmem:[#allocation2 + $0x7c] sm:$0xf] %vm852, %v819
      %v885 = vld [vmem:[%s233] sm:$0xe]
      %v886 = vld [vmem:[%s233 + $0x4] sm:$0xf]
      %v887 = vld [vmem:[%s233 + $0x8] sm:$0x1]
      %v888 = vld [vmem:[%s233 + $0xc] sm:$0xe]
      %v889 = vld [vmem:[%s233 + $0x10] sm:$0xf]
      %v890 = vld [vmem:[%s233 + $0x14] sm:$0x1]
      %v891 = vld [vmem:[%s233 + $0x18] sm:$0xe]
      %v892 = vld [vmem:[%s233 + $0x1c] sm:$0xf]
      %v893 = vld [vmem:[%s233 + $0x20] sm:$0x1]
      %v894 = vld [vmem:[%s233 + $0x24] sm:$0xe]
      %v895 = vld [vmem:[%s233 + $0x28] sm:$0xf]
      %v896 = vld [vmem:[%s233 + $0x2c] sm:$0x1]
      %v897 = vld [vmem:[%s233 + $0x30] sm:$0xe]
      %v898 = vld [vmem:[%s233 + $0x34] sm:$0xf]
      %v899 = vld [vmem:[%s233 + $0x38] sm:$0x1]
      %v900 = vld [vmem:[%s233 + $0x3c] sm:$0xe]
      %v901 = vld [vmem:[%s233 + $0x40] sm:$0xf]
      %v902 = vld [vmem:[%s233 + $0x44] sm:$0x1]
      %v903 = vld [vmem:[%s233 + $0x48] sm:$0xe]
      %v904 = vld [vmem:[%s233 + $0x4c] sm:$0xf]
      %v905 = vld [vmem:[%s233 + $0x50] sm:$0x1]
      %v906 = vld [vmem:[%s233 + $0x54] sm:$0xe]
      %v907 = vld [vmem:[%s233 + $0x58] sm:$0xf]
      %v908 = vld [vmem:[%s233 + $0x5c] sm:$0x1]
      %v909 = vld [vmem:[%s233 + $0x60] sm:$0xe]
      %v910 = vld [vmem:[%s233 + $0x64] sm:$0xf]
      %v911 = vld [vmem:[%s233 + $0x68] sm:$0x1]
      %v912 = vld [vmem:[%s233 + $0x6c] sm:$0xe]
      %v913 = vld [vmem:[%s233 + $0x70] sm:$0xf]
      %v914 = vld [vmem:[%s233 + $0x74] sm:$0x1]
      %v915 = vld [vmem:[%s233 + $0x78] sm:$0xe]
      %v916 = vld [vmem:[%s233 + $0x7c] sm:$0xf]
      %v917 = vld [vmem:[%s233 + $0x80] sm:$0x1]
      %v918 = vld [vmem:[%s233 + $0x84] sm:$0xe]
      %v919 = vld [vmem:[%s233 + $0x88] sm:$0xf]
      %v920 = vld [vmem:[%s233 + $0x8c] sm:$0x1]
      %v921 = vld [vmem:[%s233 + $0x90] sm:$0xe]
      %v922 = vld [vmem:[%s233 + $0x94] sm:$0xf]
      %v923 = vld [vmem:[%s233 + $0x98] sm:$0x1]
      %v924 = vld [vmem:[%s233 + $0x9c] sm:$0xe]
      %v925 = vld [vmem:[%s233 + $0xa0] sm:$0xf]
      %v926 = vld [vmem:[%s233 + $0xa4] sm:$0x1]
      %v927 = vld [vmem:[%s233 + $0xa8] sm:$0xe]
      %v928 = vld [vmem:[%s233 + $0xac] sm:$0xf]
      %v929 = vld [vmem:[%s233 + $0xb0] sm:$0x1]
      %v930 = vld [vmem:[%s233 + $0xb4] sm:$0xe]
      %v931 = vld [vmem:[%s233 + $0xb8] sm:$0xf]
      %v932 = vld [vmem:[%s233 + $0xbc] sm:$0x1]
      %vm981 = vcmask 1042432
      %vm982 = vcmask 1046532
      %vm983 = vmor %vm981, %vm982
      %v984 = vrot.slane %v885, 5
      %v985 = vrot.slane %v984, 4
      %v986 = vrot.slane %v886, 5
      %v987 = vsel %vm983, %v985, %v986
      %v988 = vrot.slane %v986, 4
      %v989 = vrot.slane %v887, 5
      %v990 = vsel %vm983, %v988, %v989
      %v991 = vrot.slane %v888, 5
      %v992 = vrot.slane %v991, 4
      %v993 = vrot.slane %v889, 5
      %v994 = vsel %vm983, %v992, %v993
      %v995 = vrot.slane %v993, 4
      %v996 = vrot.slane %v890, 5
      %v997 = vsel %vm983, %v995, %v996
      %v998 = vrot.slane %v891, 5
      %v999 = vrot.slane %v998, 4
      %v1000 = vrot.slane %v892, 5
      %v1001 = vsel %vm983, %v999, %v1000
      %v1002 = vrot.slane %v1000, 4
      %v1003 = vrot.slane %v893, 5
      %v1004 = vsel %vm983, %v1002, %v1003
      %v1005 = vrot.slane %v894, 5
      %v1006 = vrot.slane %v1005, 4
      %v1007 = vrot.slane %v895, 5
      %v1008 = vsel %vm983, %v1006, %v1007
      %v1009 = vrot.slane %v1007, 4
      %v1010 = vrot.slane %v896, 5
      %v1011 = vsel %vm983, %v1009, %v1010
      %v1012 = vrot.slane %v897, 5
      %v1013 = vrot.slane %v1012, 4
      %v1014 = vrot.slane %v898, 5
      %v1015 = vsel %vm983, %v1013, %v1014
      %v1016 = vrot.slane %v1014, 4
      %v1017 = vrot.slane %v899, 5
      %v1018 = vsel %vm983, %v1016, %v1017
      %v1019 = vrot.slane %v900, 5
      %v1020 = vrot.slane %v1019, 4
      %v1021 = vrot.slane %v901, 5
      %v1022 = vsel %vm983, %v1020, %v1021
      %v1023 = vrot.slane %v1021, 4
      %v1024 = vrot.slane %v902, 5
      %v1025 = vsel %vm983, %v1023, %v1024
      %v1026 = vrot.slane %v903, 5
      %v1027 = vrot.slane %v1026, 4
      %v1028 = vrot.slane %v904, 5
      %v1029 = vsel %vm983, %v1027, %v1028
      %v1030 = vrot.slane %v1028, 4
      %v1031 = vrot.slane %v905, 5
      %v1032 = vsel %vm983, %v1030, %v1031
      %v1033 = vrot.slane %v906, 5
      %v1034 = vrot.slane %v1033, 4
      %v1035 = vrot.slane %v907, 5
      %v1036 = vsel %vm983, %v1034, %v1035
      %v1037 = vrot.slane %v1035, 4
      %v1038 = vrot.slane %v908, 5
      %v1039 = vsel %vm983, %v1037, %v1038
      %v1040 = vrot.slane %v909, 5
      %v1041 = vrot.slane %v1040, 4
      %v1042 = vrot.slane %v910, 5
      %v1043 = vsel %vm983, %v1041, %v1042
      %v1044 = vrot.slane %v1042, 4
      %v1045 = vrot.slane %v911, 5
      %v1046 = vsel %vm983, %v1044, %v1045
      %v1047 = vrot.slane %v912, 5
      %v1048 = vrot.slane %v1047, 4
      %v1049 = vrot.slane %v913, 5
      %v1050 = vsel %vm983, %v1048, %v1049
      %v1051 = vrot.slane %v1049, 4
      %v1052 = vrot.slane %v914, 5
      %v1053 = vsel %vm983, %v1051, %v1052
      %v1054 = vrot.slane %v915, 5
      %v1055 = vrot.slane %v1054, 4
      %v1056 = vrot.slane %v916, 5
      %v1057 = vsel %vm983, %v1055, %v1056
      %v1058 = vrot.slane %v1056, 4
      %v1059 = vrot.slane %v917, 5
      %v1060 = vsel %vm983, %v1058, %v1059
      %v1061 = vrot.slane %v918, 5
      %v1062 = vrot.slane %v1061, 4
      %v1063 = vrot.slane %v919, 5
      %v1064 = vsel %vm983, %v1062, %v1063
      %v1065 = vrot.slane %v1063, 4
      %v1066 = vrot.slane %v920, 5
      %v1067 = vsel %vm983, %v1065, %v1066
      %v1068 = vrot.slane %v921, 5
      %v1069 = vrot.slane %v1068, 4
      %v1070 = vrot.slane %v922, 5
      %v1071 = vsel %vm983, %v1069, %v1070
      %v1072 = vrot.slane %v1070, 4
      %v1073 = vrot.slane %v923, 5
      %v1074 = vsel %vm983, %v1072, %v1073
      %v1075 = vrot.slane %v924, 5
      %v1076 = vrot.slane %v1075, 4
      %v1077 = vrot.slane %v925, 5
      %v1078 = vsel %vm983, %v1076, %v1077
      %v1079 = vrot.slane %v1077, 4
      %v1080 = vrot.slane %v926, 5
      %v1081 = vsel %vm983, %v1079, %v1080
      %v1082 = vrot.slane %v927, 5
      %v1083 = vrot.slane %v1082, 4
      %v1084 = vrot.slane %v928, 5
      %v1085 = vsel %vm983, %v1083, %v1084
      %v1086 = vrot.slane %v1084, 4
      %v1087 = vrot.slane %v929, 5
      %v1088 = vsel %vm983, %v1086, %v1087
      %v1089 = vrot.slane %v930, 5
      %v1090 = vrot.slane %v1089, 4
      %v1091 = vrot.slane %v931, 5
      %v1092 = vsel %vm983, %v1090, %v1091
      %v1093 = vrot.slane %v1091, 4
      %v1094 = vrot.slane %v932, 5
      %v1095 = vsel %vm983, %v1093, %v1094
      %1096 = vrot.lane.b32.xlu0 %v987, 8
      %v1097 = vpop.permute.xlu0 %1096
      %1098 = vrot.lane.b32.xlu0 %v990, 8
      %v1099 = vpop.permute.xlu0 %1098
      %1100 = vrot.lane.b32.xlu0 %v994, 8
      %v1101 = vpop.permute.xlu0 %1100
      %1102 = vrot.lane.b32.xlu0 %v997, 8
      %v1103 = vpop.permute.xlu0 %1102
      %1104 = vrot.lane.b32.xlu0 %v1001, 8
      %v1105 = vpop.permute.xlu0 %1104
      %1106 = vrot.lane.b32.xlu0 %v1004, 8
      %v1107 = vpop.permute.xlu0 %1106
      %1108 = vrot.lane.b32.xlu0 %v1008, 8
      %v1109 = vpop.permute.xlu0 %1108
      %1110 = vrot.lane.b32.xlu0 %v1011, 8
      %v1111 = vpop.permute.xlu0 %1110
      %1112 = vrot.lane.b32.xlu0 %v1015, 8
      %v1113 = vpop.permute.xlu0 %1112
      %1114 = vrot.lane.b32.xlu0 %v1018, 8
      %v1115 = vpop.permute.xlu0 %1114
      %1116 = vrot.lane.b32.xlu0 %v1022, 8
      %v1117 = vpop.permute.xlu0 %1116
      %1118 = vrot.lane.b32.xlu0 %v1025, 8
      %v1119 = vpop.permute.xlu0 %1118
      %1120 = vrot.lane.b32.xlu0 %v1029, 8
      %v1121 = vpop.permute.xlu0 %1120
      %1122 = vrot.lane.b32.xlu0 %v1032, 8
      %v1123 = vpop.permute.xlu0 %1122
      %1124 = vrot.lane.b32.xlu0 %v1036, 8
      %v1125 = vpop.permute.xlu0 %1124
      %1126 = vrot.lane.b32.xlu0 %v1039, 8
      %v1127 = vpop.permute.xlu0 %1126
      %1128 = vrot.lane.b32.xlu0 %v1043, 8
      %v1129 = vpop.permute.xlu0 %1128
      %1130 = vrot.lane.b32.xlu0 %v1046, 8
      %v1131 = vpop.permute.xlu0 %1130
      %1132 = vrot.lane.b32.xlu0 %v1050, 8
      %v1133 = vpop.permute.xlu0 %1132
      %1134 = vrot.lane.b32.xlu0 %v1053, 8
      %v1135 = vpop.permute.xlu0 %1134
      %1136 = vrot.lane.b32.xlu0 %v1057, 8
      %v1137 = vpop.permute.xlu0 %1136
      %1138 = vrot.lane.b32.xlu0 %v1060, 8
      %v1139 = vpop.permute.xlu0 %1138
      %1140 = vrot.lane.b32.xlu0 %v1064, 8
      %v1141 = vpop.permute.xlu0 %1140
      %1142 = vrot.lane.b32.xlu0 %v1067, 8
      %v1143 = vpop.permute.xlu0 %1142
      %1144 = vrot.lane.b32.xlu0 %v1071, 8
      %v1145 = vpop.permute.xlu0 %1144
      %1146 = vrot.lane.b32.xlu0 %v1074, 8
      %v1147 = vpop.permute.xlu0 %1146
      %1148 = vrot.lane.b32.xlu0 %v1078, 8
      %v1149 = vpop.permute.xlu0 %1148
      %1150 = vrot.lane.b32.xlu0 %v1081, 8
      %v1151 = vpop.permute.xlu0 %1150
      %1152 = vrot.lane.b32.xlu0 %v1085, 8
      %v1153 = vpop.permute.xlu0 %1152
      %1154 = vrot.lane.b32.xlu0 %v1088, 8
      %v1155 = vpop.permute.xlu0 %1154
      %1156 = vrot.lane.b32.xlu0 %v1092, 8
      %v1157 = vpop.permute.xlu0 %1156
      %1158 = vrot.lane.b32.xlu0 %v1095, 8
      %v1159 = vpop.permute.xlu0 %1158
      %vm1192 = vcmask 93248
      %1193 = vst.msk [vmem:[#allocation2] sm:$0xf] %vm1192, %v1097
      %1194 = vst.msk [vmem:[#allocation2 + $0x4] sm:$0xf] %vm1192, %v1099
      %1195 = vst.msk [vmem:[#allocation2 + $0x8] sm:$0xf] %vm1192, %v1101
      %1196 = vst.msk [vmem:[#allocation2 + $0xc] sm:$0xf] %vm1192, %v1103
      %1197 = vst.msk [vmem:[#allocation2 + $0x10] sm:$0xf] %vm1192, %v1105
      %1198 = vst.msk [vmem:[#allocation2 + $0x14] sm:$0xf] %vm1192, %v1107
      %1199 = vst.msk [vmem:[#allocation2 + $0x18] sm:$0xf] %vm1192, %v1109
      %1200 = vst.msk [vmem:[#allocation2 + $0x1c] sm:$0xf] %vm1192, %v1111
      %1201 = vst.msk [vmem:[#allocation2 + $0x20] sm:$0xf] %vm1192, %v1113
      %1202 = vst.msk [vmem:[#allocation2 + $0x24] sm:$0xf] %vm1192, %v1115
      %1203 = vst.msk [vmem:[#allocation2 + $0x28] sm:$0xf] %vm1192, %v1117
      %1204 = vst.msk [vmem:[#allocation2 + $0x2c] sm:$0xf] %vm1192, %v1119
      %1205 = vst.msk [vmem:[#allocation2 + $0x30] sm:$0xf] %vm1192, %v1121
      %1206 = vst.msk [vmem:[#allocation2 + $0x34] sm:$0xf] %vm1192, %v1123
      %1207 = vst.msk [vmem:[#allocation2 + $0x38] sm:$0xf] %vm1192, %v1125
      %1208 = vst.msk [vmem:[#allocation2 + $0x3c] sm:$0xf] %vm1192, %v1127
      %1209 = vst.msk [vmem:[#allocation2 + $0x40] sm:$0xf] %vm1192, %v1129
      %1210 = vst.msk [vmem:[#allocation2 + $0x44] sm:$0xf] %vm1192, %v1131
      %1211 = vst.msk [vmem:[#allocation2 + $0x48] sm:$0xf] %vm1192, %v1133
      %1212 = vst.msk [vmem:[#allocation2 + $0x4c] sm:$0xf] %vm1192, %v1135
      %1213 = vst.msk [vmem:[#allocation2 + $0x50] sm:$0xf] %vm1192, %v1137
      %1214 = vst.msk [vmem:[#allocation2 + $0x54] sm:$0xf] %vm1192, %v1139
      %1215 = vst.msk [vmem:[#allocation2 + $0x58] sm:$0xf] %vm1192, %v1141
      %1216 = vst.msk [vmem:[#allocation2 + $0x5c] sm:$0xf] %vm1192, %v1143
      %1217 = vst.msk [vmem:[#allocation2 + $0x60] sm:$0xf] %vm1192, %v1145
      %1218 = vst.msk [vmem:[#allocation2 + $0x64] sm:$0xf] %vm1192, %v1147
      %1219 = vst.msk [vmem:[#allocation2 + $0x68] sm:$0xf] %vm1192, %v1149
      %1220 = vst.msk [vmem:[#allocation2 + $0x6c] sm:$0xf] %vm1192, %v1151
      %1221 = vst.msk [vmem:[#allocation2 + $0x70] sm:$0xf] %vm1192, %v1153
      %1222 = vst.msk [vmem:[#allocation2 + $0x74] sm:$0xf] %vm1192, %v1155
      %1223 = vst.msk [vmem:[#allocation2 + $0x78] sm:$0xf] %vm1192, %v1157
      %1224 = vst.msk [vmem:[#allocation2 + $0x7c] sm:$0xf] %vm1192, %v1159
      %s1225 = scalar_lea.vmem %s233, 12
      %v1226 = vld [vmem:[%s1225] sm:$0xf]
      %v1227 = vld [vmem:[%s1225 + $0x4] sm:$0xf]
      %v1228 = vld [vmem:[%s1225 + $0xc] sm:$0xf]
      %v1229 = vld [vmem:[%s1225 + $0x10] sm:$0xf]
      %v1230 = vld [vmem:[%s1225 + $0x18] sm:$0xf]
      %v1231 = vld [vmem:[%s1225 + $0x1c] sm:$0xf]
      %v1232 = vld [vmem:[%s1225 + $0x24] sm:$0xf]
      %v1233 = vld [vmem:[%s1225 + $0x28] sm:$0xf]
      %v1234 = vld [vmem:[%s1225 + $0x30] sm:$0xf]
      %v1235 = vld [vmem:[%s1225 + $0x34] sm:$0xf]
      %v1236 = vld [vmem:[%s1225 + $0x3c] sm:$0xf]
      %v1237 = vld [vmem:[%s1225 + $0x40] sm:$0xf]
      %v1238 = vld [vmem:[%s1225 + $0x48] sm:$0xf]
      %v1239 = vld [vmem:[%s1225 + $0x4c] sm:$0xf]
      %v1240 = vld [vmem:[%s1225 + $0x54] sm:$0xf]
      %v1241 = vld [vmem:[%s1225 + $0x58] sm:$0xf]
      %v1242 = vld [vmem:[%s1225 + $0x60] sm:$0xf]
      %v1243 = vld [vmem:[%s1225 + $0x64] sm:$0xf]
      %v1244 = vld [vmem:[%s1225 + $0x6c] sm:$0xf]
      %v1245 = vld [vmem:[%s1225 + $0x70] sm:$0xf]
      %v1246 = vld [vmem:[%s1225 + $0x78] sm:$0xf]
      %v1247 = vld [vmem:[%s1225 + $0x7c] sm:$0xf]
      %v1248 = vld [vmem:[%s1225 + $0x84] sm:$0xf]
      %v1249 = vld [vmem:[%s1225 + $0x88] sm:$0xf]
      %v1250 = vld [vmem:[%s1225 + $0x90] sm:$0xf]
      %v1251 = vld [vmem:[%s1225 + $0x94] sm:$0xf]
      %v1252 = vld [vmem:[%s1225 + $0x9c] sm:$0xf]
      %v1253 = vld [vmem:[%s1225 + $0xa0] sm:$0xf]
      %v1254 = vld [vmem:[%s1225 + $0xa8] sm:$0xf]
      %v1255 = vld [vmem:[%s1225 + $0xac] sm:$0xf]
      %v1256 = vld [vmem:[%s1225 + $0xb4] sm:$0xf]
      %v1257 = vld [vmem:[%s1225 + $0xb8] sm:$0xf]
      %1290 = vrot.lane.b32.xlu0 %v1226, 12
      %v1291 = vpop.permute.xlu0 %1290
      %1292 = vrot.lane.b32.xlu0 %v1227, 12
      %v1293 = vpop.permute.xlu0 %1292
      %1294 = vrot.lane.b32.xlu0 %v1228, 12
      %v1295 = vpop.permute.xlu0 %1294
      %1296 = vrot.lane.b32.xlu0 %v1229, 12
      %v1297 = vpop.permute.xlu0 %1296
      %1298 = vrot.lane.b32.xlu0 %v1230, 12
      %v1299 = vpop.permute.xlu0 %1298
      %1300 = vrot.lane.b32.xlu0 %v1231, 12
      %v1301 = vpop.permute.xlu0 %1300
      %1302 = vrot.lane.b32.xlu0 %v1232, 12
      %v1303 = vpop.permute.xlu0 %1302
      %1304 = vrot.lane.b32.xlu0 %v1233, 12
      %v1305 = vpop.permute.xlu0 %1304
      %1306 = vrot.lane.b32.xlu0 %v1234, 12
      %v1307 = vpop.permute.xlu0 %1306
      %1308 = vrot.lane.b32.xlu0 %v1235, 12
      %v1309 = vpop.permute.xlu0 %1308
      %1310 = vrot.lane.b32.xlu0 %v1236, 12
      %v1311 = vpop.permute.xlu0 %1310
      %1312 = vrot.lane.b32.xlu0 %v1237, 12
      %v1313 = vpop.permute.xlu0 %1312
      %1314 = vrot.lane.b32.xlu0 %v1238, 12
      %v1315 = vpop.permute.xlu0 %1314
      %1316 = vrot.lane.b32.xlu0 %v1239, 12
      %v1317 = vpop.permute.xlu0 %1316
      %1318 = vrot.lane.b32.xlu0 %v1240, 12
      %v1319 = vpop.permute.xlu0 %1318
      %1320 = vrot.lane.b32.xlu0 %v1241, 12
      %v1321 = vpop.permute.xlu0 %1320
      %1322 = vrot.lane.b32.xlu0 %v1242, 12
      %v1323 = vpop.permute.xlu0 %1322
      %1324 = vrot.lane.b32.xlu0 %v1243, 12
      %v1325 = vpop.permute.xlu0 %1324
      %1326 = vrot.lane.b32.xlu0 %v1244, 12
      %v1327 = vpop.permute.xlu0 %1326
      %1328 = vrot.lane.b32.xlu0 %v1245, 12
      %v1329 = vpop.permute.xlu0 %1328
      %1330 = vrot.lane.b32.xlu0 %v1246, 12
      %v1331 = vpop.permute.xlu0 %1330
      %1332 = vrot.lane.b32.xlu0 %v1247, 12
      %v1333 = vpop.permute.xlu0 %1332
      %1334 = vrot.lane.b32.xlu0 %v1248, 12
      %v1335 = vpop.permute.xlu0 %1334
      %1336 = vrot.lane.b32.xlu0 %v1249, 12
      %v1337 = vpop.permute.xlu0 %1336
      %1338 = vrot.lane.b32.xlu0 %v1250, 12
      %v1339 = vpop.permute.xlu0 %1338
      %1340 = vrot.lane.b32.xlu0 %v1251, 12
      %v1341 = vpop.permute.xlu0 %1340
      %1342 = vrot.lane.b32.xlu0 %v1252, 12
      %v1343 = vpop.permute.xlu0 %1342
      %1344 = vrot.lane.b32.xlu0 %v1253, 12
      %v1345 = vpop.permute.xlu0 %1344
      %1346 = vrot.lane.b32.xlu0 %v1254, 12
      %v1347 = vpop.permute.xlu0 %1346
      %1348 = vrot.lane.b32.xlu0 %v1255, 12
      %v1349 = vpop.permute.xlu0 %1348
      %1350 = vrot.lane.b32.xlu0 %v1256, 12
      %v1351 = vpop.permute.xlu0 %1350
      %1352 = vrot.lane.b32.xlu0 %v1257, 12
      %v1353 = vpop.permute.xlu0 %1352
      %vm1386 = vcmask 126048
      %1387 = vst.msk [vmem:[#allocation2] sm:$0xf] %vm1386, %v1291
      %1388 = vst.msk [vmem:[#allocation2 + $0x4] sm:$0xf] %vm1386, %v1293
      %1389 = vst.msk [vmem:[#allocation2 + $0x8] sm:$0xf] %vm1386, %v1295
      %1390 = vst.msk [vmem:[#allocation2 + $0xc] sm:$0xf] %vm1386, %v1297
      %1391 = vst.msk [vmem:[#allocation2 + $0x10] sm:$0xf] %vm1386, %v1299
      %1392 = vst.msk [vmem:[#allocation2 + $0x14] sm:$0xf] %vm1386, %v1301
      %1393 = vst.msk [vmem:[#allocation2 + $0x18] sm:$0xf] %vm1386, %v1303
      %1394 = vst.msk [vmem:[#allocation2 + $0x1c] sm:$0xf] %vm1386, %v1305
      %1395 = vst.msk [vmem:[#allocation2 + $0x20] sm:$0xf] %vm1386, %v1307
      %1396 = vst.msk [vmem:[#allocation2 + $0x24] sm:$0xf] %vm1386, %v1309
      %1397 = vst.msk [vmem:[#allocation2 + $0x28] sm:$0xf] %vm1386, %v1311
      %1398 = vst.msk [vmem:[#allocation2 + $0x2c] sm:$0xf] %vm1386, %v1313
      %1399 = vst.msk [vmem:[#allocation2 + $0x30] sm:$0xf] %vm1386, %v1315
      %1400 = vst.msk [vmem:[#allocation2 + $0x34] sm:$0xf] %vm1386, %v1317
      %1401 = vst.msk [vmem:[#allocation2 + $0x38] sm:$0xf] %vm1386, %v1319
      %1402 = vst.msk [vmem:[#allocation2 + $0x3c] sm:$0xf] %vm1386, %v1321
      %1403 = vst.msk [vmem:[#allocation2 + $0x40] sm:$0xf] %vm1386, %v1323
      %1404 = vst.msk [vmem:[#allocation2 + $0x44] sm:$0xf] %vm1386, %v1325
      %1405 = vst.msk [vmem:[#allocation2 + $0x48] sm:$0xf] %vm1386, %v1327
      %1406 = vst.msk [vmem:[#allocation2 + $0x4c] sm:$0xf] %vm1386, %v1329
      %1407 = vst.msk [vmem:[#allocation2 + $0x50] sm:$0xf] %vm1386, %v1331
      %1408 = vst.msk [vmem:[#allocation2 + $0x54] sm:$0xf] %vm1386, %v1333
      %1409 = vst.msk [vmem:[#allocation2 + $0x58] sm:$0xf] %vm1386, %v1335
      %1410 = vst.msk [vmem:[#allocation2 + $0x5c] sm:$0xf] %vm1386, %v1337
      %1411 = vst.msk [vmem:[#allocation2 + $0x60] sm:$0xf] %vm1386, %v1339
      %1412 = vst.msk [vmem:[#allocation2 + $0x64] sm:$0xf] %vm1386, %v1341
      %1413 = vst.msk [vmem:[#allocation2 + $0x68] sm:$0xf] %vm1386, %v1343
      %1414 = vst.msk [vmem:[#allocation2 + $0x6c] sm:$0xf] %vm1386, %v1345
      %1415 = vst.msk [vmem:[#allocation2 + $0x70] sm:$0xf] %vm1386, %v1347
      %1416 = vst.msk [vmem:[#allocation2 + $0x74] sm:$0xf] %vm1386, %v1349
      %1417 = vst.msk [vmem:[#allocation2 + $0x78] sm:$0xf] %vm1386, %v1351
      %1418 = vst.msk [vmem:[#allocation2 + $0x7c] sm:$0xf] %vm1386, %v1353
      %v1419 = vld [vmem:[%s1225] sm:$0xf]
      %v1420 = vld [vmem:[%s1225 + $0x4] sm:$0xf]
      %v1421 = vld [vmem:[%s1225 + $0x8] sm:$0x1]
      %v1422 = vld [vmem:[%s1225 + $0xc] sm:$0xf]
      %v1423 = vld [vmem:[%s1225 + $0x10] sm:$0xf]
      %v1424 = vld [vmem:[%s1225 + $0x14] sm:$0x1]
      %v1425 = vld [vmem:[%s1225 + $0x18] sm:$0xf]
      %v1426 = vld [vmem:[%s1225 + $0x1c] sm:$0xf]
      %v1427 = vld [vmem:[%s1225 + $0x20] sm:$0x1]
      %v1428 = vld [vmem:[%s1225 + $0x24] sm:$0xf]
      %v1429 = vld [vmem:[%s1225 + $0x28] sm:$0xf]
      %v1430 = vld [vmem:[%s1225 + $0x2c] sm:$0x1]
      %v1431 = vld [vmem:[%s1225 + $0x30] sm:$0xf]
      %v1432 = vld [vmem:[%s1225 + $0x34] sm:$0xf]
      %v1433 = vld [vmem:[%s1225 + $0x38] sm:$0x1]
      %v1434 = vld [vmem:[%s1225 + $0x3c] sm:$0xf]
      %v1435 = vld [vmem:[%s1225 + $0x40] sm:$0xf]
      %v1436 = vld [vmem:[%s1225 + $0x44] sm:$0x1]
      %v1437 = vld [vmem:[%s1225 + $0x48] sm:$0xf]
      %v1438 = vld [vmem:[%s1225 + $0x4c] sm:$0xf]
      %v1439 = vld [vmem:[%s1225 + $0x50] sm:$0x1]
      %v1440 = vld [vmem:[%s1225 + $0x54] sm:$0xf]
      %v1441 = vld [vmem:[%s1225 + $0x58] sm:$0xf]
      %v1442 = vld [vmem:[%s1225 + $0x5c] sm:$0x1]
      %v1443 = vld [vmem:[%s1225 + $0x60] sm:$0xf]
      %v1444 = vld [vmem:[%s1225 + $0x64] sm:$0xf]
      %v1445 = vld [vmem:[%s1225 + $0x68] sm:$0x1]
      %v1446 = vld [vmem:[%s1225 + $0x6c] sm:$0xf]
      %v1447 = vld [vmem:[%s1225 + $0x70] sm:$0xf]
      %v1448 = vld [vmem:[%s1225 + $0x74] sm:$0x1]
      %v1449 = vld [vmem:[%s1225 + $0x78] sm:$0xf]
      %v1450 = vld [vmem:[%s1225 + $0x7c] sm:$0xf]
      %v1451 = vld [vmem:[%s1225 + $0x80] sm:$0x1]
      %v1452 = vld [vmem:[%s1225 + $0x84] sm:$0xf]
      %v1453 = vld [vmem:[%s1225 + $0x88] sm:$0xf]
      %v1454 = vld [vmem:[%s1225 + $0x8c] sm:$0x1]
      %v1455 = vld [vmem:[%s1225 + $0x90] sm:$0xf]
      %v1456 = vld [vmem:[%s1225 + $0x94] sm:$0xf]
      %v1457 = vld [vmem:[%s1225 + $0x98] sm:$0x1]
      %v1458 = vld [vmem:[%s1225 + $0x9c] sm:$0xf]
      %v1459 = vld [vmem:[%s1225 + $0xa0] sm:$0xf]
      %v1460 = vld [vmem:[%s1225 + $0xa4] sm:$0x1]
      %v1461 = vld [vmem:[%s1225 + $0xa8] sm:$0xf]
      %v1462 = vld [vmem:[%s1225 + $0xac] sm:$0xf]
      %v1463 = vld [vmem:[%s1225 + $0xb0] sm:$0x1]
      %v1464 = vld [vmem:[%s1225 + $0xb4] sm:$0xf]
      %v1465 = vld [vmem:[%s1225 + $0xb8] sm:$0xf]
      %v1466 = vld [vmem:[%s1225 + $0xbc] sm:$0x1]
      %v1468 = vshrl.u32 %v1419, 16
      %v1470 = vrot.slane %v1468, 4
      %v1471 = vshll.u32 %v1419, 16
      %v1473 = vrot.slane %v1471, 5
      %v1474 = vor.u32 %v1470, %v1473
      %v1475 = vrot.slane %v1474, 4
      %v1477 = vshll.u32 %v1420, 16
      %v1479 = vrot.slane %v1477, 5
      %v1480 = vsel %vm371, %v1475, %v1479
      %v1481 = vshrl.u32 %v1420, 16
      %v1483 = vrot.slane %v1481, 4
      %v1484 = vor.u32 %v1483, %v1479
      %v1485 = vrot.slane %v1484, 4
      %v1487 = vshll.u32 %v1421, 16
      %v1489 = vrot.slane %v1487, 5
      %v1490 = vsel %vm371, %v1485, %v1489
      %v1492 = vshrl.u32 %v1422, 16
      %v1494 = vrot.slane %v1492, 4
      %v1495 = vshll.u32 %v1422, 16
      %v1497 = vrot.slane %v1495, 5
      %v1498 = vor.u32 %v1494, %v1497
      %v1499 = vrot.slane %v1498, 4
      %v1501 = vshll.u32 %v1423, 16
      %v1503 = vrot.slane %v1501, 5
      %v1504 = vsel %vm371, %v1499, %v1503
      %v1505 = vshrl.u32 %v1423, 16
      %v1507 = vrot.slane %v1505, 4
      %v1508 = vor.u32 %v1507, %v1503
      %v1509 = vrot.slane %v1508, 4
      %v1511 = vshll.u32 %v1424, 16
      %v1513 = vrot.slane %v1511, 5
      %v1514 = vsel %vm371, %v1509, %v1513
      %v1516 = vshrl.u32 %v1425, 16
      %v1518 = vrot.slane %v1516, 4
      %v1519 = vshll.u32 %v1425, 16
      %v1521 = vrot.slane %v1519, 5
      %v1522 = vor.u32 %v1518, %v1521
      %v1523 = vrot.slane %v1522, 4
      %v1525 = vshll.u32 %v1426, 16
      %v1527 = vrot.slane %v1525, 5
      %v1528 = vsel %vm371, %v1523, %v1527
      %v1529 = vshrl.u32 %v1426, 16
      %v1531 = vrot.slane %v1529, 4
      %v1532 = vor.u32 %v1531, %v1527
      %v1533 = vrot.slane %v1532, 4
      %v1535 = vshll.u32 %v1427, 16
      %v1537 = vrot.slane %v1535, 5
      %v1538 = vsel %vm371, %v1533, %v1537
      %v1540 = vshrl.u32 %v1428, 16
      %v1542 = vrot.slane %v1540, 4
      %v1543 = vshll.u32 %v1428, 16
      %v1545 = vrot.slane %v1543, 5
      %v1546 = vor.u32 %v1542, %v1545
      %v1547 = vrot.slane %v1546, 4
      %v1549 = vshll.u32 %v1429, 16
      %v1551 = vrot.slane %v1549, 5
      %v1552 = vsel %vm371, %v1547, %v1551
      %v1553 = vshrl.u32 %v1429, 16
      %v1555 = vrot.slane %v1553, 4
      %v1556 = vor.u32 %v1555, %v1551
      %v1557 = vrot.slane %v1556, 4
      %v1559 = vshll.u32 %v1430, 16
      %v1561 = vrot.slane %v1559, 5
      %v1562 = vsel %vm371, %v1557, %v1561
      %v1564 = vshrl.u32 %v1431, 16
      %v1566 = vrot.slane %v1564, 4
      %v1567 = vshll.u32 %v1431, 16
      %v1569 = vrot.slane %v1567, 5
      %v1570 = vor.u32 %v1566, %v1569
      %v1571 = vrot.slane %v1570, 4
      %v1573 = vshll.u32 %v1432, 16
      %v1575 = vrot.slane %v1573, 5
      %v1576 = vsel %vm371, %v1571, %v1575
      %v1577 = vshrl.u32 %v1432, 16
      %v1579 = vrot.slane %v1577, 4
      %v1580 = vor.u32 %v1579, %v1575
      %v1581 = vrot.slane %v1580, 4
      %v1583 = vshll.u32 %v1433, 16
      %v1585 = vrot.slane %v1583, 5
      %v1586 = vsel %vm371, %v1581, %v1585
      %v1588 = vshrl.u32 %v1434, 16
      %v1590 = vrot.slane %v1588, 4
      %v1591 = vshll.u32 %v1434, 16
      %v1593 = vrot.slane %v1591, 5
      %v1594 = vor.u32 %v1590, %v1593
      %v1595 = vrot.slane %v1594, 4
      %v1597 = vshll.u32 %v1435, 16
      %v1599 = vrot.slane %v1597, 5
      %v1600 = vsel %vm371, %v1595, %v1599
      %v1601 = vshrl.u32 %v1435, 16
      %v1603 = vrot.slane %v1601, 4
      %v1604 = vor.u32 %v1603, %v1599
      %v1605 = vrot.slane %v1604, 4
      %v1607 = vshll.u32 %v1436, 16
      %v1609 = vrot.slane %v1607, 5
      %v1610 = vsel %vm371, %v1605, %v1609
      %v1612 = vshrl.u32 %v1437, 16
      %v1614 = vrot.slane %v1612, 4
      %v1615 = vshll.u32 %v1437, 16
      %v1617 = vrot.slane %v1615, 5
      %v1618 = vor.u32 %v1614, %v1617
      %v1619 = vrot.slane %v1618, 4
      %v1621 = vshll.u32 %v1438, 16
      %v1623 = vrot.slane %v1621, 5
      %v1624 = vsel %vm371, %v1619, %v1623
      %v1625 = vshrl.u32 %v1438, 16
      %v1627 = vrot.slane %v1625, 4
      %v1628 = vor.u32 %v1627, %v1623
      %v1629 = vrot.slane %v1628, 4
      %v1631 = vshll.u32 %v1439, 16
      %v1633 = vrot.slane %v1631, 5
      %v1634 = vsel %vm371, %v1629, %v1633
      %v1636 = vshrl.u32 %v1440, 16
      %v1638 = vrot.slane %v1636, 4
      %v1639 = vshll.u32 %v1440, 16
      %v1641 = vrot.slane %v1639, 5
      %v1642 = vor.u32 %v1638, %v1641
      %v1643 = vrot.slane %v1642, 4
      %v1645 = vshll.u32 %v1441, 16
      %v1647 = vrot.slane %v1645, 5
      %v1648 = vsel %vm371, %v1643, %v1647
      %v1649 = vshrl.u32 %v1441, 16
      %v1651 = vrot.slane %v1649, 4
      %v1652 = vor.u32 %v1651, %v1647
      %v1653 = vrot.slane %v1652, 4
      %v1655 = vshll.u32 %v1442, 16
      %v1657 = vrot.slane %v1655, 5
      %v1658 = vsel %vm371, %v1653, %v1657
      %v1660 = vshrl.u32 %v1443, 16
      %v1662 = vrot.slane %v1660, 4
      %v1663 = vshll.u32 %v1443, 16
      %v1665 = vrot.slane %v1663, 5
      %v1666 = vor.u32 %v1662, %v1665
      %v1667 = vrot.slane %v1666, 4
      %v1669 = vshll.u32 %v1444, 16
      %v1671 = vrot.slane %v1669, 5
      %v1672 = vsel %vm371, %v1667, %v1671
      %v1673 = vshrl.u32 %v1444, 16
      %v1675 = vrot.slane %v1673, 4
      %v1676 = vor.u32 %v1675, %v1671
      %v1677 = vrot.slane %v1676, 4
      %v1679 = vshll.u32 %v1445, 16
      %v1681 = vrot.slane %v1679, 5
      %v1682 = vsel %vm371, %v1677, %v1681
      %v1684 = vshrl.u32 %v1446, 16
      %v1686 = vrot.slane %v1684, 4
      %v1687 = vshll.u32 %v1446, 16
      %v1689 = vrot.slane %v1687, 5
      %v1690 = vor.u32 %v1686, %v1689
      %v1691 = vrot.slane %v1690, 4
      %v1693 = vshll.u32 %v1447, 16
      %v1695 = vrot.slane %v1693, 5
      %v1696 = vsel %vm371, %v1691, %v1695
      %v1697 = vshrl.u32 %v1447, 16
      %v1699 = vrot.slane %v1697, 4
      %v1700 = vor.u32 %v1699, %v1695
      %v1701 = vrot.slane %v1700, 4
      %v1703 = vshll.u32 %v1448, 16
      %v1705 = vrot.slane %v1703, 5
      %v1706 = vsel %vm371, %v1701, %v1705
      %v1708 = vshrl.u32 %v1449, 16
      %v1710 = vrot.slane %v1708, 4
      %v1711 = vshll.u32 %v1449, 16
      %v1713 = vrot.slane %v1711, 5
      %v1714 = vor.u32 %v1710, %v1713
      %v1715 = vrot.slane %v1714, 4
      %v1717 = vshll.u32 %v1450, 16
      %v1719 = vrot.slane %v1717, 5
      %v1720 = vsel %vm371, %v1715, %v1719
      %v1721 = vshrl.u32 %v1450, 16
      %v1723 = vrot.slane %v1721, 4
      %v1724 = vor.u32 %v1723, %v1719
      %v1725 = vrot.slane %v1724, 4
      %v1727 = vshll.u32 %v1451, 16
      %v1729 = vrot.slane %v1727, 5
      %v1730 = vsel %vm371, %v1725, %v1729
      %v1732 = vshrl.u32 %v1452, 16
      %v1734 = vrot.slane %v1732, 4
      %v1735 = vshll.u32 %v1452, 16
      %v1737 = vrot.slane %v1735, 5
      %v1738 = vor.u32 %v1734, %v1737
      %v1739 = vrot.slane %v1738, 4
      %v1741 = vshll.u32 %v1453, 16
      %v1743 = vrot.slane %v1741, 5
      %v1744 = vsel %vm371, %v1739, %v1743
      %v1745 = vshrl.u32 %v1453, 16
      %v1747 = vrot.slane %v1745, 4
      %v1748 = vor.u32 %v1747, %v1743
      %v1749 = vrot.slane %v1748, 4
      %v1751 = vshll.u32 %v1454, 16
      %v1753 = vrot.slane %v1751, 5
      %v1754 = vsel %vm371, %v1749, %v1753
      %v1756 = vshrl.u32 %v1455, 16
      %v1758 = vrot.slane %v1756, 4
      %v1759 = vshll.u32 %v1455, 16
      %v1761 = vrot.slane %v1759, 5
      %v1762 = vor.u32 %v1758, %v1761
      %v1763 = vrot.slane %v1762, 4
      %v1765 = vshll.u32 %v1456, 16
      %v1767 = vrot.slane %v1765, 5
      %v1768 = vsel %vm371, %v1763, %v1767
      %v1769 = vshrl.u32 %v1456, 16
      %v1771 = vrot.slane %v1769, 4
      %v1772 = vor.u32 %v1771, %v1767
      %v1773 = vrot.slane %v1772, 4
      %v1775 = vshll.u32 %v1457, 16
      %v1777 = vrot.slane %v1775, 5
      %v1778 = vsel %vm371, %v1773, %v1777
      %v1780 = vshrl.u32 %v1458, 16
      %v1782 = vrot.slane %v1780, 4
      %v1783 = vshll.u32 %v1458, 16
      %v1785 = vrot.slane %v1783, 5
      %v1786 = vor.u32 %v1782, %v1785
      %v1787 = vrot.slane %v1786, 4
      %v1789 = vshll.u32 %v1459, 16
      %v1791 = vrot.slane %v1789, 5
      %v1792 = vsel %vm371, %v1787, %v1791
      %v1793 = vshrl.u32 %v1459, 16
      %v1795 = vrot.slane %v1793, 4
      %v1796 = vor.u32 %v1795, %v1791
      %v1797 = vrot.slane %v1796, 4
      %v1799 = vshll.u32 %v1460, 16
      %v1801 = vrot.slane %v1799, 5
      %v1802 = vsel %vm371, %v1797, %v1801
      %v1804 = vshrl.u32 %v1461, 16
      %v1806 = vrot.slane %v1804, 4
      %v1807 = vshll.u32 %v1461, 16
      %v1809 = vrot.slane %v1807, 5
      %v1810 = vor.u32 %v1806, %v1809
      %v1811 = vrot.slane %v1810, 4
      %v1813 = vshll.u32 %v1462, 16
      %v1815 = vrot.slane %v1813, 5
      %v1816 = vsel %vm371, %v1811, %v1815
      %v1817 = vshrl.u32 %v1462, 16
      %v1819 = vrot.slane %v1817, 4
      %v1820 = vor.u32 %v1819, %v1815
      %v1821 = vrot.slane %v1820, 4
      %v1823 = vshll.u32 %v1463, 16
      %v1825 = vrot.slane %v1823, 5
      %v1826 = vsel %vm371, %v1821, %v1825
      %v1828 = vshrl.u32 %v1464, 16
      %v1830 = vrot.slane %v1828, 4
      %v1831 = vshll.u32 %v1464, 16
      %v1833 = vrot.slane %v1831, 5
      %v1834 = vor.u32 %v1830, %v1833
      %v1835 = vrot.slane %v1834, 4
      %v1837 = vshll.u32 %v1465, 16
      %v1839 = vrot.slane %v1837, 5
      %v1840 = vsel %vm371, %v1835, %v1839
      %v1841 = vshrl.u32 %v1465, 16
      %v1843 = vrot.slane %v1841, 4
      %v1844 = vor.u32 %v1843, %v1839
      %v1845 = vrot.slane %v1844, 4
      %v1847 = vshll.u32 %v1466, 16
      %v1849 = vrot.slane %v1847, 5
      %v1850 = vsel %vm371, %v1845, %v1849
      %1851 = vrot.lane.b32.xlu0 %v1480, 16
      %v1852 = vpop.permute.xlu0 %1851
      %1853 = vrot.lane.b32.xlu0 %v1490, 16
      %v1854 = vpop.permute.xlu0 %1853
      %1855 = vrot.lane.b32.xlu0 %v1504, 16
      %v1856 = vpop.permute.xlu0 %1855
      %1857 = vrot.lane.b32.xlu0 %v1514, 16
      %v1858 = vpop.permute.xlu0 %1857
      %1859 = vrot.lane.b32.xlu0 %v1528, 16
      %v1860 = vpop.permute.xlu0 %1859
      %1861 = vrot.lane.b32.xlu0 %v1538, 16
      %v1862 = vpop.permute.xlu0 %1861
      %1863 = vrot.lane.b32.xlu0 %v1552, 16
      %v1864 = vpop.permute.xlu0 %1863
      %1865 = vrot.lane.b32.xlu0 %v1562, 16
      %v1866 = vpop.permute.xlu0 %1865
      %1867 = vrot.lane.b32.xlu0 %v1576, 16
      %v1868 = vpop.permute.xlu0 %1867
      %1869 = vrot.lane.b32.xlu0 %v1586, 16
      %v1870 = vpop.permute.xlu0 %1869
      %1871 = vrot.lane.b32.xlu0 %v1600, 16
      %v1872 = vpop.permute.xlu0 %1871
      %1873 = vrot.lane.b32.xlu0 %v1610, 16
      %v1874 = vpop.permute.xlu0 %1873
      %1875 = vrot.lane.b32.xlu0 %v1624, 16
      %v1876 = vpop.permute.xlu0 %1875
      %1877 = vrot.lane.b32.xlu0 %v1634, 16
      %v1878 = vpop.permute.xlu0 %1877
      %1879 = vrot.lane.b32.xlu0 %v1648, 16
      %v1880 = vpop.permute.xlu0 %1879
      %1881 = vrot.lane.b32.xlu0 %v1658, 16
      %v1882 = vpop.permute.xlu0 %1881
      %1883 = vrot.lane.b32.xlu0 %v1672, 16
      %v1884 = vpop.permute.xlu0 %1883
      %1885 = vrot.lane.b32.xlu0 %v1682, 16
      %v1886 = vpop.permute.xlu0 %1885
      %1887 = vrot.lane.b32.xlu0 %v1696, 16
      %v1888 = vpop.permute.xlu0 %1887
      %1889 = vrot.lane.b32.xlu0 %v1706, 16
      %v1890 = vpop.permute.xlu0 %1889
      %1891 = vrot.lane.b32.xlu0 %v1720, 16
      %v1892 = vpop.permute.xlu0 %1891
      %1893 = vrot.lane.b32.xlu0 %v1730, 16
      %v1894 = vpop.permute.xlu0 %1893
      %1895 = vrot.lane.b32.xlu0 %v1744, 16
      %v1896 = vpop.permute.xlu0 %1895
      %1897 = vrot.lane.b32.xlu0 %v1754, 16
      %v1898 = vpop.permute.xlu0 %1897
      %1899 = vrot.lane.b32.xlu0 %v1768, 16
      %v1900 = vpop.permute.xlu0 %1899
      %1901 = vrot.lane.b32.xlu0 %v1778, 16
      %v1902 = vpop.permute.xlu0 %1901
      %1903 = vrot.lane.b32.xlu0 %v1792, 16
      %v1904 = vpop.permute.xlu0 %1903
      %1905 = vrot.lane.b32.xlu0 %v1802, 16
      %v1906 = vpop.permute.xlu0 %1905
      %1907 = vrot.lane.b32.xlu0 %v1816, 16
      %v1908 = vpop.permute.xlu0 %1907
      %1909 = vrot.lane.b32.xlu0 %v1826, 16
      %v1910 = vpop.permute.xlu0 %1909
      %1911 = vrot.lane.b32.xlu0 %v1840, 16
      %v1912 = vpop.permute.xlu0 %1911
      %1913 = vrot.lane.b32.xlu0 %v1850, 16
      %v1914 = vpop.permute.xlu0 %1913
      %vm1947 = vcmask 158848
      %1948 = vst.msk [vmem:[#allocation2] sm:$0xf] %vm1947, %v1852
      %1949 = vst.msk [vmem:[#allocation2 + $0x4] sm:$0xf] %vm1947, %v1854
      %1950 = vst.msk [vmem:[#allocation2 + $0x8] sm:$0xf] %vm1947, %v1856
      %1951 = vst.msk [vmem:[#allocation2 + $0xc] sm:$0xf] %vm1947, %v1858
      %1952 = vst.msk [vmem:[#allocation2 + $0x10] sm:$0xf] %vm1947, %v1860
      %1953 = vst.msk [vmem:[#allocation2 + $0x14] sm:$0xf] %vm1947, %v1862
      %1954 = vst.msk [vmem:[#allocation2 + $0x18] sm:$0xf] %vm1947, %v1864
      %1955 = vst.msk [vmem:[#allocation2 + $0x1c] sm:$0xf] %vm1947, %v1866
      %1956 = vst.msk [vmem:[#allocation2 + $0x20] sm:$0xf] %vm1947, %v1868
      %1957 = vst.msk [vmem:[#allocation2 + $0x24] sm:$0xf] %vm1947, %v1870
      %1958 = vst.msk [vmem:[#allocation2 + $0x28] sm:$0xf] %vm1947, %v1872
      %1959 = vst.msk [vmem:[#allocation2 + $0x2c] sm:$0xf] %vm1947, %v1874
      %1960 = vst.msk [vmem:[#allocation2 + $0x30] sm:$0xf] %vm1947, %v1876
      %1961 = vst.msk [vmem:[#allocation2 + $0x34] sm:$0xf] %vm1947, %v1878
      %1962 = vst.msk [vmem:[#allocation2 + $0x38] sm:$0xf] %vm1947, %v1880
      %1963 = vst.msk [vmem:[#allocation2 + $0x3c] sm:$0xf] %vm1947, %v1882
      %1964 = vst.msk [vmem:[#allocation2 + $0x40] sm:$0xf] %vm1947, %v1884
      %1965 = vst.msk [vmem:[#allocation2 + $0x44] sm:$0xf] %vm1947, %v1886
      %1966 = vst.msk [vmem:[#allocation2 + $0x48] sm:$0xf] %vm1947, %v1888
      %1967 = vst.msk [vmem:[#allocation2 + $0x4c] sm:$0xf] %vm1947, %v1890
      %1968 = vst.msk [vmem:[#allocation2 + $0x50] sm:$0xf] %vm1947, %v1892
      %1969 = vst.msk [vmem:[#allocation2 + $0x54] sm:$0xf] %vm1947, %v1894
      %1970 = vst.msk [vmem:[#allocation2 + $0x58] sm:$0xf] %vm1947, %v1896
      %1971 = vst.msk [vmem:[#allocation2 + $0x5c] sm:$0xf] %vm1947, %v1898
      %1972 = vst.msk [vmem:[#allocation2 + $0x60] sm:$0xf] %vm1947, %v1900
      %1973 = vst.msk [vmem:[#allocation2 + $0x64] sm:$0xf] %vm1947, %v1902
      %1974 = vst.msk [vmem:[#allocation2 + $0x68] sm:$0xf] %vm1947, %v1904
      %1975 = vst.msk [vmem:[#allocation2 + $0x6c] sm:$0xf] %vm1947, %v1906
      %1976 = vst.msk [vmem:[#allocation2 + $0x70] sm:$0xf] %vm1947, %v1908
      %1977 = vst.msk [vmem:[#allocation2 + $0x74] sm:$0xf] %vm1947, %v1910
      %1978 = vst.msk [vmem:[#allocation2 + $0x78] sm:$0xf] %vm1947, %v1912
      %1979 = vst.msk [vmem:[#allocation2 + $0x7c] sm:$0xf] %vm1947, %v1914
      %v1980 = vld [vmem:[%s1225] sm:$0xe]
      %v1981 = vld [vmem:[%s1225 + $0x4] sm:$0xf]
      %v1982 = vld [vmem:[%s1225 + $0x8] sm:$0x1]
      %v1983 = vld [vmem:[%s1225 + $0xc] sm:$0xe]
      %v1984 = vld [vmem:[%s1225 + $0x10] sm:$0xf]
      %v1985 = vld [vmem:[%s1225 + $0x14] sm:$0x1]
      %v1986 = vld [vmem:[%s1225 + $0x18] sm:$0xe]
      %v1987 = vld [vmem:[%s1225 + $0x1c] sm:$0xf]
      %v1988 = vld [vmem:[%s1225 + $0x20] sm:$0x1]
      %v1989 = vld [vmem:[%s1225 + $0x24] sm:$0xe]
      %v1990 = vld [vmem:[%s1225 + $0x28] sm:$0xf]
      %v1991 = vld [vmem:[%s1225 + $0x2c] sm:$0x1]
      %v1992 = vld [vmem:[%s1225 + $0x30] sm:$0xe]
      %v1993 = vld [vmem:[%s1225 + $0x34] sm:$0xf]
      %v1994 = vld [vmem:[%s1225 + $0x38] sm:$0x1]
      %v1995 = vld [vmem:[%s1225 + $0x3c] sm:$0xe]
      %v1996 = vld [vmem:[%s1225 + $0x40] sm:$0xf]
      %v1997 = vld [vmem:[%s1225 + $0x44] sm:$0x1]
      %v1998 = vld [vmem:[%s1225 + $0x48] sm:$0xe]
      %v1999 = vld [vmem:[%s1225 + $0x4c] sm:$0xf]
      %v2000 = vld [vmem:[%s1225 + $0x50] sm:$0x1]
      %v2001 = vld [vmem:[%s1225 + $0x54] sm:$0xe]
      %v2002 = vld [vmem:[%s1225 + $0x58] sm:$0xf]
      %v2003 = vld [vmem:[%s1225 + $0x5c] sm:$0x1]
      %v2004 = vld [vmem:[%s1225 + $0x60] sm:$0xe]
      %v2005 = vld [vmem:[%s1225 + $0x64] sm:$0xf]
      %v2006 = vld [vmem:[%s1225 + $0x68] sm:$0x1]
      %v2007 = vld [vmem:[%s1225 + $0x6c] sm:$0xe]
      %v2008 = vld [vmem:[%s1225 + $0x70] sm:$0xf]
      %v2009 = vld [vmem:[%s1225 + $0x74] sm:$0x1]
      %v2010 = vld [vmem:[%s1225 + $0x78] sm:$0xe]
      %v2011 = vld [vmem:[%s1225 + $0x7c] sm:$0xf]
      %v2012 = vld [vmem:[%s1225 + $0x80] sm:$0x1]
      %v2013 = vld [vmem:[%s1225 + $0x84] sm:$0xe]
      %v2014 = vld [vmem:[%s1225 + $0x88] sm:$0xf]
      %v2015 = vld [vmem:[%s1225 + $0x8c] sm:$0x1]
      %v2016 = vld [vmem:[%s1225 + $0x90] sm:$0xe]
      %v2017 = vld [vmem:[%s1225 + $0x94] sm:$0xf]
      %v2018 = vld [vmem:[%s1225 + $0x98] sm:$0x1]
      %v2019 = vld [vmem:[%s1225 + $0x9c] sm:$0xe]
      %v2020 = vld [vmem:[%s1225 + $0xa0] sm:$0xf]
      %v2021 = vld [vmem:[%s1225 + $0xa4] sm:$0x1]
      %v2022 = vld [vmem:[%s1225 + $0xa8] sm:$0xe]
      %v2023 = vld [vmem:[%s1225 + $0xac] sm:$0xf]
      %v2024 = vld [vmem:[%s1225 + $0xb0] sm:$0x1]
      %v2025 = vld [vmem:[%s1225 + $0xb4] sm:$0xe]
      %v2026 = vld [vmem:[%s1225 + $0xb8] sm:$0xf]
      %v2027 = vld [vmem:[%s1225 + $0xbc] sm:$0x1]
      %v2076 = vrot.slane %v1980, 5
      %v2077 = vrot.slane %v2076, 4
      %v2078 = vrot.slane %v1981, 5
      %v2079 = vsel %vm983, %v2077, %v2078
      %v2080 = vrot.slane %v2078, 4
      %v2081 = vrot.slane %v1982, 5
      %v2082 = vsel %vm983, %v2080, %v2081
      %v2083 = vrot.slane %v1983, 5
      %v2084 = vrot.slane %v2083, 4
      %v2085 = vrot.slane %v1984, 5
      %v2086 = vsel %vm983, %v2084, %v2085
      %v2087 = vrot.slane %v2085, 4
      %v2088 = vrot.slane %v1985, 5
      %v2089 = vsel %vm983, %v2087, %v2088
      %v2090 = vrot.slane %v1986, 5
      %v2091 = vrot.slane %v2090, 4
      %v2092 = vrot.slane %v1987, 5
      %v2093 = vsel %vm983, %v2091, %v2092
      %v2094 = vrot.slane %v2092, 4
      %v2095 = vrot.slane %v1988, 5
      %v2096 = vsel %vm983, %v2094, %v2095
      %v2097 = vrot.slane %v1989, 5
      %v2098 = vrot.slane %v2097, 4
      %v2099 = vrot.slane %v1990, 5
      %v2100 = vsel %vm983, %v2098, %v2099
      %v2101 = vrot.slane %v2099, 4
      %v2102 = vrot.slane %v1991, 5
      %v2103 = vsel %vm983, %v2101, %v2102
      %v2104 = vrot.slane %v1992, 5
      %v2105 = vrot.slane %v2104, 4
      %v2106 = vrot.slane %v1993, 5
      %v2107 = vsel %vm983, %v2105, %v2106
      %v2108 = vrot.slane %v2106, 4
      %v2109 = vrot.slane %v1994, 5
      %v2110 = vsel %vm983, %v2108, %v2109
      %v2111 = vrot.slane %v1995, 5
      %v2112 = vrot.slane %v2111, 4
      %v2113 = vrot.slane %v1996, 5
      %v2114 = vsel %vm983, %v2112, %v2113
      %v2115 = vrot.slane %v2113, 4
      %v2116 = vrot.slane %v1997, 5
      %v2117 = vsel %vm983, %v2115, %v2116
      %v2118 = vrot.slane %v1998, 5
      %v2119 = vrot.slane %v2118, 4
      %v2120 = vrot.slane %v1999, 5
      %v2121 = vsel %vm983, %v2119, %v2120
      %v2122 = vrot.slane %v2120, 4
      %v2123 = vrot.slane %v2000, 5
      %v2124 = vsel %vm983, %v2122, %v2123
      %v2125 = vrot.slane %v2001, 5
      %v2126 = vrot.slane %v2125, 4
      %v2127 = vrot.slane %v2002, 5
      %v2128 = vsel %vm983, %v2126, %v2127
      %v2129 = vrot.slane %v2127, 4
      %v2130 = vrot.slane %v2003, 5
      %v2131 = vsel %vm983, %v2129, %v2130
      %v2132 = vrot.slane %v2004, 5
      %v2133 = vrot.slane %v2132, 4
      %v2134 = vrot.slane %v2005, 5
      %v2135 = vsel %vm983, %v2133, %v2134
      %v2136 = vrot.slane %v2134, 4
      %v2137 = vrot.slane %v2006, 5
      %v2138 = vsel %vm983, %v2136, %v2137
      %v2139 = vrot.slane %v2007, 5
      %v2140 = vrot.slane %v2139, 4
      %v2141 = vrot.slane %v2008, 5
      %v2142 = vsel %vm983, %v2140, %v2141
      %v2143 = vrot.slane %v2141, 4
      %v2144 = vrot.slane %v2009, 5
      %v2145 = vsel %vm983, %v2143, %v2144
      %v2146 = vrot.slane %v2010, 5
      %v2147 = vrot.slane %v2146, 4
      %v2148 = vrot.slane %v2011, 5
      %v2149 = vsel %vm983, %v2147, %v2148
      %v2150 = vrot.slane %v2148, 4
      %v2151 = vrot.slane %v2012, 5
      %v2152 = vsel %vm983, %v2150, %v2151
      %v2153 = vrot.slane %v2013, 5
      %v2154 = vrot.slane %v2153, 4
      %v2155 = vrot.slane %v2014, 5
      %v2156 = vsel %vm983, %v2154, %v2155
      %v2157 = vrot.slane %v2155, 4
      %v2158 = vrot.slane %v2015, 5
      %v2159 = vsel %vm983, %v2157, %v2158
      %v2160 = vrot.slane %v2016, 5
      %v2161 = vrot.slane %v2160, 4
      %v2162 = vrot.slane %v2017, 5
      %v2163 = vsel %vm983, %v2161, %v2162
      %v2164 = vrot.slane %v2162, 4
      %v2165 = vrot.slane %v2018, 5
      %v2166 = vsel %vm983, %v2164, %v2165
      %v2167 = vrot.slane %v2019, 5
      %v2168 = vrot.slane %v2167, 4
      %v2169 = vrot.slane %v2020, 5
      %v2170 = vsel %vm983, %v2168, %v2169
      %v2171 = vrot.slane %v2169, 4
      %v2172 = vrot.slane %v2021, 5
      %v2173 = vsel %vm983, %v2171, %v2172
      %v2174 = vrot.slane %v2022, 5
      %v2175 = vrot.slane %v2174, 4
      %v2176 = vrot.slane %v2023, 5
      %v2177 = vsel %vm983, %v2175, %v2176
      %v2178 = vrot.slane %v2176, 4
      %v2179 = vrot.slane %v2024, 5
      %v2180 = vsel %vm983, %v2178, %v2179
      %v2181 = vrot.slane %v2025, 5
      %v2182 = vrot.slane %v2181, 4
      %v2183 = vrot.slane %v2026, 5
      %v2184 = vsel %vm983, %v2182, %v2183
      %v2185 = vrot.slane %v2183, 4
      %v2186 = vrot.slane %v2027, 5
      %v2187 = vsel %vm983, %v2185, %v2186
      %2188 = vrot.lane.b32.xlu0 %v2079, 20
      %v2189 = vpop.permute.xlu0 %2188
      %2190 = vrot.lane.b32.xlu0 %v2082, 20
      %v2191 = vpop.permute.xlu0 %2190
      %2192 = vrot.lane.b32.xlu0 %v2086, 20
      %v2193 = vpop.permute.xlu0 %2192
      %2194 = vrot.lane.b32.xlu0 %v2089, 20
      %v2195 = vpop.permute.xlu0 %2194
      %2196 = vrot.lane.b32.xlu0 %v2093, 20
      %v2197 = vpop.permute.xlu0 %2196
      %2198 = vrot.lane.b32.xlu0 %v2096, 20
      %v2199 = vpop.permute.xlu0 %2198
      %2200 = vrot.lane.b32.xlu0 %v2100, 20
      %v2201 = vpop.permute.xlu0 %2200
      %2202 = vrot.lane.b32.xlu0 %v2103, 20
      %v2203 = vpop.permute.xlu0 %2202
      %2204 = vrot.lane.b32.xlu0 %v2107, 20
      %v2205 = vpop.permute.xlu0 %2204
      %2206 = vrot.lane.b32.xlu0 %v2110, 20
      %v2207 = vpop.permute.xlu0 %2206
      %2208 = vrot.lane.b32.xlu0 %v2114, 20
      %v2209 = vpop.permute.xlu0 %2208
      %2210 = vrot.lane.b32.xlu0 %v2117, 20
      %v2211 = vpop.permute.xlu0 %2210
      %2212 = vrot.lane.b32.xlu0 %v2121, 20
      %v2213 = vpop.permute.xlu0 %2212
      %2214 = vrot.lane.b32.xlu0 %v2124, 20
      %v2215 = vpop.permute.xlu0 %2214
      %2216 = vrot.lane.b32.xlu0 %v2128, 20
      %v2217 = vpop.permute.xlu0 %2216
      %2218 = vrot.lane.b32.xlu0 %v2131, 20
      %v2219 = vpop.permute.xlu0 %2218
      %2220 = vrot.lane.b32.xlu0 %v2135, 20
      %v2221 = vpop.permute.xlu0 %2220
      %2222 = vrot.lane.b32.xlu0 %v2138, 20
      %v2223 = vpop.permute.xlu0 %2222
      %2224 = vrot.lane.b32.xlu0 %v2142, 20
      %v2225 = vpop.permute.xlu0 %2224
      %2226 = vrot.lane.b32.xlu0 %v2145, 20
      %v2227 = vpop.permute.xlu0 %2226
      %2228 = vrot.lane.b32.xlu0 %v2149, 20
      %v2229 = vpop.permute.xlu0 %2228
      %2230 = vrot.lane.b32.xlu0 %v2152, 20
      %v2231 = vpop.permute.xlu0 %2230
      %2232 = vrot.lane.b32.xlu0 %v2156, 20
      %v2233 = vpop.permute.xlu0 %2232
      %2234 = vrot.lane.b32.xlu0 %v2159, 20
      %v2235 = vpop.permute.xlu0 %2234
      %2236 = vrot.lane.b32.xlu0 %v2163, 20
      %v2237 = vpop.permute.xlu0 %2236
      %2238 = vrot.lane.b32.xlu0 %v2166, 20
      %v2239 = vpop.permute.xlu0 %2238
      %2240 = vrot.lane.b32.xlu0 %v2170, 20
      %v2241 = vpop.permute.xlu0 %2240
      %2242 = vrot.lane.b32.xlu0 %v2173, 20
      %v2243 = vpop.permute.xlu0 %2242
      %2244 = vrot.lane.b32.xlu0 %v2177, 20
      %v2245 = vpop.permute.xlu0 %2244
      %2246 = vrot.lane.b32.xlu0 %v2180, 20
      %v2247 = vpop.permute.xlu0 %2246
      %2248 = vrot.lane.b32.xlu0 %v2184, 20
      %v2249 = vpop.permute.xlu0 %2248
      %2250 = vrot.lane.b32.xlu0 %v2187, 20
      %v2251 = vpop.permute.xlu0 %2250
      %vm2284 = vcmask 191648
      %2285 = vst.msk [vmem:[#allocation2] sm:$0xf] %vm2284, %v2189
      %2286 = vst.msk [vmem:[#allocation2 + $0x4] sm:$0xf] %vm2284, %v2191
      %2287 = vst.msk [vmem:[#allocation2 + $0x8] sm:$0xf] %vm2284, %v2193
      %2288 = vst.msk [vmem:[#allocation2 + $0xc] sm:$0xf] %vm2284, %v2195
      %2289 = vst.msk [vmem:[#allocation2 + $0x10] sm:$0xf] %vm2284, %v2197
      %2290 = vst.msk [vmem:[#allocation2 + $0x14] sm:$0xf] %vm2284, %v2199
      %2291 = vst.msk [vmem:[#allocation2 + $0x18] sm:$0xf] %vm2284, %v2201
      %2292 = vst.msk [vmem:[#allocation2 + $0x1c] sm:$0xf] %vm2284, %v2203
      %2293 = vst.msk [vmem:[#allocation2 + $0x20] sm:$0xf] %vm2284, %v2205
      %2294 = vst.msk [vmem:[#allocation2 + $0x24] sm:$0xf] %vm2284, %v2207
      %2295 = vst.msk [vmem:[#allocation2 + $0x28] sm:$0xf] %vm2284, %v2209
      %2296 = vst.msk [vmem:[#allocation2 + $0x2c] sm:$0xf] %vm2284, %v2211
      %2297 = vst.msk [vmem:[#allocation2 + $0x30] sm:$0xf] %vm2284, %v2213
      %2298 = vst.msk [vmem:[#allocation2 + $0x34] sm:$0xf] %vm2284, %v2215
      %2299 = vst.msk [vmem:[#allocation2 + $0x38] sm:$0xf] %vm2284, %v2217
      %2300 = vst.msk [vmem:[#allocation2 + $0x3c] sm:$0xf] %vm2284, %v2219
      %2301 = vst.msk [vmem:[#allocation2 + $0x40] sm:$0xf] %vm2284, %v2221
      %2302 = vst.msk [vmem:[#allocation2 + $0x44] sm:$0xf] %vm2284, %v2223
      %2303 = vst.msk [vmem:[#allocation2 + $0x48] sm:$0xf] %vm2284, %v2225
      %2304 = vst.msk [vmem:[#allocation2 + $0x4c] sm:$0xf] %vm2284, %v2227
      %2305 = vst.msk [vmem:[#allocation2 + $0x50] sm:$0xf] %vm2284, %v2229
      %2306 = vst.msk [vmem:[#allocation2 + $0x54] sm:$0xf] %vm2284, %v2231
      %2307 = vst.msk [vmem:[#allocation2 + $0x58] sm:$0xf] %vm2284, %v2233
      %2308 = vst.msk [vmem:[#allocation2 + $0x5c] sm:$0xf] %vm2284, %v2235
      %2309 = vst.msk [vmem:[#allocation2 + $0x60] sm:$0xf] %vm2284, %v2237
      %2310 = vst.msk [vmem:[#allocation2 + $0x64] sm:$0xf] %vm2284, %v2239
      %2311 = vst.msk [vmem:[#allocation2 + $0x68] sm:$0xf] %vm2284, %v2241
      %2312 = vst.msk [vmem:[#allocation2 + $0x6c] sm:$0xf] %vm2284, %v2243
      %2313 = vst.msk [vmem:[#allocation2 + $0x70] sm:$0xf] %vm2284, %v2245
      %2314 = vst.msk [vmem:[#allocation2 + $0x74] sm:$0xf] %vm2284, %v2247
      %2315 = vst.msk [vmem:[#allocation2 + $0x78] sm:$0xf] %vm2284, %v2249
      %2316 = vst.msk [vmem:[#allocation2 + $0x7c] sm:$0xf] %vm2284, %v2251
      %s2317 = scalar_lea.vmem %s233, 24
      %v2318 = vld [vmem:[%s2317] sm:$0xf]
      %v2319 = vld [vmem:[%s2317 + $0x4] sm:$0xf]
      %v2320 = vld [vmem:[%s2317 + $0xc] sm:$0xf]
      %v2321 = vld [vmem:[%s2317 + $0x10] sm:$0xf]
      %v2322 = vld [vmem:[%s2317 + $0x18] sm:$0xf]
      %v2323 = vld [vmem:[%s2317 + $0x1c] sm:$0xf]
      %v2324 = vld [vmem:[%s2317 + $0x24] sm:$0xf]
      %v2325 = vld [vmem:[%s2317 + $0x28] sm:$0xf]
      %v2326 = vld [vmem:[%s2317 + $0x30] sm:$0xf]
      %v2327 = vld [vmem:[%s2317 + $0x34] sm:$0xf]
      %v2328 = vld [vmem:[%s2317 + $0x3c] sm:$0xf]
      %v2329 = vld [vmem:[%s2317 + $0x40] sm:$0xf]
      %v2330 = vld [vmem:[%s2317 + $0x48] sm:$0xf]
      %v2331 = vld [vmem:[%s2317 + $0x4c] sm:$0xf]
      %v2332 = vld [vmem:[%s2317 + $0x54] sm:$0xf]
      %v2333 = vld [vmem:[%s2317 + $0x58] sm:$0xf]
      %v2334 = vld [vmem:[%s2317 + $0x60] sm:$0xf]
      %v2335 = vld [vmem:[%s2317 + $0x64] sm:$0xf]
      %v2336 = vld [vmem:[%s2317 + $0x6c] sm:$0xf]
      %v2337 = vld [vmem:[%s2317 + $0x70] sm:$0xf]
      %v2338 = vld [vmem:[%s2317 + $0x78] sm:$0xf]
      %v2339 = vld [vmem:[%s2317 + $0x7c] sm:$0xf]
      %v2340 = vld [vmem:[%s2317 + $0x84] sm:$0xf]
      %v2341 = vld [vmem:[%s2317 + $0x88] sm:$0xf]
      %v2342 = vld [vmem:[%s2317 + $0x90] sm:$0xf]
      %v2343 = vld [vmem:[%s2317 + $0x94] sm:$0xf]
      %v2344 = vld [vmem:[%s2317 + $0x9c] sm:$0xf]
      %v2345 = vld [vmem:[%s2317 + $0xa0] sm:$0xf]
      %v2346 = vld [vmem:[%s2317 + $0xa8] sm:$0xf]
      %v2347 = vld [vmem:[%s2317 + $0xac] sm:$0xf]
      %v2348 = vld [vmem:[%s2317 + $0xb4] sm:$0xf]
      %v2349 = vld [vmem:[%s2317 + $0xb8] sm:$0xf]
      %2382 = vrot.lane.b32.xlu0 %v2318, 24
      %v2383 = vpop.permute.xlu0 %2382
      %2384 = vrot.lane.b32.xlu0 %v2319, 24
      %v2385 = vpop.permute.xlu0 %2384
      %2386 = vrot.lane.b32.xlu0 %v2320, 24
      %v2387 = vpop.permute.xlu0 %2386
      %2388 = vrot.lane.b32.xlu0 %v2321, 24
      %v2389 = vpop.permute.xlu0 %2388
      %2390 = vrot.lane.b32.xlu0 %v2322, 24
      %v2391 = vpop.permute.xlu0 %2390
      %2392 = vrot.lane.b32.xlu0 %v2323, 24
      %v2393 = vpop.permute.xlu0 %2392
      %2394 = vrot.lane.b32.xlu0 %v2324, 24
      %v2395 = vpop.permute.xlu0 %2394
      %2396 = vrot.lane.b32.xlu0 %v2325, 24
      %v2397 = vpop.permute.xlu0 %2396
      %2398 = vrot.lane.b32.xlu0 %v2326, 24
      %v2399 = vpop.permute.xlu0 %2398
      %2400 = vrot.lane.b32.xlu0 %v2327, 24
      %v2401 = vpop.permute.xlu0 %2400
      %2402 = vrot.lane.b32.xlu0 %v2328, 24
      %v2403 = vpop.permute.xlu0 %2402
      %2404 = vrot.lane.b32.xlu0 %v2329, 24
      %v2405 = vpop.permute.xlu0 %2404
      %2406 = vrot.lane.b32.xlu0 %v2330, 24
      %v2407 = vpop.permute.xlu0 %2406
      %2408 = vrot.lane.b32.xlu0 %v2331, 24
      %v2409 = vpop.permute.xlu0 %2408
      %2410 = vrot.lane.b32.xlu0 %v2332, 24
      %v2411 = vpop.permute.xlu0 %2410
      %2412 = vrot.lane.b32.xlu0 %v2333, 24
      %v2413 = vpop.permute.xlu0 %2412
      %2414 = vrot.lane.b32.xlu0 %v2334, 24
      %v2415 = vpop.permute.xlu0 %2414
      %2416 = vrot.lane.b32.xlu0 %v2335, 24
      %v2417 = vpop.permute.xlu0 %2416
      %2418 = vrot.lane.b32.xlu0 %v2336, 24
      %v2419 = vpop.permute.xlu0 %2418
      %2420 = vrot.lane.b32.xlu0 %v2337, 24
      %v2421 = vpop.permute.xlu0 %2420
      %2422 = vrot.lane.b32.xlu0 %v2338, 24
      %v2423 = vpop.permute.xlu0 %2422
      %2424 = vrot.lane.b32.xlu0 %v2339, 24
      %v2425 = vpop.permute.xlu0 %2424
      %2426 = vrot.lane.b32.xlu0 %v2340, 24
      %v2427 = vpop.permute.xlu0 %2426
      %2428 = vrot.lane.b32.xlu0 %v2341, 24
      %v2429 = vpop.permute.xlu0 %2428
      %2430 = vrot.lane.b32.xlu0 %v2342, 24
      %v2431 = vpop.permute.xlu0 %2430
      %2432 = vrot.lane.b32.xlu0 %v2343, 24
      %v2433 = vpop.permute.xlu0 %2432
      %2434 = vrot.lane.b32.xlu0 %v2344, 24
      %v2435 = vpop.permute.xlu0 %2434
      %2436 = vrot.lane.b32.xlu0 %v2345, 24
      %v2437 = vpop.permute.xlu0 %2436
      %2438 = vrot.lane.b32.xlu0 %v2346, 24
      %v2439 = vpop.permute.xlu0 %2438
      %2440 = vrot.lane.b32.xlu0 %v2347, 24
      %v2441 = vpop.permute.xlu0 %2440
      %2442 = vrot.lane.b32.xlu0 %v2348, 24
      %v2443 = vpop.permute.xlu0 %2442
      %2444 = vrot.lane.b32.xlu0 %v2349, 24
      %v2445 = vpop.permute.xlu0 %2444
      %vm2478 = vcmask 224448
      %2479 = vst.msk [vmem:[#allocation2] sm:$0xf] %vm2478, %v2383
      %2480 = vst.msk [vmem:[#allocation2 + $0x4] sm:$0xf] %vm2478, %v2385
      %2481 = vst.msk [vmem:[#allocation2 + $0x8] sm:$0xf] %vm2478, %v2387
      %2482 = vst.msk [vmem:[#allocation2 + $0xc] sm:$0xf] %vm2478, %v2389
      %2483 = vst.msk [vmem:[#allocation2 + $0x10] sm:$0xf] %vm2478, %v2391
      %2484 = vst.msk [vmem:[#allocation2 + $0x14] sm:$0xf] %vm2478, %v2393
      %2485 = vst.msk [vmem:[#allocation2 + $0x18] sm:$0xf] %vm2478, %v2395
      %2486 = vst.msk [vmem:[#allocation2 + $0x1c] sm:$0xf] %vm2478, %v2397
      %2487 = vst.msk [vmem:[#allocation2 + $0x20] sm:$0xf] %vm2478, %v2399
      %2488 = vst.msk [vmem:[#allocation2 + $0x24] sm:$0xf] %vm2478, %v2401
      %2489 = vst.msk [vmem:[#allocation2 + $0x28] sm:$0xf] %vm2478, %v2403
      %2490 = vst.msk [vmem:[#allocation2 + $0x2c] sm:$0xf] %vm2478, %v2405
      %2491 = vst.msk [vmem:[#allocation2 + $0x30] sm:$0xf] %vm2478, %v2407
      %2492 = vst.msk [vmem:[#allocation2 + $0x34] sm:$0xf] %vm2478, %v2409
      %2493 = vst.msk [vmem:[#allocation2 + $0x38] sm:$0xf] %vm2478, %v2411
      %2494 = vst.msk [vmem:[#allocation2 + $0x3c] sm:$0xf] %vm2478, %v2413
      %2495 = vst.msk [vmem:[#allocation2 + $0x40] sm:$0xf] %vm2478, %v2415
      %2496 = vst.msk [vmem:[#allocation2 + $0x44] sm:$0xf] %vm2478, %v2417
      %2497 = vst.msk [vmem:[#allocation2 + $0x48] sm:$0xf] %vm2478, %v2419
      %2498 = vst.msk [vmem:[#allocation2 + $0x4c] sm:$0xf] %vm2478, %v2421
      %2499 = vst.msk [vmem:[#allocation2 + $0x50] sm:$0xf] %vm2478, %v2423
      %2500 = vst.msk [vmem:[#allocation2 + $0x54] sm:$0xf] %vm2478, %v2425
      %2501 = vst.msk [vmem:[#allocation2 + $0x58] sm:$0xf] %vm2478, %v2427
      %2502 = vst.msk [vmem:[#allocation2 + $0x5c] sm:$0xf] %vm2478, %v2429
      %2503 = vst.msk [vmem:[#allocation2 + $0x60] sm:$0xf] %vm2478, %v2431
      %2504 = vst.msk [vmem:[#allocation2 + $0x64] sm:$0xf] %vm2478, %v2433
      %2505 = vst.msk [vmem:[#allocation2 + $0x68] sm:$0xf] %vm2478, %v2435
      %2506 = vst.msk [vmem:[#allocation2 + $0x6c] sm:$0xf] %vm2478, %v2437
      %2507 = vst.msk [vmem:[#allocation2 + $0x70] sm:$0xf] %vm2478, %v2439
      %2508 = vst.msk [vmem:[#allocation2 + $0x74] sm:$0xf] %vm2478, %v2441
      %2509 = vst.msk [vmem:[#allocation2 + $0x78] sm:$0xf] %vm2478, %v2443
      %2510 = vst.msk [vmem:[#allocation2 + $0x7c] sm:$0xf] %vm2478, %v2445
      %v2511 = vld [vmem:[%s2317] sm:$0xf]
      %v2512 = vld [vmem:[%s2317 + $0x4] sm:$0xf]
      %v2513 = vld [vmem:[%s2317 + $0x8] sm:$0x1]
      %v2514 = vld [vmem:[%s2317 + $0xc] sm:$0xf]
      %v2515 = vld [vmem:[%s2317 + $0x10] sm:$0xf]
      %v2516 = vld [vmem:[%s2317 + $0x14] sm:$0x1]
      %v2517 = vld [vmem:[%s2317 + $0x18] sm:$0xf]
      %v2518 = vld [vmem:[%s2317 + $0x1c] sm:$0xf]
      %v2519 = vld [vmem:[%s2317 + $0x20] sm:$0x1]
      %v2520 = vld [vmem:[%s2317 + $0x24] sm:$0xf]
      %v2521 = vld [vmem:[%s2317 + $0x28] sm:$0xf]
      %v2522 = vld [vmem:[%s2317 + $0x2c] sm:$0x1]
      %v2523 = vld [vmem:[%s2317 + $0x30] sm:$0xf]
      %v2524 = vld [vmem:[%s2317 + $0x34] sm:$0xf]
      %v2525 = vld [vmem:[%s2317 + $0x38] sm:$0x1]
      %v2526 = vld [vmem:[%s2317 + $0x3c] sm:$0xf]
      %v2527 = vld [vmem:[%s2317 + $0x40] sm:$0xf]
      %v2528 = vld [vmem:[%s2317 + $0x44] sm:$0x1]
      %v2529 = vld [vmem:[%s2317 + $0x48] sm:$0xf]
      %v2530 = vld [vmem:[%s2317 + $0x4c] sm:$0xf]
      %v2531 = vld [vmem:[%s2317 + $0x50] sm:$0x1]
      %v2532 = vld [vmem:[%s2317 + $0x54] sm:$0xf]
      %v2533 = vld [vmem:[%s2317 + $0x58] sm:$0xf]
      %v2534 = vld [vmem:[%s2317 + $0x5c] sm:$0x1]
      %v2535 = vld [vmem:[%s2317 + $0x60] sm:$0xf]
      %v2536 = vld [vmem:[%s2317 + $0x64] sm:$0xf]
      %v2537 = vld [vmem:[%s2317 + $0x68] sm:$0x1]
      %v2538 = vld [vmem:[%s2317 + $0x6c] sm:$0xf]
      %v2539 = vld [vmem:[%s2317 + $0x70] sm:$0xf]
      %v2540 = vld [vmem:[%s2317 + $0x74] sm:$0x1]
      %v2541 = vld [vmem:[%s2317 + $0x78] sm:$0xf]
      %v2542 = vld [vmem:[%s2317 + $0x7c] sm:$0xf]
      %v2543 = vld [vmem:[%s2317 + $0x80] sm:$0x1]
      %v2544 = vld [vmem:[%s2317 + $0x84] sm:$0xf]
      %v2545 = vld [vmem:[%s2317 + $0x88] sm:$0xf]
      %v2546 = vld [vmem:[%s2317 + $0x8c] sm:$0x1]
      %v2547 = vld [vmem:[%s2317 + $0x90] sm:$0xf]
      %v2548 = vld [vmem:[%s2317 + $0x94] sm:$0xf]
      %v2549 = vld [vmem:[%s2317 + $0x98] sm:$0x1]
      %v2550 = vld [vmem:[%s2317 + $0x9c] sm:$0xf]
      %v2551 = vld [vmem:[%s2317 + $0xa0] sm:$0xf]
      %v2552 = vld [vmem:[%s2317 + $0xa4] sm:$0x1]
      %v2553 = vld [vmem:[%s2317 + $0xa8] sm:$0xf]
      %v2554 = vld [vmem:[%s2317 + $0xac] sm:$0xf]
      %v2555 = vld [vmem:[%s2317 + $0xb0] sm:$0x1]
      %v2556 = vld [vmem:[%s2317 + $0xb4] sm:$0xf]
      %v2557 = vld [vmem:[%s2317 + $0xb8] sm:$0xf]
      %v2558 = vld [vmem:[%s2317 + $0xbc] sm:$0x1]
      %v2560 = vshrl.u32 %v2511, 16
      %v2562 = vrot.slane %v2560, 4
      %v2563 = vshll.u32 %v2511, 16
      %v2565 = vrot.slane %v2563, 5
      %v2566 = vor.u32 %v2562, %v2565
      %v2567 = vrot.slane %v2566, 4
      %v2569 = vshll.u32 %v2512, 16
      %v2571 = vrot.slane %v2569, 5
      %v2572 = vsel %vm371, %v2567, %v2571
      %v2573 = vshrl.u32 %v2512, 16
      %v2575 = vrot.slane %v2573, 4
      %v2576 = vor.u32 %v2575, %v2571
      %v2577 = vrot.slane %v2576, 4
      %v2579 = vshll.u32 %v2513, 16
      %v2581 = vrot.slane %v2579, 5
      %v2582 = vsel %vm371, %v2577, %v2581
      %v2584 = vshrl.u32 %v2514, 16
      %v2586 = vrot.slane %v2584, 4
      %v2587 = vshll.u32 %v2514, 16
      %v2589 = vrot.slane %v2587, 5
      %v2590 = vor.u32 %v2586, %v2589
      %v2591 = vrot.slane %v2590, 4
      %v2593 = vshll.u32 %v2515, 16
      %v2595 = vrot.slane %v2593, 5
      %v2596 = vsel %vm371, %v2591, %v2595
      %v2597 = vshrl.u32 %v2515, 16
      %v2599 = vrot.slane %v2597, 4
      %v2600 = vor.u32 %v2599, %v2595
      %v2601 = vrot.slane %v2600, 4
      %v2603 = vshll.u32 %v2516, 16
      %v2605 = vrot.slane %v2603, 5
      %v2606 = vsel %vm371, %v2601, %v2605
      %v2608 = vshrl.u32 %v2517, 16
      %v2610 = vrot.slane %v2608, 4
      %v2611 = vshll.u32 %v2517, 16
      %v2613 = vrot.slane %v2611, 5
      %v2614 = vor.u32 %v2610, %v2613
      %v2615 = vrot.slane %v2614, 4
      %v2617 = vshll.u32 %v2518, 16
      %v2619 = vrot.slane %v2617, 5
      %v2620 = vsel %vm371, %v2615, %v2619
      %v2621 = vshrl.u32 %v2518, 16
      %v2623 = vrot.slane %v2621, 4
      %v2624 = vor.u32 %v2623, %v2619
      %v2625 = vrot.slane %v2624, 4
      %v2627 = vshll.u32 %v2519, 16
      %v2629 = vrot.slane %v2627, 5
      %v2630 = vsel %vm371, %v2625, %v2629
      %v2632 = vshrl.u32 %v2520, 16
      %v2634 = vrot.slane %v2632, 4
      %v2635 = vshll.u32 %v2520, 16
      %v2637 = vrot.slane %v2635, 5
      %v2638 = vor.u32 %v2634, %v2637
      %v2639 = vrot.slane %v2638, 4
      %v2641 = vshll.u32 %v2521, 16
      %v2643 = vrot.slane %v2641, 5
      %v2644 = vsel %vm371, %v2639, %v2643
      %v2645 = vshrl.u32 %v2521, 16
      %v2647 = vrot.slane %v2645, 4
      %v2648 = vor.u32 %v2647, %v2643
      %v2649 = vrot.slane %v2648, 4
      %v2651 = vshll.u32 %v2522, 16
      %v2653 = vrot.slane %v2651, 5
      %v2654 = vsel %vm371, %v2649, %v2653
      %v2656 = vshrl.u32 %v2523, 16
      %v2658 = vrot.slane %v2656, 4
      %v2659 = vshll.u32 %v2523, 16
      %v2661 = vrot.slane %v2659, 5
      %v2662 = vor.u32 %v2658, %v2661
      %v2663 = vrot.slane %v2662, 4
      %v2665 = vshll.u32 %v2524, 16
      %v2667 = vrot.slane %v2665, 5
      %v2668 = vsel %vm371, %v2663, %v2667
      %v2669 = vshrl.u32 %v2524, 16
      %v2671 = vrot.slane %v2669, 4
      %v2672 = vor.u32 %v2671, %v2667
      %v2673 = vrot.slane %v2672, 4
      %v2675 = vshll.u32 %v2525, 16
      %v2677 = vrot.slane %v2675, 5
      %v2678 = vsel %vm371, %v2673, %v2677
      %v2680 = vshrl.u32 %v2526, 16
      %v2682 = vrot.slane %v2680, 4
      %v2683 = vshll.u32 %v2526, 16
      %v2685 = vrot.slane %v2683, 5
      %v2686 = vor.u32 %v2682, %v2685
      %v2687 = vrot.slane %v2686, 4
      %v2689 = vshll.u32 %v2527, 16
      %v2691 = vrot.slane %v2689, 5
      %v2692 = vsel %vm371, %v2687, %v2691
      %v2693 = vshrl.u32 %v2527, 16
      %v2695 = vrot.slane %v2693, 4
      %v2696 = vor.u32 %v2695, %v2691
      %v2697 = vrot.slane %v2696, 4
      %v2699 = vshll.u32 %v2528, 16
      %v2701 = vrot.slane %v2699, 5
      %v2702 = vsel %vm371, %v2697, %v2701
      %v2704 = vshrl.u32 %v2529, 16
      %v2706 = vrot.slane %v2704, 4
      %v2707 = vshll.u32 %v2529, 16
      %v2709 = vrot.slane %v2707, 5
      %v2710 = vor.u32 %v2706, %v2709
      %v2711 = vrot.slane %v2710, 4
      %v2713 = vshll.u32 %v2530, 16
      %v2715 = vrot.slane %v2713, 5
      %v2716 = vsel %vm371, %v2711, %v2715
      %v2717 = vshrl.u32 %v2530, 16
      %v2719 = vrot.slane %v2717, 4
      %v2720 = vor.u32 %v2719, %v2715
      %v2721 = vrot.slane %v2720, 4
      %v2723 = vshll.u32 %v2531, 16
      %v2725 = vrot.slane %v2723, 5
      %v2726 = vsel %vm371, %v2721, %v2725
      %v2728 = vshrl.u32 %v2532, 16
      %v2730 = vrot.slane %v2728, 4
      %v2731 = vshll.u32 %v2532, 16
      %v2733 = vrot.slane %v2731, 5
      %v2734 = vor.u32 %v2730, %v2733
      %v2735 = vrot.slane %v2734, 4
      %v2737 = vshll.u32 %v2533, 16
      %v2739 = vrot.slane %v2737, 5
      %v2740 = vsel %vm371, %v2735, %v2739
      %v2741 = vshrl.u32 %v2533, 16
      %v2743 = vrot.slane %v2741, 4
      %v2744 = vor.u32 %v2743, %v2739
      %v2745 = vrot.slane %v2744, 4
      %v2747 = vshll.u32 %v2534, 16
      %v2749 = vrot.slane %v2747, 5
      %v2750 = vsel %vm371, %v2745, %v2749
      %v2752 = vshrl.u32 %v2535, 16
      %v2754 = vrot.slane %v2752, 4
      %v2755 = vshll.u32 %v2535, 16
      %v2757 = vrot.slane %v2755, 5
      %v2758 = vor.u32 %v2754, %v2757
      %v2759 = vrot.slane %v2758, 4
      %v2761 = vshll.u32 %v2536, 16
      %v2763 = vrot.slane %v2761, 5
      %v2764 = vsel %vm371, %v2759, %v2763
      %v2765 = vshrl.u32 %v2536, 16
      %v2767 = vrot.slane %v2765, 4
      %v2768 = vor.u32 %v2767, %v2763
      %v2769 = vrot.slane %v2768, 4
      %v2771 = vshll.u32 %v2537, 16
      %v2773 = vrot.slane %v2771, 5
      %v2774 = vsel %vm371, %v2769, %v2773
      %v2776 = vshrl.u32 %v2538, 16
      %v2778 = vrot.slane %v2776, 4
      %v2779 = vshll.u32 %v2538, 16
      %v2781 = vrot.slane %v2779, 5
      %v2782 = vor.u32 %v2778, %v2781
      %v2783 = vrot.slane %v2782, 4
      %v2785 = vshll.u32 %v2539, 16
      %v2787 = vrot.slane %v2785, 5
      %v2788 = vsel %vm371, %v2783, %v2787
      %v2789 = vshrl.u32 %v2539, 16
      %v2791 = vrot.slane %v2789, 4
      %v2792 = vor.u32 %v2791, %v2787
      %v2793 = vrot.slane %v2792, 4
      %v2795 = vshll.u32 %v2540, 16
      %v2797 = vrot.slane %v2795, 5
      %v2798 = vsel %vm371, %v2793, %v2797
      %v2800 = vshrl.u32 %v2541, 16
      %v2802 = vrot.slane %v2800, 4
      %v2803 = vshll.u32 %v2541, 16
      %v2805 = vrot.slane %v2803, 5
      %v2806 = vor.u32 %v2802, %v2805
      %v2807 = vrot.slane %v2806, 4
      %v2809 = vshll.u32 %v2542, 16
      %v2811 = vrot.slane %v2809, 5
      %v2812 = vsel %vm371, %v2807, %v2811
      %v2813 = vshrl.u32 %v2542, 16
      %v2815 = vrot.slane %v2813, 4
      %v2816 = vor.u32 %v2815, %v2811
      %v2817 = vrot.slane %v2816, 4
      %v2819 = vshll.u32 %v2543, 16
      %v2821 = vrot.slane %v2819, 5
      %v2822 = vsel %vm371, %v2817, %v2821
      %v2824 = vshrl.u32 %v2544, 16
      %v2826 = vrot.slane %v2824, 4
      %v2827 = vshll.u32 %v2544, 16
      %v2829 = vrot.slane %v2827, 5
      %v2830 = vor.u32 %v2826, %v2829
      %v2831 = vrot.slane %v2830, 4
      %v2833 = vshll.u32 %v2545, 16
      %v2835 = vrot.slane %v2833, 5
      %v2836 = vsel %vm371, %v2831, %v2835
      %v2837 = vshrl.u32 %v2545, 16
      %v2839 = vrot.slane %v2837, 4
      %v2840 = vor.u32 %v2839, %v2835
      %v2841 = vrot.slane %v2840, 4
      %v2843 = vshll.u32 %v2546, 16
      %v2845 = vrot.slane %v2843, 5
      %v2846 = vsel %vm371, %v2841, %v2845
      %v2848 = vshrl.u32 %v2547, 16
      %v2850 = vrot.slane %v2848, 4
      %v2851 = vshll.u32 %v2547, 16
      %v2853 = vrot.slane %v2851, 5
      %v2854 = vor.u32 %v2850, %v2853
      %v2855 = vrot.slane %v2854, 4
      %v2857 = vshll.u32 %v2548, 16
      %v2859 = vrot.slane %v2857, 5
      %v2860 = vsel %vm371, %v2855, %v2859
      %v2861 = vshrl.u32 %v2548, 16
      %v2863 = vrot.slane %v2861, 4
      %v2864 = vor.u32 %v2863, %v2859
      %v2865 = vrot.slane %v2864, 4
      %v2867 = vshll.u32 %v2549, 16
      %v2869 = vrot.slane %v2867, 5
      %v2870 = vsel %vm371, %v2865, %v2869
      %v2872 = vshrl.u32 %v2550, 16
      %v2874 = vrot.slane %v2872, 4
      %v2875 = vshll.u32 %v2550, 16
      %v2877 = vrot.slane %v2875, 5
      %v2878 = vor.u32 %v2874, %v2877
      %v2879 = vrot.slane %v2878, 4
      %v2881 = vshll.u32 %v2551, 16
      %v2883 = vrot.slane %v2881, 5
      %v2884 = vsel %vm371, %v2879, %v2883
      %v2885 = vshrl.u32 %v2551, 16
      %v2887 = vrot.slane %v2885, 4
      %v2888 = vor.u32 %v2887, %v2883
      %v2889 = vrot.slane %v2888, 4
      %v2891 = vshll.u32 %v2552, 16
      %v2893 = vrot.slane %v2891, 5
      %v2894 = vsel %vm371, %v2889, %v2893
      %v2896 = vshrl.u32 %v2553, 16
      %v2898 = vrot.slane %v2896, 4
      %v2899 = vshll.u32 %v2553, 16
      %v2901 = vrot.slane %v2899, 5
      %v2902 = vor.u32 %v2898, %v2901
      %v2903 = vrot.slane %v2902, 4
      %v2905 = vshll.u32 %v2554, 16
      %v2907 = vrot.slane %v2905, 5
      %v2908 = vsel %vm371, %v2903, %v2907
      %v2909 = vshrl.u32 %v2554, 16
      %v2911 = vrot.slane %v2909, 4
      %v2912 = vor.u32 %v2911, %v2907
      %v2913 = vrot.slane %v2912, 4
      %v2915 = vshll.u32 %v2555, 16
      %v2917 = vrot.slane %v2915, 5
      %v2918 = vsel %vm371, %v2913, %v2917
      %v2920 = vshrl.u32 %v2556, 16
      %v2922 = vrot.slane %v2920, 4
      %v2923 = vshll.u32 %v2556, 16
      %v2925 = vrot.slane %v2923, 5
      %v2926 = vor.u32 %v2922, %v2925
      %v2927 = vrot.slane %v2926, 4
      %v2929 = vshll.u32 %v2557, 16
      %v2931 = vrot.slane %v2929, 5
      %v2932 = vsel %vm371, %v2927, %v2931
      %v2933 = vshrl.u32 %v2557, 16
      %v2935 = vrot.slane %v2933, 4
      %v2936 = vor.u32 %v2935, %v2931
      %v2937 = vrot.slane %v2936, 4
      %v2939 = vshll.u32 %v2558, 16
      %v2941 = vrot.slane %v2939, 5
      %v2942 = vsel %vm371, %v2937, %v2941
      %2943 = vrot.lane.b32.xlu0 %v2572, 28
      %v2944 = vpop.permute.xlu0 %2943
      %2945 = vrot.lane.b32.xlu0 %v2582, 28
      %v2946 = vpop.permute.xlu0 %2945
      %2947 = vrot.lane.b32.xlu0 %v2596, 28
      %v2948 = vpop.permute.xlu0 %2947
      %2949 = vrot.lane.b32.xlu0 %v2606, 28
      %v2950 = vpop.permute.xlu0 %2949
      %2951 = vrot.lane.b32.xlu0 %v2620, 28
      %v2952 = vpop.permute.xlu0 %2951
      %2953 = vrot.lane.b32.xlu0 %v2630, 28
      %v2954 = vpop.permute.xlu0 %2953
      %2955 = vrot.lane.b32.xlu0 %v2644, 28
      %v2956 = vpop.permute.xlu0 %2955
      %2957 = vrot.lane.b32.xlu0 %v2654, 28
      %v2958 = vpop.permute.xlu0 %2957
      %2959 = vrot.lane.b32.xlu0 %v2668, 28
      %v2960 = vpop.permute.xlu0 %2959
      %2961 = vrot.lane.b32.xlu0 %v2678, 28
      %v2962 = vpop.permute.xlu0 %2961
      %2963 = vrot.lane.b32.xlu0 %v2692, 28
      %v2964 = vpop.permute.xlu0 %2963
      %2965 = vrot.lane.b32.xlu0 %v2702, 28
      %v2966 = vpop.permute.xlu0 %2965
      %2967 = vrot.lane.b32.xlu0 %v2716, 28
      %v2968 = vpop.permute.xlu0 %2967
      %2969 = vrot.lane.b32.xlu0 %v2726, 28
      %v2970 = vpop.permute.xlu0 %2969
      %2971 = vrot.lane.b32.xlu0 %v2740, 28
      %v2972 = vpop.permute.xlu0 %2971
      %2973 = vrot.lane.b32.xlu0 %v2750, 28
      %v2974 = vpop.permute.xlu0 %2973
      %2975 = vrot.lane.b32.xlu0 %v2764, 28
      %v2976 = vpop.permute.xlu0 %2975
      %2977 = vrot.lane.b32.xlu0 %v2774, 28
      %v2978 = vpop.permute.xlu0 %2977
      %2979 = vrot.lane.b32.xlu0 %v2788, 28
      %v2980 = vpop.permute.xlu0 %2979
      %2981 = vrot.lane.b32.xlu0 %v2798, 28
      %v2982 = vpop.permute.xlu0 %2981
      %2983 = vrot.lane.b32.xlu0 %v2812, 28
      %v2984 = vpop.permute.xlu0 %2983
      %2985 = vrot.lane.b32.xlu0 %v2822, 28
      %v2986 = vpop.permute.xlu0 %2985
      %2987 = vrot.lane.b32.xlu0 %v2836, 28
      %v2988 = vpop.permute.xlu0 %2987
      %2989 = vrot.lane.b32.xlu0 %v2846, 28
      %v2990 = vpop.permute.xlu0 %2989
      %2991 = vrot.lane.b32.xlu0 %v2860, 28
      %v2992 = vpop.permute.xlu0 %2991
      %2993 = vrot.lane.b32.xlu0 %v2870, 28
      %v2994 = vpop.permute.xlu0 %2993
      %2995 = vrot.lane.b32.xlu0 %v2884, 28
      %v2996 = vpop.permute.xlu0 %2995
      %2997 = vrot.lane.b32.xlu0 %v2894, 28
      %v2998 = vpop.permute.xlu0 %2997
      %2999 = vrot.lane.b32.xlu0 %v2908, 28
      %v3000 = vpop.permute.xlu0 %2999
      %3001 = vrot.lane.b32.xlu0 %v2918, 28
      %v3002 = vpop.permute.xlu0 %3001
      %3003 = vrot.lane.b32.xlu0 %v2932, 28
      %v3004 = vpop.permute.xlu0 %3003
      %3005 = vrot.lane.b32.xlu0 %v2942, 28
      %v3006 = vpop.permute.xlu0 %3005
      %vm3039 = vcmask 257248
      %3040 = vst.msk [vmem:[#allocation2] sm:$0xf] %vm3039, %v2944
      %3041 = vst.msk [vmem:[#allocation2 + $0x4] sm:$0xf] %vm3039, %v2946
      %3042 = vst.msk [vmem:[#allocation2 + $0x8] sm:$0xf] %vm3039, %v2948
      %3043 = vst.msk [vmem:[#allocation2 + $0xc] sm:$0xf] %vm3039, %v2950
      %3044 = vst.msk [vmem:[#allocation2 + $0x10] sm:$0xf] %vm3039, %v2952
      %3045 = vst.msk [vmem:[#allocation2 + $0x14] sm:$0xf] %vm3039, %v2954
      %3046 = vst.msk [vmem:[#allocation2 + $0x18] sm:$0xf] %vm3039, %v2956
      %3047 = vst.msk [vmem:[#allocation2 + $0x1c] sm:$0xf] %vm3039, %v2958
      %3048 = vst.msk [vmem:[#allocation2 + $0x20] sm:$0xf] %vm3039, %v2960
      %3049 = vst.msk [vmem:[#allocation2 + $0x24] sm:$0xf] %vm3039, %v2962
      %3050 = vst.msk [vmem:[#allocation2 + $0x28] sm:$0xf] %vm3039, %v2964
      %3051 = vst.msk [vmem:[#allocation2 + $0x2c] sm:$0xf] %vm3039, %v2966
      %3052 = vst.msk [vmem:[#allocation2 + $0x30] sm:$0xf] %vm3039, %v2968
      %3053 = vst.msk [vmem:[#allocation2 + $0x34] sm:$0xf] %vm3039, %v2970
      %3054 = vst.msk [vmem:[#allocation2 + $0x38] sm:$0xf] %vm3039, %v2972
      %3055 = vst.msk [vmem:[#allocation2 + $0x3c] sm:$0xf] %vm3039, %v2974
      %3056 = vst.msk [vmem:[#allocation2 + $0x40] sm:$0xf] %vm3039, %v2976
      %3057 = vst.msk [vmem:[#allocation2 + $0x44] sm:$0xf] %vm3039, %v2978
      %3058 = vst.msk [vmem:[#allocation2 + $0x48] sm:$0xf] %vm3039, %v2980
      %3059 = vst.msk [vmem:[#allocation2 + $0x4c] sm:$0xf] %vm3039, %v2982
      %3060 = vst.msk [vmem:[#allocation2 + $0x50] sm:$0xf] %vm3039, %v2984
      %3061 = vst.msk [vmem:[#allocation2 + $0x54] sm:$0xf] %vm3039, %v2986
      %3062 = vst.msk [vmem:[#allocation2 + $0x58] sm:$0xf] %vm3039, %v2988
      %3063 = vst.msk [vmem:[#allocation2 + $0x5c] sm:$0xf] %vm3039, %v2990
      %3064 = vst.msk [vmem:[#allocation2 + $0x60] sm:$0xf] %vm3039, %v2992
      %3065 = vst.msk [vmem:[#allocation2 + $0x64] sm:$0xf] %vm3039, %v2994
      %3066 = vst.msk [vmem:[#allocation2 + $0x68] sm:$0xf] %vm3039, %v2996
      %3067 = vst.msk [vmem:[#allocation2 + $0x6c] sm:$0xf] %vm3039, %v2998
      %3068 = vst.msk [vmem:[#allocation2 + $0x70] sm:$0xf] %vm3039, %v3000
      %3069 = vst.msk [vmem:[#allocation2 + $0x74] sm:$0xf] %vm3039, %v3002
      %3070 = vst.msk [vmem:[#allocation2 + $0x78] sm:$0xf] %vm3039, %v3004
      %3071 = vst.msk [vmem:[#allocation2 + $0x7c] sm:$0xf] %vm3039, %v3006
      %v3072 = vld [vmem:[%s2317] sm:$0xe]
      %v3073 = vld [vmem:[%s2317 + $0x4] sm:$0xf]
      %v3074 = vld [vmem:[%s2317 + $0x8] sm:$0x1]
      %v3075 = vld [vmem:[%s2317 + $0xc] sm:$0xe]
      %v3076 = vld [vmem:[%s2317 + $0x10] sm:$0xf]
      %v3077 = vld [vmem:[%s2317 + $0x14] sm:$0x1]
      %v3078 = vld [vmem:[%s2317 + $0x18] sm:$0xe]
      %v3079 = vld [vmem:[%s2317 + $0x1c] sm:$0xf]
      %v3080 = vld [vmem:[%s2317 + $0x20] sm:$0x1]
      %v3081 = vld [vmem:[%s2317 + $0x24] sm:$0xe]
      %v3082 = vld [vmem:[%s2317 + $0x28] sm:$0xf]
      %v3083 = vld [vmem:[%s2317 + $0x2c] sm:$0x1]
      %v3084 = vld [vmem:[%s2317 + $0x30] sm:$0xe]
      %v3085 = vld [vmem:[%s2317 + $0x34] sm:$0xf]
      %v3086 = vld [vmem:[%s2317 + $0x38] sm:$0x1]
      %v3087 = vld [vmem:[%s2317 + $0x3c] sm:$0xe]
      %v3088 = vld [vmem:[%s2317 + $0x40] sm:$0xf]
      %v3089 = vld [vmem:[%s2317 + $0x44] sm:$0x1]
      %v3090 = vld [vmem:[%s2317 + $0x48] sm:$0xe]
      %v3091 = vld [vmem:[%s2317 + $0x4c] sm:$0xf]
      %v3092 = vld [vmem:[%s2317 + $0x50] sm:$0x1]
      %v3093 = vld [vmem:[%s2317 + $0x54] sm:$0xe]
      %v3094 = vld [vmem:[%s2317 + $0x58] sm:$0xf]
      %v3095 = vld [vmem:[%s2317 + $0x5c] sm:$0x1]
      %v3096 = vld [vmem:[%s2317 + $0x60] sm:$0xe]
      %v3097 = vld [vmem:[%s2317 + $0x64] sm:$0xf]
      %v3098 = vld [vmem:[%s2317 + $0x68] sm:$0x1]
      %v3099 = vld [vmem:[%s2317 + $0x6c] sm:$0xe]
      %v3100 = vld [vmem:[%s2317 + $0x70] sm:$0xf]
      %v3101 = vld [vmem:[%s2317 + $0x74] sm:$0x1]
      %v3102 = vld [vmem:[%s2317 + $0x78] sm:$0xe]
      %v3103 = vld [vmem:[%s2317 + $0x7c] sm:$0xf]
      %v3104 = vld [vmem:[%s2317 + $0x80] sm:$0x1]
      %v3105 = vld [vmem:[%s2317 + $0x84] sm:$0xe]
      %v3106 = vld [vmem:[%s2317 + $0x88] sm:$0xf]
      %v3107 = vld [vmem:[%s2317 + $0x8c] sm:$0x1]
      %v3108 = vld [vmem:[%s2317 + $0x90] sm:$0xe]
      %v3109 = vld [vmem:[%s2317 + $0x94] sm:$0xf]
      %v3110 = vld [vmem:[%s2317 + $0x98] sm:$0x1]
      %v3111 = vld [vmem:[%s2317 + $0x9c] sm:$0xe]
      %v3112 = vld [vmem:[%s2317 + $0xa0] sm:$0xf]
      %v3113 = vld [vmem:[%s2317 + $0xa4] sm:$0x1]
      %v3114 = vld [vmem:[%s2317 + $0xa8] sm:$0xe]
      %v3115 = vld [vmem:[%s2317 + $0xac] sm:$0xf]
      %v3116 = vld [vmem:[%s2317 + $0xb0] sm:$0x1]
      %v3117 = vld [vmem:[%s2317 + $0xb4] sm:$0xe]
      %v3118 = vld [vmem:[%s2317 + $0xb8] sm:$0xf]
      %v3119 = vld [vmem:[%s2317 + $0xbc] sm:$0x1]
      %v3168 = vrot.slane %v3072, 5
      %v3169 = vrot.slane %v3168, 4
      %v3170 = vrot.slane %v3073, 5
      %v3171 = vsel %vm983, %v3169, %v3170
      %v3172 = vrot.slane %v3170, 4
      %v3173 = vrot.slane %v3074, 5
      %v3174 = vsel %vm983, %v3172, %v3173
      %v3175 = vrot.slane %v3075, 5
      %v3176 = vrot.slane %v3175, 4
      %v3177 = vrot.slane %v3076, 5
      %v3178 = vsel %vm983, %v3176, %v3177
      %v3179 = vrot.slane %v3177, 4
      %v3180 = vrot.slane %v3077, 5
      %v3181 = vsel %vm983, %v3179, %v3180
      %v3182 = vrot.slane %v3078, 5
      %v3183 = vrot.slane %v3182, 4
      %v3184 = vrot.slane %v3079, 5
      %v3185 = vsel %vm983, %v3183, %v3184
      %v3186 = vrot.slane %v3184, 4
      %v3187 = vrot.slane %v3080, 5
      %v3188 = vsel %vm983, %v3186, %v3187
      %v3189 = vrot.slane %v3081, 5
      %v3190 = vrot.slane %v3189, 4
      %v3191 = vrot.slane %v3082, 5
      %v3192 = vsel %vm983, %v3190, %v3191
      %v3193 = vrot.slane %v3191, 4
      %v3194 = vrot.slane %v3083, 5
      %v3195 = vsel %vm983, %v3193, %v3194
      %v3196 = vrot.slane %v3084, 5
      %v3197 = vrot.slane %v3196, 4
      %v3198 = vrot.slane %v3085, 5
      %v3199 = vsel %vm983, %v3197, %v3198
      %v3200 = vrot.slane %v3198, 4
      %v3201 = vrot.slane %v3086, 5
      %v3202 = vsel %vm983, %v3200, %v3201
      %v3203 = vrot.slane %v3087, 5
      %v3204 = vrot.slane %v3203, 4
      %v3205 = vrot.slane %v3088, 5
      %v3206 = vsel %vm983, %v3204, %v3205
      %v3207 = vrot.slane %v3205, 4
      %v3208 = vrot.slane %v3089, 5
      %v3209 = vsel %vm983, %v3207, %v3208
      %v3210 = vrot.slane %v3090, 5
      %v3211 = vrot.slane %v3210, 4
      %v3212 = vrot.slane %v3091, 5
      %v3213 = vsel %vm983, %v3211, %v3212
      %v3214 = vrot.slane %v3212, 4
      %v3215 = vrot.slane %v3092, 5
      %v3216 = vsel %vm983, %v3214, %v3215
      %v3217 = vrot.slane %v3093, 5
      %v3218 = vrot.slane %v3217, 4
      %v3219 = vrot.slane %v3094, 5
      %v3220 = vsel %vm983, %v3218, %v3219
      %v3221 = vrot.slane %v3219, 4
      %v3222 = vrot.slane %v3095, 5
      %v3223 = vsel %vm983, %v3221, %v3222
      %v3224 = vrot.slane %v3096, 5
      %v3225 = vrot.slane %v3224, 4
      %v3226 = vrot.slane %v3097, 5
      %v3227 = vsel %vm983, %v3225, %v3226
      %v3228 = vrot.slane %v3226, 4
      %v3229 = vrot.slane %v3098, 5
      %v3230 = vsel %vm983, %v3228, %v3229
      %v3231 = vrot.slane %v3099, 5
      %v3232 = vrot.slane %v3231, 4
      %v3233 = vrot.slane %v3100, 5
      %v3234 = vsel %vm983, %v3232, %v3233
      %v3235 = vrot.slane %v3233, 4
      %v3236 = vrot.slane %v3101, 5
      %v3237 = vsel %vm983, %v3235, %v3236
      %v3238 = vrot.slane %v3102, 5
      %v3239 = vrot.slane %v3238, 4
      %v3240 = vrot.slane %v3103, 5
      %v3241 = vsel %vm983, %v3239, %v3240
      %v3242 = vrot.slane %v3240, 4
      %v3243 = vrot.slane %v3104, 5
      %v3244 = vsel %vm983, %v3242, %v3243
      %v3245 = vrot.slane %v3105, 5
      %v3246 = vrot.slane %v3245, 4
      %v3247 = vrot.slane %v3106, 5
      %v3248 = vsel %vm983, %v3246, %v3247
      %v3249 = vrot.slane %v3247, 4
      %v3250 = vrot.slane %v3107, 5
      %v3251 = vsel %vm983, %v3249, %v3250
      %v3252 = vrot.slane %v3108, 5
      %v3253 = vrot.slane %v3252, 4
      %v3254 = vrot.slane %v3109, 5
      %v3255 = vsel %vm983, %v3253, %v3254
      %v3256 = vrot.slane %v3254, 4
      %v3257 = vrot.slane %v3110, 5
      %v3258 = vsel %vm983, %v3256, %v3257
      %v3259 = vrot.slane %v3111, 5
      %v3260 = vrot.slane %v3259, 4
      %v3261 = vrot.slane %v3112, 5
      %v3262 = vsel %vm983, %v3260, %v3261
      %v3263 = vrot.slane %v3261, 4
      %v3264 = vrot.slane %v3113, 5
      %v3265 = vsel %vm983, %v3263, %v3264
      %v3266 = vrot.slane %v3114, 5
      %v3267 = vrot.slane %v3266, 4
      %v3268 = vrot.slane %v3115, 5
      %v3269 = vsel %vm983, %v3267, %v3268
      %v3270 = vrot.slane %v3268, 4
      %v3271 = vrot.slane %v3116, 5
      %v3272 = vsel %vm983, %v3270, %v3271
      %v3273 = vrot.slane %v3117, 5
      %v3274 = vrot.slane %v3273, 4
      %v3275 = vrot.slane %v3118, 5
      %v3276 = vsel %vm983, %v3274, %v3275
      %v3277 = vrot.slane %v3275, 4
      %v3278 = vrot.slane %v3119, 5
      %v3279 = vsel %vm983, %v3277, %v3278
      %3280 = vrot.lane.b32.xlu0 %v3171, 32
      %v3281 = vpop.permute.xlu0 %3280
      %3282 = vrot.lane.b32.xlu0 %v3174, 32
      %v3283 = vpop.permute.xlu0 %3282
      %3284 = vrot.lane.b32.xlu0 %v3178, 32
      %v3285 = vpop.permute.xlu0 %3284
      %3286 = vrot.lane.b32.xlu0 %v3181, 32
      %v3287 = vpop.permute.xlu0 %3286
      %3288 = vrot.lane.b32.xlu0 %v3185, 32
      %v3289 = vpop.permute.xlu0 %3288
      %3290 = vrot.lane.b32.xlu0 %v3188, 32
      %v3291 = vpop.permute.xlu0 %3290
      %3292 = vrot.lane.b32.xlu0 %v3192, 32
      %v3293 = vpop.permute.xlu0 %3292
      %3294 = vrot.lane.b32.xlu0 %v3195, 32
      %v3295 = vpop.permute.xlu0 %3294
      %3296 = vrot.lane.b32.xlu0 %v3199, 32
      %v3297 = vpop.permute.xlu0 %3296
      %3298 = vrot.lane.b32.xlu0 %v3202, 32
      %v3299 = vpop.permute.xlu0 %3298
      %3300 = vrot.lane.b32.xlu0 %v3206, 32
      %v3301 = vpop.permute.xlu0 %3300
      %3302 = vrot.lane.b32.xlu0 %v3209, 32
      %v3303 = vpop.permute.xlu0 %3302
      %3304 = vrot.lane.b32.xlu0 %v3213, 32
      %v3305 = vpop.permute.xlu0 %3304
      %3306 = vrot.lane.b32.xlu0 %v3216, 32
      %v3307 = vpop.permute.xlu0 %3306
      %3308 = vrot.lane.b32.xlu0 %v3220, 32
      %v3309 = vpop.permute.xlu0 %3308
      %3310 = vrot.lane.b32.xlu0 %v3223, 32
      %v3311 = vpop.permute.xlu0 %3310
      %3312 = vrot.lane.b32.xlu0 %v3227, 32
      %v3313 = vpop.permute.xlu0 %3312
      %3314 = vrot.lane.b32.xlu0 %v3230, 32
      %v3315 = vpop.permute.xlu0 %3314
      %3316 = vrot.lane.b32.xlu0 %v3234, 32
      %v3317 = vpop.permute.xlu0 %3316
      %3318 = vrot.lane.b32.xlu0 %v3237, 32
      %v3319 = vpop.permute.xlu0 %3318
      %3320 = vrot.lane.b32.xlu0 %v3241, 32
      %v3321 = vpop.permute.xlu0 %3320
      %3322 = vrot.lane.b32.xlu0 %v3244, 32
      %v3323 = vpop.permute.xlu0 %3322
      %3324 = vrot.lane.b32.xlu0 %v3248, 32
      %v3325 = vpop.permute.xlu0 %3324
      %3326 = vrot.lane.b32.xlu0 %v3251, 32
      %v3327 = vpop.permute.xlu0 %3326
      %3328 = vrot.lane.b32.xlu0 %v3255, 32
      %v3329 = vpop.permute.xlu0 %3328
      %3330 = vrot.lane.b32.xlu0 %v3258, 32
      %v3331 = vpop.permute.xlu0 %3330
      %3332 = vrot.lane.b32.xlu0 %v3262, 32
      %v3333 = vpop.permute.xlu0 %3332
      %3334 = vrot.lane.b32.xlu0 %v3265, 32
      %v3335 = vpop.permute.xlu0 %3334
      %3336 = vrot.lane.b32.xlu0 %v3269, 32
      %v3337 = vpop.permute.xlu0 %3336
      %3338 = vrot.lane.b32.xlu0 %v3272, 32
      %v3339 = vpop.permute.xlu0 %3338
      %3340 = vrot.lane.b32.xlu0 %v3276, 32
      %v3341 = vpop.permute.xlu0 %3340
      %3342 = vrot.lane.b32.xlu0 %v3279, 32
      %v3343 = vpop.permute.xlu0 %3342
      %vm3376 = vcmask 290048
      %3377 = vst.msk [vmem:[#allocation2] sm:$0xf] %vm3376, %v3281
      %3378 = vst.msk [vmem:[#allocation2 + $0x4] sm:$0xf] %vm3376, %v3283
      %3379 = vst.msk [vmem:[#allocation2 + $0x8] sm:$0xf] %vm3376, %v3285
      %3380 = vst.msk [vmem:[#allocation2 + $0xc] sm:$0xf] %vm3376, %v3287
      %3381 = vst.msk [vmem:[#allocation2 + $0x10] sm:$0xf] %vm3376, %v3289
      %3382 = vst.msk [vmem:[#allocation2 + $0x14] sm:$0xf] %vm3376, %v3291
      %3383 = vst.msk [vmem:[#allocation2 + $0x18] sm:$0xf] %vm3376, %v3293
      %3384 = vst.msk [vmem:[#allocation2 + $0x1c] sm:$0xf] %vm3376, %v3295
      %3385 = vst.msk [vmem:[#allocation2 + $0x20] sm:$0xf] %vm3376, %v3297
      %3386 = vst.msk [vmem:[#allocation2 + $0x24] sm:$0xf] %vm3376, %v3299
      %3387 = vst.msk [vmem:[#allocation2 + $0x28] sm:$0xf] %vm3376, %v3301
      %3388 = vst.msk [vmem:[#allocation2 + $0x2c] sm:$0xf] %vm3376, %v3303
      %3389 = vst.msk [vmem:[#allocation2 + $0x30] sm:$0xf] %vm3376, %v3305
      %3390 = vst.msk [vmem:[#allocation2 + $0x34] sm:$0xf] %vm3376, %v3307
      %3391 = vst.msk [vmem:[#allocation2 + $0x38] sm:$0xf] %vm3376, %v3309
      %3392 = vst.msk [vmem:[#allocation2 + $0x3c] sm:$0xf] %vm3376, %v3311
      %3393 = vst.msk [vmem:[#allocation2 + $0x40] sm:$0xf] %vm3376, %v3313
      %3394 = vst.msk [vmem:[#allocation2 + $0x44] sm:$0xf] %vm3376, %v3315
      %3395 = vst.msk [vmem:[#allocation2 + $0x48] sm:$0xf] %vm3376, %v3317
      %3396 = vst.msk [vmem:[#allocation2 + $0x4c] sm:$0xf] %vm3376, %v3319
      %3397 = vst.msk [vmem:[#allocation2 + $0x50] sm:$0xf] %vm3376, %v3321
      %3398 = vst.msk [vmem:[#allocation2 + $0x54] sm:$0xf] %vm3376, %v3323
      %3399 = vst.msk [vmem:[#allocation2 + $0x58] sm:$0xf] %vm3376, %v3325
      %3400 = vst.msk [vmem:[#allocation2 + $0x5c] sm:$0xf] %vm3376, %v3327
      %3401 = vst.msk [vmem:[#allocation2 + $0x60] sm:$0xf] %vm3376, %v3329
      %3402 = vst.msk [vmem:[#allocation2 + $0x64] sm:$0xf] %vm3376, %v3331
      %3403 = vst.msk [vmem:[#allocation2 + $0x68] sm:$0xf] %vm3376, %v3333
      %3404 = vst.msk [vmem:[#allocation2 + $0x6c] sm:$0xf] %vm3376, %v3335
      %3405 = vst.msk [vmem:[#allocation2 + $0x70] sm:$0xf] %vm3376, %v3337
      %3406 = vst.msk [vmem:[#allocation2 + $0x74] sm:$0xf] %vm3376, %v3339
      %3407 = vst.msk [vmem:[#allocation2 + $0x78] sm:$0xf] %vm3376, %v3341
      %3408 = vst.msk [vmem:[#allocation2 + $0x7c] sm:$0xf] %vm3376, %v3343
      %v3409 = vld [vmem:[#allocation2] sm:$0xf]
      %v3410 = vld [vmem:[#allocation2 + $0x4] sm:$0xf]
      %v3411 = vld [vmem:[#allocation2 + $0x8] sm:$0xf]
      %v3412 = vld [vmem:[#allocation2 + $0xc] sm:$0xf]
      %v3413 = vld [vmem:[#allocation2 + $0x10] sm:$0xf]
      %v3414 = vld [vmem:[#allocation2 + $0x14] sm:$0xf]
      %v3415 = vld [vmem:[#allocation2 + $0x18] sm:$0xf]
      %v3416 = vld [vmem:[#allocation2 + $0x1c] sm:$0xf]
      %v3417 = vld [vmem:[#allocation2 + $0x20] sm:$0xf]
      %v3418 = vld [vmem:[#allocation2 + $0x24] sm:$0xf]
      %v3419 = vld [vmem:[#allocation2 + $0x28] sm:$0xf]
      %v3420 = vld [vmem:[#allocation2 + $0x2c] sm:$0xf]
      %v3421 = vld [vmem:[#allocation2 + $0x30] sm:$0xf]
      %v3422 = vld [vmem:[#allocation2 + $0x34] sm:$0xf]
      %v3423 = vld [vmem:[#allocation2 + $0x38] sm:$0xf]
      %v3424 = vld [vmem:[#allocation2 + $0x3c] sm:$0xf]
      %v3425 = vld [vmem:[#allocation2 + $0x40] sm:$0xf]
      %v3426 = vld [vmem:[#allocation2 + $0x44] sm:$0xf]
      %v3427 = vld [vmem:[#allocation2 + $0x48] sm:$0xf]
      %v3428 = vld [vmem:[#allocation2 + $0x4c] sm:$0xf]
      %v3429 = vld [vmem:[#allocation2 + $0x50] sm:$0xf]
      %v3430 = vld [vmem:[#allocation2 + $0x54] sm:$0xf]
      %v3431 = vld [vmem:[#allocation2 + $0x58] sm:$0xf]
      %v3432 = vld [vmem:[#allocation2 + $0x5c] sm:$0xf]
      %v3433 = vld [vmem:[#allocation2 + $0x60] sm:$0xf]
      %v3434 = vld [vmem:[#allocation2 + $0x64] sm:$0xf]
      %v3435 = vld [vmem:[#allocation2 + $0x68] sm:$0xf]
      %v3436 = vld [vmem:[#allocation2 + $0x6c] sm:$0xf]
      %v3437 = vld [vmem:[#allocation2 + $0x70] sm:$0xf]
      %v3438 = vld [vmem:[#allocation2 + $0x74] sm:$0xf]
      %v3439 = vld [vmem:[#allocation2 + $0x78] sm:$0xf]
      %v3440 = vld [vmem:[#allocation2 + $0x7c] sm:$0xf]
      %v3441 = vld [vmem:[%s1] sm:$0xf]
      %v3442 = vld [vmem:[%s1 + $0x4] sm:$0xf]
      %v3443 = vld [vmem:[%s1 + $0x8] sm:$0xf]
      %v3444 = vld [vmem:[%s1 + $0xc] sm:$0xf]
      %v3445 = vld [vmem:[%s1 + $0x10] sm:$0x3]
      %v3478 = vunpack.c.l.b16 %v3409
      %v3479 = vunpack.c.l.b16 %v3410
      %v3480 = vunpack.c.l.b16 %v3411
      %v3481 = vunpack.c.l.b16 %v3412
      %v3482 = vunpack.c.l.b16 %v3413
      %v3483 = vunpack.c.l.b16 %v3414
      %v3484 = vunpack.c.l.b16 %v3415
      %v3485 = vunpack.c.l.b16 %v3416
      %v3486 = vunpack.c.l.b16 %v3417
      %v3487 = vunpack.c.l.b16 %v3418
      %v3488 = vunpack.c.l.b16 %v3419
      %v3489 = vunpack.c.l.b16 %v3420
      %v3490 = vunpack.c.l.b16 %v3421
      %v3491 = vunpack.c.l.b16 %v3422
      %v3492 = vunpack.c.l.b16 %v3423
      %v3493 = vunpack.c.l.b16 %v3424
      %v3494 = vunpack.c.l.b16 %v3425
      %v3495 = vunpack.c.l.b16 %v3426
      %v3496 = vunpack.c.l.b16 %v3427
      %v3497 = vunpack.c.l.b16 %v3428
      %v3498 = vunpack.c.l.b16 %v3429
      %v3499 = vunpack.c.l.b16 %v3430
      %v3500 = vunpack.c.l.b16 %v3431
      %v3501 = vunpack.c.l.b16 %v3432
      %v3502 = vunpack.c.l.b16 %v3433
      %v3503 = vunpack.c.l.b16 %v3434
      %v3504 = vunpack.c.l.b16 %v3435
      %v3505 = vunpack.c.l.b16 %v3436
      %v3506 = vunpack.c.l.b16 %v3437
      %v3507 = vunpack.c.l.b16 %v3438
      %v3508 = vunpack.c.l.b16 %v3439
      %v3509 = vunpack.c.l.b16 %v3440
      %v3510 = vpack.c.b16 %v3479, %v3478
      %v3511 = vpack.c.b16 %v3481, %v3480
      %v3512 = vpack.c.b16 %v3483, %v3482
      %v3513 = vpack.c.b16 %v3485, %v3484
      %v3514 = vpack.c.b16 %v3487, %v3486
      %v3515 = vpack.c.b16 %v3489, %v3488
      %v3516 = vpack.c.b16 %v3491, %v3490
      %v3517 = vpack.c.b16 %v3493, %v3492
      %v3518 = vpack.c.b16 %v3495, %v3494
      %v3519 = vpack.c.b16 %v3497, %v3496
      %v3520 = vpack.c.b16 %v3499, %v3498
      %v3521 = vpack.c.b16 %v3501, %v3500
      %v3522 = vpack.c.b16 %v3503, %v3502
      %v3523 = vpack.c.b16 %v3505, %v3504
      %v3524 = vpack.c.b16 %v3507, %v3506
      %v3525 = vpack.c.b16 %v3509, %v3508
      %v3531 = vunpack.c.l.b16 %v3441
      %v3532 = vunpack.c.l.b16 %v3442
      %v3533 = vunpack.c.l.b16 %v3443
      %v3534 = vunpack.c.l.b16 %v3444
      %v3535 = vunpack.c.l.b16 %v3445
      %v3536 = vpack.c.b16 %v3532, %v3531
      %v3537 = vpack.c.b16 %v3534, %v3533
      %v3538 = vpack.c.b16 %v3535, %v3535
      %vm3541 = vcmask 293888
      %v3543 = vsel %vm3541, %v3510, 0
      %v3546 = vsel %vm3541, %v3511, 0
      %v3549 = vsel %vm3541, %v3512, 0
      %v3552 = vsel %vm3541, %v3513, 0
      %v3555 = vsel %vm3541, %v3514, 0
      %v3558 = vsel %vm3541, %v3515, 0
      %v3561 = vsel %vm3541, %v3516, 0
      %v3564 = vsel %vm3541, %v3517, 0
      %v3567 = vsel %vm3541, %v3518, 0
      %v3570 = vsel %vm3541, %v3519, 0
      %v3573 = vsel %vm3541, %v3520, 0
      %v3576 = vsel %vm3541, %v3521, 0
      %v3579 = vsel %vm3541, %v3522, 0
      %v3582 = vsel %vm3541, %v3523, 0
      %v3585 = vsel %vm3541, %v3524, 0
      %v3588 = vsel %vm3541, %v3525, 0
      %vm3590 = vcmask 1041408
      %v3592 = vsel %vm3590, %v3538, 0
      %3594 = vmatpush.bf16.msra.mxu0 0
      %3595 = vmatpush.bf16.msra.mxu0 0
      %3596 = vmatpush.bf16.msra.mxu0 0
      %3597 = vmatpush.bf16.msra.mxu0 0
      %3598 = vmatpush.bf16.msra.mxu0 0
      %3599 = vmatpush.bf16.msra.mxu0 %v3592
      %3600 = vmatpush.bf16.msra.mxu0 %v3537
      %3601 = vmatpush.bf16.msra.mxu0 %v3536
      %3602 = vmatmul.bf16.gmra.mxu0 %v3543
      %v3603 = vpop.f32.mrf.mxu0
      %v3604 = vadd.f32 0.0, %v3603
      %v3605 = vpop.f32.mrf.mxu0
      %v3606 = vadd.f32 0.0, %v3605
      %3607 = vmatmul.bf16.gmra.mxu0 %v3546
      %v3608 = vpop.f32.mrf.mxu0
      %v3609 = vadd.f32 0.0, %v3608
      %v3610 = vpop.f32.mrf.mxu0
      %v3611 = vadd.f32 0.0, %v3610
      %3612 = vmatmul.bf16.gmra.mxu0 %v3549
      %v3613 = vpop.f32.mrf.mxu0
      %v3614 = vadd.f32 0.0, %v3613
      %v3615 = vpop.f32.mrf.mxu0
      %v3616 = vadd.f32 0.0, %v3615
      %3617 = vmatmul.bf16.gmra.mxu0 %v3552
      %v3618 = vpop.f32.mrf.mxu0
      %v3619 = vadd.f32 0.0, %v3618
      %v3620 = vpop.f32.mrf.mxu0
      %v3621 = vadd.f32 0.0, %v3620
      %3622 = vmatmul.bf16.gmra.mxu0 %v3555
      %v3623 = vpop.f32.mrf.mxu0
      %v3624 = vadd.f32 0.0, %v3623
      %v3625 = vpop.f32.mrf.mxu0
      %v3626 = vadd.f32 0.0, %v3625
      %3627 = vmatmul.bf16.gmra.mxu0 %v3558
      %v3628 = vpop.f32.mrf.mxu0
      %v3629 = vadd.f32 0.0, %v3628
      %v3630 = vpop.f32.mrf.mxu0
      %v3631 = vadd.f32 0.0, %v3630
      %3632 = vmatmul.bf16.gmra.mxu0 %v3561
      %v3633 = vpop.f32.mrf.mxu0
      %v3634 = vadd.f32 0.0, %v3633
      %v3635 = vpop.f32.mrf.mxu0
      %v3636 = vadd.f32 0.0, %v3635
      %3637 = vmatmul.bf16.gmra.mxu0 %v3564
      %v3638 = vpop.f32.mrf.mxu0
      %v3639 = vadd.f32 0.0, %v3638
      %v3640 = vpop.f32.mrf.mxu0
      %v3641 = vadd.f32 0.0, %v3640
      %3642 = vmatmul.bf16.gmra.mxu0 %v3567
      %v3643 = vpop.f32.mrf.mxu0
      %v3644 = vadd.f32 0.0, %v3643
      %v3645 = vpop.f32.mrf.mxu0
      %v3646 = vadd.f32 0.0, %v3645
      %3647 = vmatmul.bf16.gmra.mxu0 %v3570
      %v3648 = vpop.f32.mrf.mxu0
      %v3649 = vadd.f32 0.0, %v3648
      %v3650 = vpop.f32.mrf.mxu0
      %v3651 = vadd.f32 0.0, %v3650
      %3652 = vmatmul.bf16.gmra.mxu0 %v3573
      %v3653 = vpop.f32.mrf.mxu0
      %v3654 = vadd.f32 0.0, %v3653
      %v3655 = vpop.f32.mrf.mxu0
      %v3656 = vadd.f32 0.0, %v3655
      %3657 = vmatmul.bf16.gmra.mxu0 %v3576
      %v3658 = vpop.f32.mrf.mxu0
      %v3659 = vadd.f32 0.0, %v3658
      %v3660 = vpop.f32.mrf.mxu0
      %v3661 = vadd.f32 0.0, %v3660
      %3662 = vmatmul.bf16.gmra.mxu0 %v3579
      %v3663 = vpop.f32.mrf.mxu0
      %v3664 = vadd.f32 0.0, %v3663
      %v3665 = vpop.f32.mrf.mxu0
      %v3666 = vadd.f32 0.0, %v3665
      %3667 = vmatmul.bf16.gmra.mxu0 %v3582
      %v3668 = vpop.f32.mrf.mxu0
      %v3669 = vadd.f32 0.0, %v3668
      %v3670 = vpop.f32.mrf.mxu0
      %v3671 = vadd.f32 0.0, %v3670
      %3672 = vmatmul.bf16.gmra.mxu0 %v3585
      %v3673 = vpop.f32.mrf.mxu0
      %v3674 = vadd.f32 0.0, %v3673
      %v3675 = vpop.f32.mrf.mxu0
      %v3676 = vadd.f32 0.0, %v3675
      %3677 = vmatmul.bf16.gmra.mxu0 %v3588
      %v3678 = vpop.f32.mrf.mxu0
      %v3679 = vadd.f32 0.0, %v3678
      %v3680 = vpop.f32.mrf.mxu0
      %v3681 = vadd.f32 0.0, %v3680
      %3682 = vdwg.mxu0
      %v3683 = vpack.c.bf16 %v3604, %v3604
      %v3684 = vpack.c.bf16 %v3606, %v3606
      %v3685 = vpack.c.bf16 %v3609, %v3609
      %v3686 = vpack.c.bf16 %v3611, %v3611
      %v3687 = vpack.c.bf16 %v3614, %v3614
      %v3688 = vpack.c.bf16 %v3616, %v3616
      %v3689 = vpack.c.bf16 %v3619, %v3619
      %v3690 = vpack.c.bf16 %v3621, %v3621
      %v3691 = vpack.c.bf16 %v3624, %v3624
      %v3692 = vpack.c.bf16 %v3626, %v3626
      %v3693 = vpack.c.bf16 %v3629, %v3629
      %v3694 = vpack.c.bf16 %v3631, %v3631
      %v3695 = vpack.c.bf16 %v3634, %v3634
      %v3696 = vpack.c.bf16 %v3636, %v3636
      %v3697 = vpack.c.bf16 %v3639, %v3639
      %v3698 = vpack.c.bf16 %v3641, %v3641
      %v3699 = vpack.c.bf16 %v3644, %v3644
      %v3700 = vpack.c.bf16 %v3646, %v3646
      %v3701 = vpack.c.bf16 %v3649, %v3649
      %v3702 = vpack.c.bf16 %v3651, %v3651
      %v3703 = vpack.c.bf16 %v3654, %v3654
      %v3704 = vpack.c.bf16 %v3656, %v3656
      %v3705 = vpack.c.bf16 %v3659, %v3659
      %v3706 = vpack.c.bf16 %v3661, %v3661
      %v3707 = vpack.c.bf16 %v3664, %v3664
      %v3708 = vpack.c.bf16 %v3666, %v3666
      %v3709 = vpack.c.bf16 %v3669, %v3669
      %v3710 = vpack.c.bf16 %v3671, %v3671
      %v3711 = vpack.c.bf16 %v3674, %v3674
      %v3712 = vpack.c.bf16 %v3676, %v3676
      %v3713 = vpack.c.bf16 %v3679, %v3679
      %v3714 = vpack.c.bf16 %v3681, %v3681
      %3715 = vst [vmem:[%s243] sm:$0xf] %v3683
      %3716 = vst [vmem:[%s243 + $0x4] sm:$0xf] %v3684
      %3717 = vst [vmem:[%s243 + $0x8] sm:$0xf] %v3685
      %3718 = vst [vmem:[%s243 + $0xc] sm:$0xf] %v3686
      %3719 = vst [vmem:[%s243 + $0x10] sm:$0xf] %v3687
      %3720 = vst [vmem:[%s243 + $0x14] sm:$0xf] %v3688
      %3721 = vst [vmem:[%s243 + $0x18] sm:$0xf] %v3689
      %3722 = vst [vmem:[%s243 + $0x1c] sm:$0xf] %v3690
      %3723 = vst [vmem:[%s243 + $0x20] sm:$0xf] %v3691
      %3724 = vst [vmem:[%s243 + $0x24] sm:$0xf] %v3692
      %3725 = vst [vmem:[%s243 + $0x28] sm:$0xf] %v3693
      %3726 = vst [vmem:[%s243 + $0x2c] sm:$0xf] %v3694
      %3727 = vst [vmem:[%s243 + $0x30] sm:$0xf] %v3695
      %3728 = vst [vmem:[%s243 + $0x34] sm:$0xf] %v3696
      %3729 = vst [vmem:[%s243 + $0x38] sm:$0xf] %v3697
      %3730 = vst [vmem:[%s243 + $0x3c] sm:$0xf] %v3698
      %3731 = vst [vmem:[%s243 + $0x40] sm:$0xf] %v3699
      %3732 = vst [vmem:[%s243 + $0x44] sm:$0xf] %v3700
      %3733 = vst [vmem:[%s243 + $0x48] sm:$0xf] %v3701
      %3734 = vst [vmem:[%s243 + $0x4c] sm:$0xf] %v3702
      %3735 = vst [vmem:[%s243 + $0x50] sm:$0xf] %v3703
      %3736 = vst [vmem:[%s243 + $0x54] sm:$0xf] %v3704
      %3737 = vst [vmem:[%s243 + $0x58] sm:$0xf] %v3705
      %3738 = vst [vmem:[%s243 + $0x5c] sm:$0xf] %v3706
      %3739 = vst [vmem:[%s243 + $0x60] sm:$0xf] %v3707
      %3740 = vst [vmem:[%s243 + $0x64] sm:$0xf] %v3708
      %3741 = vst [vmem:[%s243 + $0x68] sm:$0xf] %v3709
      %3742 = vst [vmem:[%s243 + $0x6c] sm:$0xf] %v3710
      %3743 = vst [vmem:[%s243 + $0x70] sm:$0xf] %v3711
      %3744 = vst [vmem:[%s243 + $0x74] sm:$0xf] %v3712
      %3745 = vst [vmem:[%s243 + $0x78] sm:$0xf] %v3713
      %3746 = vst [vmem:[%s243 + $0x7c] sm:$0xf] %v3714
      %v3747 = vadd.f32 %v3604, %v3606
      %v3748 = vadd.f32 %v3747, %v3609
      %v3749 = vadd.f32 %v3748, %v3611
      %v3750 = vadd.f32 %v3749, %v3614
      %v3751 = vadd.f32 %v3750, %v3616
      %v3752 = vadd.f32 %v3751, %v3619
      %v3753 = vadd.f32 %v3752, %v3621
      %v3754 = vadd.f32 %v3753, %v3624
      %v3755 = vadd.f32 %v3754, %v3626
      %v3756 = vadd.f32 %v3755, %v3629
      %v3757 = vadd.f32 %v3756, %v3631
      %v3758 = vadd.f32 %v3757, %v3634
      %v3759 = vadd.f32 %v3758, %v3636
      %v3760 = vadd.f32 %v3759, %v3639
      %v3761 = vadd.f32 %v3760, %v3641
      %v3762 = vadd.f32 %v3761, %v3644
      %v3763 = vadd.f32 %v3762, %v3646
      %v3764 = vadd.f32 %v3763, %v3649
      %v3765 = vadd.f32 %v3764, %v3651
      %v3766 = vadd.f32 %v3765, %v3654
      %v3767 = vadd.f32 %v3766, %v3656
      %v3768 = vadd.f32 %v3767, %v3659
      %v3769 = vadd.f32 %v3768, %v3661
      %v3770 = vadd.f32 %v3769, %v3664
      %v3771 = vadd.f32 %v3770, %v3666
      %v3772 = vadd.f32 %v3771, %v3669
      %v3773 = vadd.f32 %v3772, %v3671
      %v3774 = vadd.f32 %v3773, %v3674
      %v3775 = vadd.f32 %v3774, %v3676
      %v3776 = vadd.f32 %v3775, %v3679
      %v3777 = vadd.f32 %v3776, %v3681
      %v3778 = vrot.slane %v3777, 4
      %v3779 = vadd.f32 %v3777, %v3778
      %v3780 = vrot.slane %v3779, 2
      %v3781 = vadd.f32 %v3779, %v3780
      %v3782 = vrot.slane %v3781, 1
      %v3783 = vadd.f32 %v3781, %v3782
      %3784 = vst [vmem:[%s248] sm:$0x1] %v3783
      %v3785 = vmul.f32 %v3604, %v3604
      %v3786 = vmul.f32 %v3606, %v3606
      %v3787 = vmul.f32 %v3609, %v3609
      %v3788 = vmul.f32 %v3611, %v3611
      %v3789 = vmul.f32 %v3614, %v3614
      %v3790 = vmul.f32 %v3616, %v3616
      %v3791 = vmul.f32 %v3619, %v3619
      %v3792 = vmul.f32 %v3621, %v3621
      %v3793 = vmul.f32 %v3624, %v3624
      %v3794 = vmul.f32 %v3626, %v3626
      %v3795 = vmul.f32 %v3629, %v3629
      %v3796 = vmul.f32 %v3631, %v3631
      %v3797 = vmul.f32 %v3634, %v3634
      %v3798 = vmul.f32 %v3636, %v3636
      %v3799 = vmul.f32 %v3639, %v3639
      %v3800 = vmul.f32 %v3641, %v3641
      %v3801 = vmul.f32 %v3644, %v3644
      %v3802 = vmul.f32 %v3646, %v3646
      %v3803 = vmul.f32 %v3649, %v3649
      %v3804 = vmul.f32 %v3651, %v3651
      %v3805 = vmul.f32 %v3654, %v3654
      %v3806 = vmul.f32 %v3656, %v3656
      %v3807 = vmul.f32 %v3659, %v3659
      %v3808 = vmul.f32 %v3661, %v3661
      %v3809 = vmul.f32 %v3664, %v3664
      %v3810 = vmul.f32 %v3666, %v3666
      %v3811 = vmul.f32 %v3669, %v3669
      %v3812 = vmul.f32 %v3671, %v3671
      %v3813 = vmul.f32 %v3674, %v3674
      %v3814 = vmul.f32 %v3676, %v3676
      %v3815 = vmul.f32 %v3679, %v3679
      %v3816 = vmul.f32 %v3681, %v3681
      %v3817 = vadd.f32 %v3785, %v3786
      %v3818 = vadd.f32 %v3817, %v3787
      %v3819 = vadd.f32 %v3818, %v3788
      %v3820 = vadd.f32 %v3819, %v3789
      %v3821 = vadd.f32 %v3820, %v3790
      %v3822 = vadd.f32 %v3821, %v3791
      %v3823 = vadd.f32 %v3822, %v3792
      %v3824 = vadd.f32 %v3823, %v3793
      %v3825 = vadd.f32 %v3824, %v3794
      %v3826 = vadd.f32 %v3825, %v3795
      %v3827 = vadd.f32 %v3826, %v3796
      %v3828 = vadd.f32 %v3827, %v3797
      %v3829 = vadd.f32 %v3828, %v3798
      %v3830 = vadd.f32 %v3829, %v3799
      %v3831 = vadd.f32 %v3830, %v3800
      %v3832 = vadd.f32 %v3831, %v3801
      %v3833 = vadd.f32 %v3832, %v3802
      %v3834 = vadd.f32 %v3833, %v3803
      %v3835 = vadd.f32 %v3834, %v3804
      %v3836 = vadd.f32 %v3835, %v3805
      %v3837 = vadd.f32 %v3836, %v3806
      %v3838 = vadd.f32 %v3837, %v3807
      %v3839 = vadd.f32 %v3838, %v3808
      %v3840 = vadd.f32 %v3839, %v3809
      %v3841 = vadd.f32 %v3840, %v3810
      %v3842 = vadd.f32 %v3841, %v3811
      %v3843 = vadd.f32 %v3842, %v3812
      %v3844 = vadd.f32 %v3843, %v3813
      %v3845 = vadd.f32 %v3844, %v3814
      %v3846 = vadd.f32 %v3845, %v3815
      %v3847 = vadd.f32 %v3846, %v3816
      %v3848 = vrot.slane %v3847, 4
      %v3849 = vadd.f32 %v3847, %v3848
      %v3850 = vrot.slane %v3849, 2
      %v3851 = vadd.f32 %v3849, %v3850
      %v3852 = vrot.slane %v3851, 1
      %v3853 = vadd.f32 %v3851, %v3852
      %3854 = vst [vmem:[%s253] sm:$0x1] %v3853
      %s3855 = smul.u32 32, %s21
      %p3856 = scmp.lt.s32.totalorder %s20, 1
      %s3857 = scalar_select %p3856, %s20, 1
      %p3858 = scmp.lt.s32.totalorder %s3855, 31
      %s3859 = scalar_select %p3858, %s3855, 31
      %s3860 = smul.addr %s3857, 32
      %s3861 = sadd.s32 %s3859, %s3860
      %s3862 = smul.addr %s3861, 4
      %s3863 = scalar_lea.vmem %s2, %s3862
      %s3864 = sadd.s32 %s20, %s21
      %p3865 = scmp.lt.s32.totalorder %s3864, 1
      %s3866 = scalar_select %p3865, %s3864, 1
      %s3867 = scalar_lea.vmem %s3, %s3866
      %s3868 = sadd.s32 %s20, %s21
      %p3869 = scmp.lt.s32.totalorder %s3868, 1
      %s3870 = scalar_select %p3869, %s3868, 1
      %s3871 = scalar_lea.vmem %s4, %s3870
      // Predicated region
      $region29: #{unet_block.2} parent=27 // pred_check
        %p3872 = pneg %p97
      $region30: #{unet_block.2} parent=27 // pred_check_branch
        %3874 = sbr.rel (%p3872) target = $region32
      $region31: #{unet_block.2} parent=27 // pred_region
        %s3875 = smul.u32 32, %s21
      $region32: #{unet_block.2} parent=27 // pred_fallthru
        _
      // Predicated region
      $region33: #{unet_block.2} parent=27 // pred_check
        %p3876 = pneg %p125
      $region34: #{unet_block.2} parent=27 // pred_check_branch
        %3878 = sbr.rel (%p3876) target = $region36
      $region35: #{unet_block.2} parent=27 // pred_region
        %s3879 = sadd.s32 %s20, %s21
      $region36: #{unet_block.2} parent=27 // pred_fallthru
        _
      // Predicated region
      $region37: #{unet_block.2} parent=27 // pred_check
        %p3880 = pneg %p153
      $region38: #{unet_block.2} parent=27 // pred_check_branch
        %3882 = sbr.rel (%p3880) target = $region40
      $region39: #{unet_block.2} parent=27 // pred_region
        %s3883 = sadd.s32 %s20, %s21
      $region40: #{unet_block.2} parent=27 // pred_fallthru
        _
    $region28: #{unet_block.2} parent=5 // pred_fallthru
      _
    %p3884 = scmp.le.s32.totalorder 2, %s11
    // Predicated region
    $region41: #{unet_block.2} parent=5 // pred_check
      %p3885 = pneg %p3884
    $region42: #{unet_block.2} parent=5 // pred_check_branch
      %3887 = sbr.rel (%p3885) target = $region44
    $region43: #{unet_block.2} parent=5 // pred_region
      %s3888 = ssub.s32 %s11, 2
      // Predicated region
      $region45: #{unet_block.2} parent=43 // pred_check
        %p3889 = pneg %p103
      $region46: #{unet_block.2} parent=43 // pred_check_branch
        %3891 = sbr.rel (%p3889) target = $region48
      $region47: #{unet_block.2} parent=43 // pred_region
        %s3892 = smul.u32 32, %s23
        %p3893 = scmp.lt.s32.totalorder %s22, 1
        %s3894 = scalar_select %p3893, %s22, 1
        %p3895 = scmp.lt.s32.totalorder %s3892, 31
        %s3896 = scalar_select %p3895, %s3892, 31
        %s3897 = smul.addr %s3894, 32
        %s3898 = sadd.s32 %s3896, %s3897
        %s3899 = smul.addr %s3898, 4
        %s3900 = scalar_lea.vmem %s2, %s3899
      $region48: #{unet_block.2} parent=43 // pred_fallthru
        _
      // Predicated region
      $region49: #{unet_block.2} parent=43 // pred_check
        %p3901 = pneg %p131
      $region50: #{unet_block.2} parent=43 // pred_check_branch
        %3903 = sbr.rel (%p3901) target = $region52
      $region51: #{unet_block.2} parent=43 // pred_region
        %s3904 = sadd.s32 %s22, %s23
        %p3905 = scmp.lt.s32.totalorder %s3904, 1
        %s3906 = scalar_select %p3905, %s3904, 1
        %s3907 = scalar_lea.vmem %s3, %s3906
      $region52: #{unet_block.2} parent=43 // pred_fallthru
        _
      // Predicated region
      $region53: #{unet_block.2} parent=43 // pred_check
        %p3908 = pneg %p159
      $region54: #{unet_block.2} parent=43 // pred_check_branch
        %3910 = sbr.rel (%p3908) target = $region56
      $region55: #{unet_block.2} parent=43 // pred_region
        %s3911 = sadd.s32 %s22, %s23
        %p3912 = scmp.lt.s32.totalorder %s3911, 1
        %s3913 = scalar_select %p3912, %s3911, 1
        %s3914 = scalar_lea.vmem %s4, %s3913
      $region56: #{unet_block.2} parent=43 // pred_fallthru
        _
    $region44: #{unet_block.2} parent=5 // pred_fallthru
      _
  $region6: #{unet_block.2} parent=0 // loop_footer
    %s15 = sadd.s32 1, %s11
  $region7: #{unet_block.2} parent=0 // loop_footer_branch
    %10 = sbr.rel target = $region3
  $region8: #{unet_block.2} parent=0 // loop_exit
    _

</llo_original>
